<compile_context>
chip_gen: v7x
topology: tpu7x:2x2x1
jax: 0.10.0
libtpu: 0.0.40
codegen_flags: <defaults>
</compile_context>

<pallas_src>
import math

import jax
import jax.numpy as jnp
from jax import lax
from jax.experimental import pallas as pl
from jax.experimental.pallas import tpu as pltpu

EPS = 1e-5          # BatchNorm eps (PyTorch default)
BN_SHIFT_T = 5.0    # RadialBatchNorm magnitude shift "t"
LEAKY_SLOPE = 0.1   # nn.LeakyReLU(negative_slope=0.1)
_CPAD_UNIT = 8      # pad channel count per complex component to a multiple of 8


def _round_up(x, m):
    return (x + m - 1) // m * m


def _mosaic_params(dim_sems, need_bytes):
    try:
        cap = pltpu.get_tpu_info().vmem_capacity_bytes
    except Exception:
        cap = 128 * 1024 * 1024
    limit = int(min(cap * 3 // 4, max(32 * 1024 * 1024, 2 * need_bytes)))
    return pltpu.CompilerParams(dimension_semantics=dim_sems,
                                vmem_limit_bytes=limit)


# ----------------------------------------------------------------------------
# Conv kernel: complex 3x3x3 conv, all 27 taps fused into one MXU matmul.
# ----------------------------------------------------------------------------
def _make_conv_kernel(H, W, C2in, Cp_out, fuse_act, with_stats):
    HW = H * W
    C2 = 2 * Cp_out

    def kernel(x0_ref, x1_ref, x2_ref, w_ref, b_ref, *out_refs):
        if with_stats:
            y_ref, stats_ref = out_refs
        else:
            (y_ref,) = out_refs

        # In-kernel im2col over the 27 taps (3 depth slices x 9 in-plane
        # shifts); each tap contributes the packed [re | im] channel slab.
        cols = []
        for ref in (x0_ref, x1_ref, x2_ref):          # kd = 0, 1, 2
            x = ref[0, 0]                              # (H+2, W+2, C2in) bf16
            for dy in range(3):
                for dx in range(3):
                    cols.append(x[dy:dy + H, dx:dx + W, :].reshape(HW, C2in))
        x2 = jnp.concatenate(cols, axis=-1)            # (HW, 27*C2in) bf16

        # Single lane-dense MXU matmul, f32 accumulate; weight layout is
        # [[Wr, Wi], [-Wi, Wr]] per tap so the result is [re | im] directly.
        y = jnp.dot(x2, w_ref[...], preferred_element_type=jnp.float32)
        y = y + b_ref[...]                             # complex bias folded in

        if with_stats:
            re = y[:, :Cp_out]
            im = y[:, Cp_out:]
            mag2 = re * re + im * im
            mag = jnp.sqrt(mag2)
            s = jnp.concatenate([jnp.sum(mag, axis=0, keepdims=True),
                                 jnp.sum(mag2, axis=0, keepdims=True)], axis=-1)
            stats_ref[0, 0] = jnp.broadcast_to(s, (8, C2))
        if fuse_act:
            y = jnp.where(y >= 0.0, y, LEAKY_SLOPE * y)
        y_ref[0, 0] = y.astype(y_ref.dtype)            # single bf16 store pass

    return kernel


def _complex_conv3d(xz_pad, w_full, bias_full, Cp_out, fuse_act, with_stats):
    """xz_pad: (N, D+2, H+2, W+2, 2*Cp_in) zero-padded, packed [re|im], bf16."""
    N, Dp2, Hp2, Wp2, C2in = xz_pad.shape
    D, H, W = Dp2 - 2, Hp2 - 2, Wp2 - 2
    HW = H * W
    C2 = 2 * Cp_out
    Kfull = 27 * C2in
    assert HW % 8 == 0, "H*W must be a multiple of 8 for the (8,128) tiling"

    kernel = _make_conv_kernel(H, W, C2in, Cp_out, fuse_act, with_stats)

    def shifted(kd):
        # Three views of the same array, one per depth tap -> kd is folded
        # into a single grid step (one matmul, one store).
        return pl.BlockSpec((1, 1, Hp2, Wp2, C2in),
                            lambda n, d, _kd=kd: (n, d + _kd, 0, 0, 0))

    in_specs = [
        shifted(0), shifted(1), shifted(2),
        pl.BlockSpec((Kfull, C2), lambda n, d: (0, 0)),   # VMEM-resident weights
        pl.BlockSpec((1, C2), lambda n, d: (0, 0)),       # VMEM-resident bias
    ]
    y_spec = pl.BlockSpec((1, 1, HW, C2), lambda n, d: (n, d, 0, 0))
    y_shape = jax.ShapeDtypeStruct((N, D, HW, C2), jnp.bfloat16)
    if with_stats:
        out_specs = (y_spec,
                     pl.BlockSpec((1, 1, 8, C2), lambda n, d: (n, d, 0, 0)))
        out_shape = (y_shape, jax.ShapeDtypeStruct((N, D, 8, C2), jnp.float32))
    else:
        out_specs = y_spec
        out_shape = y_shape

    lane = 128
    blk_in = Hp2 * Wp2 * max(C2in, lane) * 2
    blk_w = Kfull * max(C2, lane) * 2
    blk_y = HW * max(C2, lane) * 2
    blk_s = 8 * max(C2, lane) * 4
    scratch = HW * max(Kfull, lane) * 4 + 27 * blk_in      # im2col + tap copies
    need = 2 * (3 * blk_in + blk_w + blk_y + blk_s) + scratch

    return pl.pallas_call(
        kernel,
        out_shape=out_shape,
        grid=(N, D),
        in_specs=in_specs,
        out_specs=out_specs,
        compiler_params=_mosaic_params(("parallel", "parallel"), need),
    )(xz_pad, xz_pad, xz_pad, w_full, bias_full)


# ----------------------------------------------------------------------------
# Epilogue kernel: RadialBatchNorm (global stats) + LeakyReLU, streaming over M.
# ----------------------------------------------------------------------------
def _make_bn_act_kernel(Cp, apply_act):
    def kernel(y_ref, scale_ref, shift_ref, o_ref):
        y = y_ref[...].astype(jnp.float32)     # (TILE_M, 2*Cp) = [re | im]
        re = y[:, :Cp]
        im = y[:, Cp:]
        mag2 = re * re + im * im
        inv = lax.rsqrt(mag2 + 1e-30)          # EUP; replaces sqrt + divides
        mag = mag2 * inv
        is_zero = mag2 <= 0.0
        cosp = jnp.where(is_zero, 1.0, re * inv)   # atan2(0,0)=0 convention
        sinp = jnp.where(is_zero, 0.0, im * inv)
        norm = mag * scale_ref[...] + shift_ref[...]
        o_re = norm * cosp
        o_im = norm * sinp
        if apply_act:
            o_re = jnp.where(o_re >= 0.0, o_re, LEAKY_SLOPE * o_re)
            o_im = jnp.where(o_im >= 0.0, o_im, LEAKY_SLOPE * o_im)
        o_ref[...] = jnp.concatenate([o_re, o_im], axis=-1).astype(o_ref.dtype)
    return kernel


def _radial_bn_act(conv_out, stats, gamma, beta, Cout, Cp, apply_act):
    N, D, HW, C2 = conv_out.shape
    M = N * D * HW

    # Global (full-batch) magnitude statistics from the per-(n,d) partial sums.
    ssum = jnp.sum(stats[:, :, 0, :].astype(jnp.float32), axis=(0, 1))  # (2*Cp,)
    mean = ssum[:Cp] / M
    var = jnp.maximum(ssum[Cp:] / M - mean * mean, 0.0)   # clamp: cancellation
    inv_std = lax.rsqrt(var + EPS)

    gamma_p = jnp.zeros((Cp,), jnp.float32).at[:Cout].set(gamma)
    beta_p = jnp.zeros((Cp,), jnp.float32).at[:Cout].set(beta)
    scale = (gamma_p * inv_std)[None, :]                                  # (1, Cp)
    shift = (beta_p + BN_SHIFT_T - gamma_p * inv_std * mean)[None, :]

    y2 = conv_out.reshape(M, C2)
    tile = min(M, 8192)                       # M is always a multiple of 8 here
    grid = (pl.cdiv(M, tile),)                # masked tail if tile doesn't divide
    need = 2 * (2 * tile * max(C2, 128) * 2) + 4 * Cp * 16
    out = pl.pallas_call(
        _make_bn_act_kernel(Cp, apply_act),
        out_shape=jax.ShapeDtypeStruct((M, C2), jnp.bfloat16),
        grid=grid,
        in_specs=[pl.BlockSpec((tile, C2), lambda i: (i, 0)),
                  pl.BlockSpec((1, Cp), lambda i: (0, 0)),
                  pl.BlockSpec((1, Cp), lambda i: (0, 0))],
        out_specs=pl.BlockSpec((tile, C2), lambda i: (i, 0)),
        input_output_aliases={0: 0},          # normalize in place
        compiler_params=_mosaic_params(("parallel",), need),
    )(y2, scale, shift)
    return out.reshape(N, D, HW, C2)


# ----------------------------------------------------------------------------
# Wrapper: one conv_3D stage and the stacked block.
# ----------------------------------------------------------------------------
def _pack_conv_params(p, Cp_in, Cp_out):
    wr, wi = p["wr"], p["wi"]               # (3,3,3,Cin,Cout) = (kd,ky,kx,ci,co)
    Cin, Cout = wr.shape[3], wr.shape[4]
    padw = ((0, 0), (0, 0), (0, 0), (0, Cp_in - Cin), (0, Cp_out - Cout))
    wr_p = jnp.pad(wr, padw)                # zero rows/cols for padded channels
    wi_p = jnp.pad(wi, padw)
    top = jnp.concatenate([wr_p, wi_p], axis=-1)    # re-input rows: [ Wr |  Wi]
    bot = jnp.concatenate([-wi_p, wr_p], axis=-1)   # im-input rows: [-Wi |  Wr]
    w_full = jnp.concatenate([top, bot], axis=3)    # (3,3,3, 2*Cp_in, 2*Cp_out)
    w_full = w_full.reshape(27 * 2 * Cp_in, 2 * Cp_out).astype(jnp.bfloat16)
    # TODO(synk): bias convention assumes each real conv carries its own bias
    # (net re-bias = br - bi, im-bias = br + bi); verify against ComplexConv3d.
    b_re = jnp.pad(p["br"] - p["bi"], (0, Cp_out - Cout))
    b_im = jnp.pad(p["br"] + p["bi"], (0, Cp_out - Cout))
    bias_full = jnp.concatenate([b_re, b_im])[None, :].astype(jnp.float32)
    return w_full, bias_full, Cout


def conv3d_stage(xz, Cp_in, params, apply_bn, apply_act):
    """One conv_3D: ComplexConv3d(3x3x3, pad 1) [+ RadialBN3d] [+ LeakyReLU].

    xz: (N, D, H, W, 2*Cp_in) bf16, packed [re | im] channels (padded ones are
        consumed by zero weight rows, so any values there are harmless).
    """
    N, D, H, W, _ = xz.shape
    Cout = params["wr"].shape[-1]
    Cp_out = _round_up(Cout, _CPAD_UNIT)
    w_full, bias_full, Cout = _pack_conv_params(params, Cp_in, Cp_out)

    # 1-voxel zero halo in D/H/W (bf16, one pass).
    xz_p = jnp.pad(xz, ((0, 0), (1, 1), (1, 1), (1, 1), (0, 0)))

    res = _complex_conv3d(xz_p, w_full, bias_full, Cp_out,
                          fuse_act=(apply_act and not apply_bn),
                          with_stats=apply_bn)
    if apply_bn:
        conv_out, stats = res
        out = _radial_bn_act(conv_out, stats, params["gamma"], params["beta"],
                             Cout, Cp_out, apply_act)
    else:
        out = res
    return out.reshape(N, D, H, W, 2 * Cp_out), Cp_out


def init_conv3d_params(key, cin, cout):
    kwr, kwi, kbr, kbi = jax.random.split(key, 4)
    std = 1.0 / math.sqrt(27 * cin)
    return dict(
        wr=jax.random.normal(kwr, (3, 3, 3, cin, cout), jnp.float32) * std,
        wi=jax.random.normal(kwi, (3, 3, 3, cin, cout), jnp.float32) * std,
        br=jax.random.uniform(kbr, (cout,), jnp.float32, -std, std),
        bi=jax.random.uniform(kbi, (cout,), jnp.float32, -std, std),
        gamma=jnp.ones((cout,), jnp.float32),
        beta=jnp.zeros((cout,), jnp.float32),
    )


def stacked_3dconvs_forward(x, params_list, apply_bn=True, apply_activation=True):
    """x: (N, in_ch, D, H, W, 2) complex ([..., 0] = real, [..., 1] = imag)."""
    N, Cin0, D, H, W, _ = x.shape
    Cp = _round_up(Cin0, _CPAD_UNIT)
    xr = jnp.transpose(x[..., 0], (0, 2, 3, 4, 1))     # NCDHW -> NDHWC
    xi = jnp.transpose(x[..., 1], (0, 2, 3, 4, 1))
    cpad = ((0, 0),) * 4 + ((0, Cp - Cin0),)
    # Pack [re | im] into one bf16 array; kept in this layout end-to-end.
    xz = jnp.concatenate([jnp.pad(xr, cpad), jnp.pad(xi, cpad)],
                         axis=-1).astype(jnp.bfloat16)

    p1, p2, p3 = params_list
    xz, Cp = conv3d_stage(xz, Cp, p1, apply_bn, apply_activation)
    xz, Cp = conv3d_stage(xz, Cp, p2, apply_bn, apply_activation)
    # last conv of the stack has no BN and no activation (per the PyTorch module)
    xz, Cp = conv3d_stage(xz, Cp, p3, False, False)

    Cout = p3["wr"].shape[-1]
    yr = jnp.transpose(xz[..., :Cout].astype(jnp.float32), (0, 4, 1, 2, 3))
    yi = jnp.transpose(xz[..., Cp:Cp + Cout].astype(jnp.float32), (0, 4, 1, 2, 3))
    return jnp.stack([yr, yi], axis=-1)


if __name__ == "__main__":
    key = jax.random.PRNGKey(0)
    kx, k1, k2, k3 = jax.random.split(key, 4)

    N, in_ch, out_ch = 2, 4, 8
    D, H, W = 4, 8, 8
    bottleneck_ratio = 1
    mid_ch = int(round(bottleneck_ratio * in_ch))

    x = jax.random.normal(kx, (N, in_ch, D, H, W, 2), jnp.float32)
    params = [init_conv3d_params(k1, in_ch, mid_ch),
              init_conv3d_params(k2, mid_ch, mid_ch),
              init_conv3d_params(k3, mid_ch, out_ch)]

    fwd = jax.jit(lambda v: stacked_3dconvs_forward(
        v, params, apply_bn=True, apply_activation=True))
    y = fwd(x)
    jax.block_until_ready(y)

    assert y.shape == (N, out_ch, D, H, W, 2), y.shape
    assert bool(jnp.all(jnp.isfinite(y)))
    print("KERNEL_OK")
</pallas_src>

<mosaic_0001>
module attributes {stable_mosaic.version = 11 : i64} {
  func.func @kernel(%arg0: i32, %arg1: memref<512x16xbf16, #tpu.memory_space<vmem>>, %arg2: memref<1x8xf32, #tpu.memory_space<vmem>>, %arg3: memref<1x8xf32, #tpu.memory_space<vmem>>, %arg4: memref<512x16xbf16, #tpu.memory_space<vmem>>) attributes {dimension_semantics = [#tpu.dimension_semantics<parallel>], iteration_bounds = array<i64: 1>, scalar_prefetch = 0 : i64, scratch_operands = 0 : i64, tpu.core_type = #tpu.core_type<tc>, window_params = [{transform_indices = @transform_0, window_bounds = array<i64: 512, 16>}, {pipeline_mode = #tpu.pipeline_mode<synchronous>, transform_indices = @transform_1, window_bounds = array<i64: 1, 8>}, {pipeline_mode = #tpu.pipeline_mode<synchronous>, transform_indices = @transform_2, window_bounds = array<i64: 1, 8>}, {transform_indices = @transform_3, window_bounds = array<i64: 512, 16>}]} {
    %c0 = arith.constant 0 : index
    %c0_0 = arith.constant 0 : index
    %0 = vector.load %arg1[%c0, %c0_0] : memref<512x16xbf16, #tpu.memory_space<vmem>>, vector<512x16xbf16>
    %1 = arith.extf %0 : vector<512x16xbf16> to vector<512x16xf32>
    %2 = vector.extract_strided_slice %1 {offsets = [0, 0], sizes = [512, 8], strides = [1, 1]} : vector<512x16xf32> to vector<512x8xf32>
    %3 = vector.extract_strided_slice %1 {offsets = [0, 8], sizes = [512, 8], strides = [1, 1]} : vector<512x16xf32> to vector<512x8xf32>
    %4 = arith.mulf %2, %2 : vector<512x8xf32>
    %5 = arith.mulf %3, %3 : vector<512x8xf32>
    %6 = arith.addf %4, %5 : vector<512x8xf32>
    %cst = arith.constant 1.000000e-30 : f32
    %7 = vector.broadcast %cst : f32 to vector<512x8xf32>
    %8 = arith.addf %6, %7 : vector<512x8xf32>
    %9 = math.rsqrt %8 : vector<512x8xf32>
    %10 = arith.mulf %6, %9 : vector<512x8xf32>
    %cst_1 = arith.constant 0.000000e+00 : f32
    %11 = vector.broadcast %cst_1 : f32 to vector<512x8xf32>
    %12 = arith.cmpf ole, %6, %11 : vector<512x8xf32>
    %13 = arith.mulf %2, %9 : vector<512x8xf32>
    %cst_2 = arith.constant 1.000000e+00 : f32
    %14 = vector.broadcast %cst_2 : f32 to vector<512x8xf32>
    %15 = arith.select %12, %14, %13 : vector<512x8xi1>, vector<512x8xf32>
    %16 = arith.mulf %3, %9 : vector<512x8xf32>
    %cst_3 = arith.constant 0.000000e+00 : f32
    %17 = vector.broadcast %cst_3 : f32 to vector<512x8xf32>
    %18 = arith.select %12, %17, %16 : vector<512x8xi1>, vector<512x8xf32>
    %c0_4 = arith.constant 0 : index
    %c0_5 = arith.constant 0 : index
    %19 = vector.load %arg2[%c0_4, %c0_5] : memref<1x8xf32, #tpu.memory_space<vmem>>, vector<1x8xf32>
    %20 = vector.broadcast %19 : vector<1x8xf32> to vector<512x8xf32>
    %21 = arith.mulf %10, %20 : vector<512x8xf32>
    %c0_6 = arith.constant 0 : index
    %c0_7 = arith.constant 0 : index
    %22 = vector.load %arg3[%c0_6, %c0_7] : memref<1x8xf32, #tpu.memory_space<vmem>>, vector<1x8xf32>
    %23 = vector.broadcast %22 : vector<1x8xf32> to vector<512x8xf32>
    %24 = arith.addf %21, %23 : vector<512x8xf32>
    %25 = arith.mulf %24, %15 : vector<512x8xf32>
    %26 = arith.mulf %24, %18 : vector<512x8xf32>
    %cst_8 = arith.constant 0.000000e+00 : f32
    %27 = vector.broadcast %cst_8 : f32 to vector<512x8xf32>
    %28 = arith.cmpf oge, %25, %27 : vector<512x8xf32>
    %cst_9 = arith.constant 1.000000e-01 : f32
    %29 = vector.broadcast %cst_9 : f32 to vector<512x8xf32>
    %30 = arith.mulf %29, %25 : vector<512x8xf32>
    %31 = arith.select %28, %25, %30 : vector<512x8xi1>, vector<512x8xf32>
    %cst_10 = arith.constant 0.000000e+00 : f32
    %32 = vector.broadcast %cst_10 : f32 to vector<512x8xf32>
    %33 = arith.cmpf oge, %26, %32 : vector<512x8xf32>
    %cst_11 = arith.constant 1.000000e-01 : f32
    %34 = vector.broadcast %cst_11 : f32 to vector<512x8xf32>
    %35 = arith.mulf %34, %26 : vector<512x8xf32>
    %36 = arith.select %33, %26, %35 : vector<512x8xi1>, vector<512x8xf32>
    %37 = tpu.concatenate %31, %36 in 1 : vector<512x8xf32>, vector<512x8xf32> -> vector<512x16xf32>
    %38 = arith.truncf %37 : vector<512x16xf32> to vector<512x16xbf16>
    %c0_12 = arith.constant 0 : index
    %c0_13 = arith.constant 0 : index
    %39 = vector.load %arg4[%c0_12, %c0_13] : memref<512x16xbf16, #tpu.memory_space<vmem>>, vector<512x16xbf16>
    tpu.vector_store %arg4[%c0_12, %c0_13], %38 {strides = array<i32>} : memref<512x16xbf16, #tpu.memory_space<vmem>>, vector<512x16xbf16>,
    return
  }
  func.func @transform_0(%arg0: i32) -> (i32, i32) {
    %c0_i32 = arith.constant 0 : i32
    %c0_i32_0 = arith.constant 0 : i32
    return %arg0, %c0_i32 : i32, i32
  }
  func.func @transform_1(%arg0: i32) -> (i32, i32) {
    %c0_i32 = arith.constant 0 : i32
    %c0_i32_0 = arith.constant 0 : i32
    %c0_i32_1 = arith.constant 0 : i32
    return %c0_i32, %c0_i32_0 : i32, i32
  }
  func.func @transform_2(%arg0: i32) -> (i32, i32) {
    %c0_i32 = arith.constant 0 : i32
    %c0_i32_0 = arith.constant 0 : i32
    %c0_i32_1 = arith.constant 0 : i32
    return %c0_i32, %c0_i32_0 : i32, i32
  }
  func.func @transform_3(%arg0: i32) -> (i32, i32) {
    %c0_i32 = arith.constant 0 : i32
    %c0_i32_0 = arith.constant 0 : i32
    return %arg0, %c0_i32 : i32, i32
  }
}

module attributes {stable_mosaic.version = 11 : i64} {
  func.func @kernel(%arg0: i32, %arg1: i32, %arg2: memref<1x1x10x10x16xbf16, #tpu.memory_space<vmem>>, %arg3: memref<1x1x10x10x16xbf16, #tpu.memory_space<vmem>>, %arg4: memref<1x1x10x10x16xbf16, #tpu.memory_space<vmem>>, %arg5: memref<432x16xbf16, #tpu.memory_space<vmem>>, %arg6: memref<1x16xf32, #tpu.memory_space<vmem>>, %arg7: memref<1x1x64x16xbf16, #tpu.memory_space<vmem>>, %arg8: memref<1x1x8x16xf32, #tpu.memory_space<vmem>>) attributes {dimension_semantics = [#tpu.dimension_semantics<parallel>, #tpu.dimension_semantics<parallel>], iteration_bounds = array<i64: 2, 4>, scalar_prefetch = 0 : i64, scratch_operands = 0 : i64, tpu.core_type = #tpu.core_type<tc>, window_params = [{transform_indices = @transform_0, window_bounds = array<i64: 1, 1, 10, 10, 16>}, {transform_indices = @transform_1, window_bounds = array<i64: 1, 1, 10, 10, 16>}, {transform_indices = @transform_2, window_bounds = array<i64: 1, 1, 10, 10, 16>}, {pipeline_mode = #tpu.pipeline_mode<synchronous>, transform_indices = @transform_3, window_bounds = array<i64: 432, 16>}, {pipeline_mode = #tpu.pipeline_mode<synchronous>, transform_indices = @transform_4, window_bounds = array<i64: 1, 16>}, {transform_indices = @transform_5, window_bounds = array<i64: 1, 1, 64, 16>}, {transform_indices = @transform_6, window_bounds = array<i64: 1, 1, 8, 16>}]} {
    %c0 = arith.constant 0 : index
    %c0_0 = arith.constant 0 : index
    %c0_1 = arith.constant 0 : index
    %c0_2 = arith.constant 0 : index
    %c0_3 = arith.constant 0 : index
    %0 = vector.load %arg2[%c0, %c0_0, %c0_1, %c0_2, %c0_3] : memref<1x1x10x10x16xbf16, #tpu.memory_space<vmem>>, vector<1x1x10x10x16xbf16>
    %1 = vector.shape_cast %0 : vector<1x1x10x10x16xbf16> to vector<10x10x16xbf16>
    %2 = vector.extract_strided_slice %1 {offsets = [0, 0, 0], sizes = [8, 8, 16], strides = [1, 1, 1]} : vector<10x10x16xbf16> to vector<8x8x16xbf16>
    %3 = vector.shape_cast %2 : vector<8x8x16xbf16> to vector<64x16xbf16>
    %4 = vector.extract_strided_slice %1 {offsets = [0, 1, 0], sizes = [8, 8, 16], strides = [1, 1, 1]} : vector<10x10x16xbf16> to vector<8x8x16xbf16>
    %5 = vector.shape_cast %4 : vector<8x8x16xbf16> to vector<64x16xbf16>
    %6 = vector.extract_strided_slice %1 {offsets = [0, 2, 0], sizes = [8, 8, 16], strides = [1, 1, 1]} : vector<10x10x16xbf16> to vector<8x8x16xbf16>
    %7 = vector.shape_cast %6 : vector<8x8x16xbf16> to vector<64x16xbf16>
    %8 = vector.extract_strided_slice %1 {offsets = [1, 0, 0], sizes = [8, 8, 16], strides = [1, 1, 1]} : vector<10x10x16xbf16> to vector<8x8x16xbf16>
    %9 = vector.shape_cast %8 : vector<8x8x16xbf16> to vector<64x16xbf16>
    %10 = vector.extract_strided_slice %1 {offsets = [1, 1, 0], sizes = [8, 8, 16], strides = [1, 1, 1]} : vector<10x10x16xbf16> to vector<8x8x16xbf16>
    %11 = vector.shape_cast %10 : vector<8x8x16xbf16> to vector<64x16xbf16>
    %12 = vector.extract_strided_slice %1 {offsets = [1, 2, 0], sizes = [8, 8, 16], strides = [1, 1, 1]} : vector<10x10x16xbf16> to vector<8x8x16xbf16>
    %13 = vector.shape_cast %12 : vector<8x8x16xbf16> to vector<64x16xbf16>
    %14 = vector.extract_strided_slice %1 {offsets = [2, 0, 0], sizes = [8, 8, 16], strides = [1, 1, 1]} : vector<10x10x16xbf16> to vector<8x8x16xbf16>
    %15 = vector.shape_cast %14 : vector<8x8x16xbf16> to vector<64x16xbf16>
    %16 = vector.extract_strided_slice %1 {offsets = [2, 1, 0], sizes = [8, 8, 16], strides = [1, 1, 1]} : vector<10x10x16xbf16> to vector<8x8x16xbf16>
    %17 = vector.shape_cast %16 : vector<8x8x16xbf16> to vector<64x16xbf16>
    %18 = vector.extract_strided_slice %1 {offsets = [2, 2, 0], sizes = [8, 8, 16], strides = [1, 1, 1]} : vector<10x10x16xbf16> to vector<8x8x16xbf16>
    %19 = vector.shape_cast %18 : vector<8x8x16xbf16> to vector<64x16xbf16>
    %c0_4 = arith.constant 0 : index
    %c0_5 = arith.constant 0 : index
    %c0_6 = arith.constant 0 : index
    %c0_7 = arith.constant 0 : index
    %c0_8 = arith.constant 0 : index
    %20 = vector.load %arg3[%c0_4, %c0_5, %c0_6, %c0_7, %c0_8] : memref<1x1x10x10x16xbf16, #tpu.memory_space<vmem>>, vector<1x1x10x10x16xbf16>
    %21 = vector.shape_cast %20 : vector<1x1x10x10x16xbf16> to vector<10x10x16xbf16>
    %22 = vector.extract_strided_slice %21 {offsets = [0, 0, 0], sizes = [8, 8, 16], strides = [1, 1, 1]} : vector<10x10x16xbf16> to vector<8x8x16xbf16>
    %23 = vector.shape_cast %22 : vector<8x8x16xbf16> to vector<64x16xbf16>
    %24 = vector.extract_strided_slice %21 {offsets = [0, 1, 0], sizes = [8, 8, 16], strides = [1, 1, 1]} : vector<10x10x16xbf16> to vector<8x8x16xbf16>
    %25 = vector.shape_cast %24 : vector<8x8x16xbf16> to vector<64x16xbf16>
    %26 = vector.extract_strided_slice %21 {offsets = [0, 2, 0], sizes = [8, 8, 16], strides = [1, 1, 1]} : vector<10x10x16xbf16> to vector<8x8x16xbf16>
    %27 = vector.shape_cast %26 : vector<8x8x16xbf16> to vector<64x16xbf16>
    %28 = vector.extract_strided_slice %21 {offsets = [1, 0, 0], sizes = [8, 8, 16], strides = [1, 1, 1]} : vector<10x10x16xbf16> to vector<8x8x16xbf16>
    %29 = vector.shape_cast %28 : vector<8x8x16xbf16> to vector<64x16xbf16>
    %30 = vector.extract_strided_slice %21 {offsets = [1, 1, 0], sizes = [8, 8, 16], strides = [1, 1, 1]} : vector<10x10x16xbf16> to vector<8x8x16xbf16>
    %31 = vector.shape_cast %30 : vector<8x8x16xbf16> to vector<64x16xbf16>
    %32 = vector.extract_strided_slice %21 {offsets = [1, 2, 0], sizes = [8, 8, 16], strides = [1, 1, 1]} : vector<10x10x16xbf16> to vector<8x8x16xbf16>
    %33 = vector.shape_cast %32 : vector<8x8x16xbf16> to vector<64x16xbf16>
    %34 = vector.extract_strided_slice %21 {offsets = [2, 0, 0], sizes = [8, 8, 16], strides = [1, 1, 1]} : vector<10x10x16xbf16> to vector<8x8x16xbf16>
    %35 = vector.shape_cast %34 : vector<8x8x16xbf16> to vector<64x16xbf16>
    %36 = vector.extract_strided_slice %21 {offsets = [2, 1, 0], sizes = [8, 8, 16], strides = [1, 1, 1]} : vector<10x10x16xbf16> to vector<8x8x16xbf16>
    %37 = vector.shape_cast %36 : vector<8x8x16xbf16> to vector<64x16xbf16>
    %38 = vector.extract_strided_slice %21 {offsets = [2, 2, 0], sizes = [8, 8, 16], strides = [1, 1, 1]} : vector<10x10x16xbf16> to vector<8x8x16xbf16>
    %39 = vector.shape_cast %38 : vector<8x8x16xbf16> to vector<64x16xbf16>
    %c0_9 = arith.constant 0 : index
    %c0_10 = arith.constant 0 : index
    %c0_11 = arith.constant 0 : index
    %c0_12 = arith.constant 0 : index
    %c0_13 = arith.constant 0 : index
    %40 = vector.load %arg4[%c0_9, %c0_10, %c0_11, %c0_12, %c0_13] : memref<1x1x10x10x16xbf16, #tpu.memory_space<vmem>>, vector<1x1x10x10x16xbf16>
    %41 = vector.shape_cast %40 : vector<1x1x10x10x16xbf16> to vector<10x10x16xbf16>
    %42 = vector.extract_strided_slice %41 {offsets = [0, 0, 0], sizes = [8, 8, 16], strides = [1, 1, 1]} : vector<10x10x16xbf16> to vector<8x8x16xbf16>
    %43 = vector.shape_cast %42 : vector<8x8x16xbf16> to vector<64x16xbf16>
    %44 = vector.extract_strided_slice %41 {offsets = [0, 1, 0], sizes = [8, 8, 16], strides = [1, 1, 1]} : vector<10x10x16xbf16> to vector<8x8x16xbf16>
    %45 = vector.shape_cast %44 : vector<8x8x16xbf16> to vector<64x16xbf16>
    %46 = vector.extract_strided_slice %41 {offsets = [0, 2, 0], sizes = [8, 8, 16], strides = [1, 1, 1]} : vector<10x10x16xbf16> to vector<8x8x16xbf16>
    %47 = vector.shape_cast %46 : vector<8x8x16xbf16> to vector<64x16xbf16>
    %48 = vector.extract_strided_slice %41 {offsets = [1, 0, 0], sizes = [8, 8, 16], strides = [1, 1, 1]} : vector<10x10x16xbf16> to vector<8x8x16xbf16>
    %49 = vector.shape_cast %48 : vector<8x8x16xbf16> to vector<64x16xbf16>
    %50 = vector.extract_strided_slice %41 {offsets = [1, 1, 0], sizes = [8, 8, 16], strides = [1, 1, 1]} : vector<10x10x16xbf16> to vector<8x8x16xbf16>
    %51 = vector.shape_cast %50 : vector<8x8x16xbf16> to vector<64x16xbf16>
    %52 = vector.extract_strided_slice %41 {offsets = [1, 2, 0], sizes = [8, 8, 16], strides = [1, 1, 1]} : vector<10x10x16xbf16> to vector<8x8x16xbf16>
    %53 = vector.shape_cast %52 : vector<8x8x16xbf16> to vector<64x16xbf16>
    %54 = vector.extract_strided_slice %41 {offsets = [2, 0, 0], sizes = [8, 8, 16], strides = [1, 1, 1]} : vector<10x10x16xbf16> to vector<8x8x16xbf16>
    %55 = vector.shape_cast %54 : vector<8x8x16xbf16> to vector<64x16xbf16>
    %56 = vector.extract_strided_slice %41 {offsets = [2, 1, 0], sizes = [8, 8, 16], strides = [1, 1, 1]} : vector<10x10x16xbf16> to vector<8x8x16xbf16>
    %57 = vector.shape_cast %56 : vector<8x8x16xbf16> to vector<64x16xbf16>
    %58 = vector.extract_strided_slice %41 {offsets = [2, 2, 0], sizes = [8, 8, 16], strides = [1, 1, 1]} : vector<10x10x16xbf16> to vector<8x8x16xbf16>
    %59 = vector.shape_cast %58 : vector<8x8x16xbf16> to vector<64x16xbf16>
    %60 = tpu.concatenate %3, %5, %7, %9, %11, %13, %15, %17, %19, %23, %25, %27, %29, %31, %33, %35 in 1 : vector<64x16xbf16>, vector<64x16xbf16>, vector<64x16xbf16>, vector<64x16xbf16>, vector<64x16xbf16>, vector<64x16xbf16>, vector<64x16xbf16>, vector<64x16xbf16>, vector<64x16xbf16>, vector<64x16xbf16>, vector<64x16xbf16>, vector<64x16xbf16>, vector<64x16xbf16>, vector<64x16xbf16>, vector<64x16xbf16>, vector<64x16xbf16> -> vector<64x256xbf16>
    %61 = tpu.concatenate %37, %39, %43, %45, %47, %49, %51, %53, %55, %57, %59 in 1 : vector<64x16xbf16>, vector<64x16xbf16>, vector<64x16xbf16>, vector<64x16xbf16>, vector<64x16xbf16>, vector<64x16xbf16>, vector<64x16xbf16>, vector<64x16xbf16>, vector<64x16xbf16>, vector<64x16xbf16>, vector<64x16xbf16> -> vector<64x176xbf16>
    %62 = tpu.concatenate %60, %61 in 1 : vector<64x256xbf16>, vector<64x176xbf16> -> vector<64x432xbf16>
    %c0_14 = arith.constant 0 : index
    %c0_15 = arith.constant 0 : index
    %63 = vector.load %arg5[%c0_14, %c0_15] : memref<432x16xbf16, #tpu.memory_space<vmem>>, vector<432x16xbf16>
    %cst = arith.constant dense<0.000000e+00> : vector<64x16xf32>
    %64 = tpu.matmul %62, %63, %cst {dimension_numbers = #tpu.dot_dimension_numbers<[1], [0], [0], [1], [0, 0, 1, 1], [], []>} : vector<64x432xbf16>, vector<432x16xbf16>, vector<64x16xf32> -> vector<64x16xf32>
    %c0_16 = arith.constant 0 : index
    %c0_17 = arith.constant 0 : index
    %65 = vector.load %arg6[%c0_16, %c0_17] : memref<1x16xf32, #tpu.memory_space<vmem>>, vector<1x16xf32>
    %66 = vector.broadcast %65 : vector<1x16xf32> to vector<64x16xf32>
    %67 = arith.addf %64, %66 : vector<64x16xf32>
    %68 = vector.extract_strided_slice %67 {offsets = [0, 0], sizes = [64, 8], strides = [1, 1]} : vector<64x16xf32> to vector<64x8xf32>
    %69 = vector.extract_strided_slice %67 {offsets = [0, 8], sizes = [64, 8], strides = [1, 1]} : vector<64x16xf32> to vector<64x8xf32>
    %70 = arith.mulf %68, %68 : vector<64x8xf32>
    %71 = arith.mulf %69, %69 : vector<64x8xf32>
    %72 = arith.addf %70, %71 : vector<64x8xf32>
    %73 = math.sqrt %72 : vector<64x8xf32>
    %cst_18 = arith.constant dense<0.000000e+00> : vector<8xf32>
    %74 = vector.multi_reduction <add>, %73, %cst_18 [0] : vector<64x8xf32> to vector<8xf32>
    %75 = vector.shape_cast %74 : vector<8xf32> to vector<1x8xf32>
    %cst_19 = arith.constant dense<0.000000e+00> : vector<8xf32>
    %76 = vector.multi_reduction <add>, %72, %cst_19 [0] : vector<64x8xf32> to vector<8xf32>
    %77 = vector.shape_cast %76 : vector<8xf32> to vector<1x8xf32>
    %78 = tpu.concatenate %75, %77 in 1 : vector<1x8xf32>, vector<1x8xf32> -> vector<1x16xf32>
    %79 = vector.shape_cast %78 : vector<1x16xf32> to vector<1x16xf32>
    %80 = vector.broadcast %79 : vector<1x16xf32> to vector<8x16xf32>
    %c0_20 = arith.constant 0 : index
    %c0_21 = arith.constant 0 : index
    %c0_22 = arith.constant 0 : index
    %c0_23 = arith.constant 0 : index
    %81 = vector.load %arg8[%c0_20, %c0_21, %c0_22, %c0_23] : memref<1x1x8x16xf32, #tpu.memory_space<vmem>>, vector<1x1x8x16xf32>
    %82 = vector.shape_cast %81 : vector<1x1x8x16xf32> to vector<8x16xf32>
    %83 = vector.shape_cast %80 : vector<8x16xf32> to vector<1x1x8x16xf32>
    tpu.vector_store %arg8[%c0_20, %c0_21, %c0_22, %c0_23], %83 {strides = array<i32>} : memref<1x1x8x16xf32, #tpu.memory_space<vmem>>, vector<1x1x8x16xf32>,
    %84 = arith.truncf %67 : vector<64x16xf32> to vector<64x16xbf16>
    %c0_24 = arith.constant 0 : index
    %c0_25 = arith.constant 0 : index
    %c0_26 = arith.constant 0 : index
    %c0_27 = arith.constant 0 : index
    %85 = vector.load %arg7[%c0_24, %c0_25, %c0_26, %c0_27] : memref<1x1x64x16xbf16, #tpu.memory_space<vmem>>, vector<1x1x64x16xbf16>
    %86 = vector.shape_cast %85 : vector<1x1x64x16xbf16> to vector<64x16xbf16>
    %87 = vector.shape_cast %84 : vector<64x16xbf16> to vector<1x1x64x16xbf16>
    tpu.vector_store %arg7[%c0_24, %c0_25, %c0_26, %c0_27], %87 {strides = array<i32>} : memref<1x1x64x16xbf16, #tpu.memory_space<vmem>>, vector<1x1x64x16xbf16>,
    return
  }
  func.func @transform_0(%arg0: i32, %arg1: i32) -> (i32, i32, i32, i32, i32) {
    %c0_i32 = arith.constant 0 : i32
    %0 = arith.addi %arg1, %c0_i32 : i32
    %c0_i32_0 = arith.constant 0 : i32
    %c0_i32_1 = arith.constant 0 : i32
    %c0_i32_2 = arith.constant 0 : i32
    %c0_i32_3 = arith.constant 0 : i32
    return %arg0, %0, %c0_i32_0, %c0_i32_1, %c0_i32_2 : i32, i32, i32, i32, i32
  }
  func.func @transform_1(%arg0: i32, %arg1: i32) -> (i32, i32, i32, i32, i32) {
    %c1_i32 = arith.constant 1 : i32
    %0 = arith.addi %arg1, %c1_i32 : i32
    %c0_i32 = arith.constant 0 : i32
    %c0_i32_0 = arith.constant 0 : i32
    %c0_i32_1 = arith.constant 0 : i32
    %c0_i32_2 = arith.constant 0 : i32
    return %arg0, %0, %c0_i32, %c0_i32_0, %c0_i32_1 : i32, i32, i32, i32, i32
  }
  func.func @transform_2(%arg0: i32, %arg1: i32) -> (i32, i32, i32, i32, i32) {
    %c2_i32 = arith.constant 2 : i32
    %0 = arith.addi %arg1, %c2_i32 : i32
    %c0_i32 = arith.constant 0 : i32
    %c0_i32_0 = arith.constant 0 : i32
    %c0_i32_1 = arith.constant 0 : i32
    %c0_i32_2 = arith.constant 0 : i32
    return %arg0, %0, %c0_i32, %c0_i32_0, %c0_i32_1 : i32, i32, i32, i32, i32
  }
  func.func @transform_3(%arg0: i32, %arg1: i32) -> (i32, i32) {
    %c0_i32 = arith.constant 0 : i32
    %c0_i32_0 = arith.constant 0 : i32
    %c0_i32_1 = arith.constant 0 : i32
    return %c0_i32, %c0_i32_0 : i32, i32
  }
  func.func @transform_4(%arg0: i32, %arg1: i32) -> (i32, i32) {
    %c0_i32 = arith.constant 0 : i32
    %c0_i32_0 = arith.constant 0 : i32
    %c0_i32_1 = arith.constant 0 : i32
    return %c0_i32, %c0_i32_0 : i32, i32
  }
  func.func @transform_5(%arg0: i32, %arg1: i32) -> (i32, i32, i32, i32) {
    %c0_i32 = arith.constant 0 : i32
    %c0_i32_0 = arith.constant 0 : i32
    %c0_i32_1 = arith.constant 0 : i32
    return %arg0, %arg1, %c0_i32, %c0_i32_0 : i32, i32, i32, i32
  }
  func.func @transform_6(%arg0: i32, %arg1: i32) -> (i32, i32, i32, i32) {
    %c0_i32 = arith.constant 0 : i32
    %c0_i32_0 = arith.constant 0 : i32
    %c0_i32_1 = arith.constant 0 : i32
    return %arg0, %arg1, %c0_i32, %c0_i32_0 : i32, i32, i32, i32
  }
}

module attributes {stable_mosaic.version = 11 : i64} {
  func.func @kernel(%arg0: i32, %arg1: i32, %arg2: memref<1x1x10x10x16xbf16, #tpu.memory_space<vmem>>, %arg3: memref<1x1x10x10x16xbf16, #tpu.memory_space<vmem>>, %arg4: memref<1x1x10x10x16xbf16, #tpu.memory_space<vmem>>, %arg5: memref<432x16xbf16, #tpu.memory_space<vmem>>, %arg6: memref<1x16xf32, #tpu.memory_space<vmem>>, %arg7: memref<1x1x64x16xbf16, #tpu.memory_space<vmem>>) attributes {dimension_semantics = [#tpu.dimension_semantics<parallel>, #tpu.dimension_semantics<parallel>], iteration_bounds = array<i64: 2, 4>, scalar_prefetch = 0 : i64, scratch_operands = 0 : i64, tpu.core_type = #tpu.core_type<tc>, window_params = [{transform_indices = @transform_0, window_bounds = array<i64: 1, 1, 10, 10, 16>}, {transform_indices = @transform_1, window_bounds = array<i64: 1, 1, 10, 10, 16>}, {transform_indices = @transform_2, window_bounds = array<i64: 1, 1, 10, 10, 16>}, {pipeline_mode = #tpu.pipeline_mode<synchronous>, transform_indices = @transform_3, window_bounds = array<i64: 432, 16>}, {pipeline_mode = #tpu.pipeline_mode<synchronous>, transform_indices = @transform_4, window_bounds = array<i64: 1, 16>}, {transform_indices = @transform_5, window_bounds = array<i64: 1, 1, 64, 16>}]} {
    %c0 = arith.constant 0 : index
    %c0_0 = arith.constant 0 : index
    %c0_1 = arith.constant 0 : index
    %c0_2 = arith.constant 0 : index
    %c0_3 = arith.constant 0 : index
    %0 = vector.load %arg2[%c0, %c0_0, %c0_1, %c0_2, %c0_3] : memref<1x1x10x10x16xbf16, #tpu.memory_space<vmem>>, vector<1x1x10x10x16xbf16>
    %1 = vector.shape_cast %0 : vector<1x1x10x10x16xbf16> to vector<10x10x16xbf16>
    %2 = vector.extract_strided_slice %1 {offsets = [0, 0, 0], sizes = [8, 8, 16], strides = [1, 1, 1]} : vector<10x10x16xbf16> to vector<8x8x16xbf16>
    %3 = vector.shape_cast %2 : vector<8x8x16xbf16> to vector<64x16xbf16>
    %4 = vector.extract_strided_slice %1 {offsets = [0, 1, 0], sizes = [8, 8, 16], strides = [1, 1, 1]} : vector<10x10x16xbf16> to vector<8x8x16xbf16>
    %5 = vector.shape_cast %4 : vector<8x8x16xbf16> to vector<64x16xbf16>
    %6 = vector.extract_strided_slice %1 {offsets = [0, 2, 0], sizes = [8, 8, 16], strides = [1, 1, 1]} : vector<10x10x16xbf16> to vector<8x8x16xbf16>
    %7 = vector.shape_cast %6 : vector<8x8x16xbf16> to vector<64x16xbf16>
    %8 = vector.extract_strided_slice %1 {offsets = [1, 0, 0], sizes = [8, 8, 16], strides = [1, 1, 1]} : vector<10x10x16xbf16> to vector<8x8x16xbf16>
    %9 = vector.shape_cast %8 : vector<8x8x16xbf16> to vector<64x16xbf16>
    %10 = vector.extract_strided_slice %1 {offsets = [1, 1, 0], sizes = [8, 8, 16], strides = [1, 1, 1]} : vector<10x10x16xbf16> to vector<8x8x16xbf16>
    %11 = vector.shape_cast %10 : vector<8x8x16xbf16> to vector<64x16xbf16>
    %12 = vector.extract_strided_slice %1 {offsets = [1, 2, 0], sizes = [8, 8, 16], strides = [1, 1, 1]} : vector<10x10x16xbf16> to vector<8x8x16xbf16>
    %13 = vector.shape_cast %12 : vector<8x8x16xbf16> to vector<64x16xbf16>
    %14 = vector.extract_strided_slice %1 {offsets = [2, 0, 0], sizes = [8, 8, 16], strides = [1, 1, 1]} : vector<10x10x16xbf16> to vector<8x8x16xbf16>
    %15 = vector.shape_cast %14 : vector<8x8x16xbf16> to vector<64x16xbf16>
    %16 = vector.extract_strided_slice %1 {offsets = [2, 1, 0], sizes = [8, 8, 16], strides = [1, 1, 1]} : vector<10x10x16xbf16> to vector<8x8x16xbf16>
    %17 = vector.shape_cast %16 : vector<8x8x16xbf16> to vector<64x16xbf16>
    %18 = vector.extract_strided_slice %1 {offsets = [2, 2, 0], sizes = [8, 8, 16], strides = [1, 1, 1]} : vector<10x10x16xbf16> to vector<8x8x16xbf16>
    %19 = vector.shape_cast %18 : vector<8x8x16xbf16> to vector<64x16xbf16>
    %c0_4 = arith.constant 0 : index
    %c0_5 = arith.constant 0 : index
    %c0_6 = arith.constant 0 : index
    %c0_7 = arith.constant 0 : index
    %c0_8 = arith.constant 0 : index
    %20 = vector.load %arg3[%c0_4, %c0_5, %c0_6, %c0_7, %c0_8] : memref<1x1x10x10x16xbf16, #tpu.memory_space<vmem>>, vector<1x1x10x10x16xbf16>
    %21 = vector.shape_cast %20 : vector<1x1x10x10x16xbf16> to vector<10x10x16xbf16>
    %22 = vector.extract_strided_slice %21 {offsets = [0, 0, 0], sizes = [8, 8, 16], strides = [1, 1, 1]} : vector<10x10x16xbf16> to vector<8x8x16xbf16>
    %23 = vector.shape_cast %22 : vector<8x8x16xbf16> to vector<64x16xbf16>
    %24 = vector.extract_strided_slice %21 {offsets = [0, 1, 0], sizes = [8, 8, 16], strides = [1, 1, 1]} : vector<10x10x16xbf16> to vector<8x8x16xbf16>
    %25 = vector.shape_cast %24 : vector<8x8x16xbf16> to vector<64x16xbf16>
    %26 = vector.extract_strided_slice %21 {offsets = [0, 2, 0], sizes = [8, 8, 16], strides = [1, 1, 1]} : vector<10x10x16xbf16> to vector<8x8x16xbf16>
    %27 = vector.shape_cast %26 : vector<8x8x16xbf16> to vector<64x16xbf16>
    %28 = vector.extract_strided_slice %21 {offsets = [1, 0, 0], sizes = [8, 8, 16], strides = [1, 1, 1]} : vector<10x10x16xbf16> to vector<8x8x16xbf16>
    %29 = vector.shape_cast %28 : vector<8x8x16xbf16> to vector<64x16xbf16>
    %30 = vector.extract_strided_slice %21 {offsets = [1, 1, 0], sizes = [8, 8, 16], strides = [1, 1, 1]} : vector<10x10x16xbf16> to vector<8x8x16xbf16>
    %31 = vector.shape_cast %30 : vector<8x8x16xbf16> to vector<64x16xbf16>
    %32 = vector.extract_strided_slice %21 {offsets = [1, 2, 0], sizes = [8, 8, 16], strides = [1, 1, 1]} : vector<10x10x16xbf16> to vector<8x8x16xbf16>
    %33 = vector.shape_cast %32 : vector<8x8x16xbf16> to vector<64x16xbf16>
    %34 = vector.extract_strided_slice %21 {offsets = [2, 0, 0], sizes = [8, 8, 16], strides = [1, 1, 1]} : vector<10x10x16xbf16> to vector<8x8x16xbf16>
    %35 = vector.shape_cast %34 : vector<8x8x16xbf16> to vector<64x16xbf16>
    %36 = vector.extract_strided_slice %21 {offsets = [2, 1, 0], sizes = [8, 8, 16], strides = [1, 1, 1]} : vector<10x10x16xbf16> to vector<8x8x16xbf16>
    %37 = vector.shape_cast %36 : vector<8x8x16xbf16> to vector<64x16xbf16>
    %38 = vector.extract_strided_slice %21 {offsets = [2, 2, 0], sizes = [8, 8, 16], strides = [1, 1, 1]} : vector<10x10x16xbf16> to vector<8x8x16xbf16>
    %39 = vector.shape_cast %38 : vector<8x8x16xbf16> to vector<64x16xbf16>
    %c0_9 = arith.constant 0 : index
    %c0_10 = arith.constant 0 : index
    %c0_11 = arith.constant 0 : index
    %c0_12 = arith.constant 0 : index
    %c0_13 = arith.constant 0 : index
    %40 = vector.load %arg4[%c0_9, %c0_10, %c0_11, %c0_12, %c0_13] : memref<1x1x10x10x16xbf16, #tpu.memory_space<vmem>>, vector<1x1x10x10x16xbf16>
    %41 = vector.shape_cast %40 : vector<1x1x10x10x16xbf16> to vector<10x10x16xbf16>
    %42 = vector.extract_strided_slice %41 {offsets = [0, 0, 0], sizes = [8, 8, 16], strides = [1, 1, 1]} : vector<10x10x16xbf16> to vector<8x8x16xbf16>
    %43 = vector.shape_cast %42 : vector<8x8x16xbf16> to vector<64x16xbf16>
    %44 = vector.extract_strided_slice %41 {offsets = [0, 1, 0], sizes = [8, 8, 16], strides = [1, 1, 1]} : vector<10x10x16xbf16> to vector<8x8x16xbf16>
    %45 = vector.shape_cast %44 : vector<8x8x16xbf16> to vector<64x16xbf16>
    %46 = vector.extract_strided_slice %41 {offsets = [0, 2, 0], sizes = [8, 8, 16], strides = [1, 1, 1]} : vector<10x10x16xbf16> to vector<8x8x16xbf16>
    %47 = vector.shape_cast %46 : vector<8x8x16xbf16> to vector<64x16xbf16>
    %48 = vector.extract_strided_slice %41 {offsets = [1, 0, 0], sizes = [8, 8, 16], strides = [1, 1, 1]} : vector<10x10x16xbf16> to vector<8x8x16xbf16>
    %49 = vector.shape_cast %48 : vector<8x8x16xbf16> to vector<64x16xbf16>
    %50 = vector.extract_strided_slice %41 {offsets = [1, 1, 0], sizes = [8, 8, 16], strides = [1, 1, 1]} : vector<10x10x16xbf16> to vector<8x8x16xbf16>
    %51 = vector.shape_cast %50 : vector<8x8x16xbf16> to vector<64x16xbf16>
    %52 = vector.extract_strided_slice %41 {offsets = [1, 2, 0], sizes = [8, 8, 16], strides = [1, 1, 1]} : vector<10x10x16xbf16> to vector<8x8x16xbf16>
    %53 = vector.shape_cast %52 : vector<8x8x16xbf16> to vector<64x16xbf16>
    %54 = vector.extract_strided_slice %41 {offsets = [2, 0, 0], sizes = [8, 8, 16], strides = [1, 1, 1]} : vector<10x10x16xbf16> to vector<8x8x16xbf16>
    %55 = vector.shape_cast %54 : vector<8x8x16xbf16> to vector<64x16xbf16>
    %56 = vector.extract_strided_slice %41 {offsets = [2, 1, 0], sizes = [8, 8, 16], strides = [1, 1, 1]} : vector<10x10x16xbf16> to vector<8x8x16xbf16>
    %57 = vector.shape_cast %56 : vector<8x8x16xbf16> to vector<64x16xbf16>
    %58 = vector.extract_strided_slice %41 {offsets = [2, 2, 0], sizes = [8, 8, 16], strides = [1, 1, 1]} : vector<10x10x16xbf16> to vector<8x8x16xbf16>
    %59 = vector.shape_cast %58 : vector<8x8x16xbf16> to vector<64x16xbf16>
    %60 = tpu.concatenate %3, %5, %7, %9, %11, %13, %15, %17, %19, %23, %25, %27, %29, %31, %33, %35 in 1 : vector<64x16xbf16>, vector<64x16xbf16>, vector<64x16xbf16>, vector<64x16xbf16>, vector<64x16xbf16>, vector<64x16xbf16>, vector<64x16xbf16>, vector<64x16xbf16>, vector<64x16xbf16>, vector<64x16xbf16>, vector<64x16xbf16>, vector<64x16xbf16>, vector<64x16xbf16>, vector<64x16xbf16>, vector<64x16xbf16>, vector<64x16xbf16> -> vector<64x256xbf16>
    %61 = tpu.concatenate %37, %39, %43, %45, %47, %49, %51, %53, %55, %57, %59 in 1 : vector<64x16xbf16>, vector<64x16xbf16>, vector<64x16xbf16>, vector<64x16xbf16>, vector<64x16xbf16>, vector<64x16xbf16>, vector<64x16xbf16>, vector<64x16xbf16>, vector<64x16xbf16>, vector<64x16xbf16>, vector<64x16xbf16> -> vector<64x176xbf16>
    %62 = tpu.concatenate %60, %61 in 1 : vector<64x256xbf16>, vector<64x176xbf16> -> vector<64x432xbf16>
    %c0_14 = arith.constant 0 : index
    %c0_15 = arith.constant 0 : index
    %63 = vector.load %arg5[%c0_14, %c0_15] : memref<432x16xbf16, #tpu.memory_space<vmem>>, vector<432x16xbf16>
    %cst = arith.constant dense<0.000000e+00> : vector<64x16xf32>
    %64 = tpu.matmul %62, %63, %cst {dimension_numbers = #tpu.dot_dimension_numbers<[1], [0], [0], [1], [0, 0, 1, 1], [], []>} : vector<64x432xbf16>, vector<432x16xbf16>, vector<64x16xf32> -> vector<64x16xf32>
    %c0_16 = arith.constant 0 : index
    %c0_17 = arith.constant 0 : index
    %65 = vector.load %arg6[%c0_16, %c0_17] : memref<1x16xf32, #tpu.memory_space<vmem>>, vector<1x16xf32>
    %66 = vector.broadcast %65 : vector<1x16xf32> to vector<64x16xf32>
    %67 = arith.addf %64, %66 : vector<64x16xf32>
    %68 = arith.truncf %67 : vector<64x16xf32> to vector<64x16xbf16>
    %c0_18 = arith.constant 0 : index
    %c0_19 = arith.constant 0 : index
    %c0_20 = arith.constant 0 : index
    %c0_21 = arith.constant 0 : index
    %69 = vector.load %arg7[%c0_18, %c0_19, %c0_20, %c0_21] : memref<1x1x64x16xbf16, #tpu.memory_space<vmem>>, vector<1x1x64x16xbf16>
    %70 = vector.shape_cast %69 : vector<1x1x64x16xbf16> to vector<64x16xbf16>
    %71 = vector.shape_cast %68 : vector<64x16xbf16> to vector<1x1x64x16xbf16>
    tpu.vector_store %arg7[%c0_18, %c0_19, %c0_20, %c0_21], %71 {strides = array<i32>} : memref<1x1x64x16xbf16, #tpu.memory_space<vmem>>, vector<1x1x64x16xbf16>,
    return
  }
  func.func @transform_0(%arg0: i32, %arg1: i32) -> (i32, i32, i32, i32, i32) {
    %c0_i32 = arith.constant 0 : i32
    %0 = arith.addi %arg1, %c0_i32 : i32
    %c0_i32_0 = arith.constant 0 : i32
    %c0_i32_1 = arith.constant 0 : i32
    %c0_i32_2 = arith.constant 0 : i32
    %c0_i32_3 = arith.constant 0 : i32
    return %arg0, %0, %c0_i32_0, %c0_i32_1, %c0_i32_2 : i32, i32, i32, i32, i32
  }
  func.func @transform_1(%arg0: i32, %arg1: i32) -> (i32, i32, i32, i32, i32) {
    %c1_i32 = arith.constant 1 : i32
    %0 = arith.addi %arg1, %c1_i32 : i32
    %c0_i32 = arith.constant 0 : i32
    %c0_i32_0 = arith.constant 0 : i32
    %c0_i32_1 = arith.constant 0 : i32
    %c0_i32_2 = arith.constant 0 : i32
    return %arg0, %0, %c0_i32, %c0_i32_0, %c0_i32_1 : i32, i32, i32, i32, i32
  }
  func.func @transform_2(%arg0: i32, %arg1: i32) -> (i32, i32, i32, i32, i32) {
    %c2_i32 = arith.constant 2 : i32
    %0 = arith.addi %arg1, %c2_i32 : i32
    %c0_i32 = arith.constant 0 : i32
    %c0_i32_0 = arith.constant 0 : i32
    %c0_i32_1 = arith.constant 0 : i32
    %c0_i32_2 = arith.constant 0 : i32
    return %arg0, %0, %c0_i32, %c0_i32_0, %c0_i32_1 : i32, i32, i32, i32, i32
  }
  func.func @transform_3(%arg0: i32, %arg1: i32) -> (i32, i32) {
    %c0_i32 = arith.constant 0 : i32
    %c0_i32_0 = arith.constant 0 : i32
    %c0_i32_1 = arith.constant 0 : i32
    return %c0_i32, %c0_i32_0 : i32, i32
  }
  func.func @transform_4(%arg0: i32, %arg1: i32) -> (i32, i32) {
    %c0_i32 = arith.constant 0 : i32
    %c0_i32_0 = arith.constant 0 : i32
    %c0_i32_1 = arith.constant 0 : i32
    return %c0_i32, %c0_i32_0 : i32, i32
  }
  func.func @transform_5(%arg0: i32, %arg1: i32) -> (i32, i32, i32, i32) {
    %c0_i32 = arith.constant 0 : i32
    %c0_i32_0 = arith.constant 0 : i32
    %c0_i32_1 = arith.constant 0 : i32
    return %arg0, %arg1, %c0_i32, %c0_i32_0 : i32, i32, i32, i32
  }
}

</mosaic_0001>

<llo_original>
// kernel: _lambda_.6
$region0: #{_lambda_.6}
  #allocation0 [shape = 'u32[]', space=smem, size = 0x4, offset = 0x4, fixed_abs, tag = 'smem constant byte address 0x4 - core index']
  #allocation1 [shape = 'u32[144,128]{1,0:T(1,128)}', space=vmem, size = 0x12000, scoped, tag = 'internal scratch']
  %s0 = inlined_call_operand.vmem [shape: bf16[512,16], index: 0, kind: input, shape index: {}, may-alias: {0,3}]
  %s1 = inlined_call_operand.vmem [shape: f32[1,8], index: 1, kind: input, shape index: {}]
  %s2 = inlined_call_operand.vmem [shape: f32[1,8], index: 2, kind: input, shape index: {}]
  %s3 = inlined_call_operand.vmem [shape: bf16[512,16], index: 3, kind: output, shape index: {}, may-alias: {0,3}]
  %s4 = sld [smem:[#allocation0]]
  $region22: #{_lambda_.6} parent=0
    _
  %s6 = ssub.s32 1, %s4
  %s7 = scalar_select 0, %s6, %s4
  // Predicated region
  $region2: #{_lambda_.6} parent=0 // pred_check
    _
  $region3: #{_lambda_.6} parent=0 // pred_check_branch
    %9 = sbr.rel (0) target = $region5
  $region4: #{_lambda_.6} parent=0 // pred_region
    _
  $region5: #{_lambda_.6} parent=0 // pred_fallthru
    _
  // Predicated region
  $region6: #{_lambda_.6} parent=0 // pred_check
    _
  $region7: #{_lambda_.6} parent=0 // pred_check_branch
    %11 = sbr.rel (0) target = $region9
  $region8: #{_lambda_.6} parent=0 // pred_region
    _
  $region9: #{_lambda_.6} parent=0 // pred_fallthru
    _
  // Predicated region
  $region10: #{_lambda_.6} parent=0 // pred_check
    _
  $region11: #{_lambda_.6} parent=0 // pred_check_branch
    %13 = sbr.rel (0) target = $region13
  $region12: #{_lambda_.6} parent=0 // pred_region
    _
  $region13: #{_lambda_.6} parent=0 // pred_fallthru
    _
  %v14 = vld [vmem:[%s0] sm:$0xf]
  %v15 = vld [vmem:[%s0 + $0x4] sm:$0xf]
  %v16 = vld [vmem:[%s0 + $0x8] sm:$0xf]
  %v17 = vld [vmem:[%s0 + $0xc] sm:$0xf]
  %v18 = vld [vmem:[%s0 + $0x10] sm:$0xf]
  %v19 = vld [vmem:[%s0 + $0x14] sm:$0xf]
  %v20 = vld [vmem:[%s0 + $0x18] sm:$0xf]
  %v21 = vld [vmem:[%s0 + $0x1c] sm:$0xf]
  %v22 = vld [vmem:[%s0 + $0x20] sm:$0xf]
  %v23 = vld [vmem:[%s0 + $0x24] sm:$0xf]
  %v24 = vld [vmem:[%s0 + $0x28] sm:$0xf]
  %v25 = vld [vmem:[%s0 + $0x2c] sm:$0xf]
  %v26 = vld [vmem:[%s0 + $0x30] sm:$0xf]
  %v27 = vld [vmem:[%s0 + $0x34] sm:$0xf]
  %v28 = vld [vmem:[%s0 + $0x38] sm:$0xf]
  %v29 = vld [vmem:[%s0 + $0x3c] sm:$0xf]
  %v30 = vld [vmem:[%s0 + $0x40] sm:$0xf]
  %v31 = vld [vmem:[%s0 + $0x44] sm:$0xf]
  %v32 = vld [vmem:[%s0 + $0x48] sm:$0xf]
  %v33 = vld [vmem:[%s0 + $0x4c] sm:$0xf]
  %v34 = vld [vmem:[%s0 + $0x50] sm:$0xf]
  %v35 = vld [vmem:[%s0 + $0x54] sm:$0xf]
  %v36 = vld [vmem:[%s0 + $0x58] sm:$0xf]
  %v37 = vld [vmem:[%s0 + $0x5c] sm:$0xf]
  %v38 = vld [vmem:[%s0 + $0x60] sm:$0xf]
  %v39 = vld [vmem:[%s0 + $0x64] sm:$0xf]
  %v40 = vld [vmem:[%s0 + $0x68] sm:$0xf]
  %v41 = vld [vmem:[%s0 + $0x6c] sm:$0xf]
  %v42 = vld [vmem:[%s0 + $0x70] sm:$0xf]
  %v43 = vld [vmem:[%s0 + $0x74] sm:$0xf]
  %v44 = vld [vmem:[%s0 + $0x78] sm:$0xf]
  %v45 = vld [vmem:[%s0 + $0x7c] sm:$0xf]
  %v46 = vld [vmem:[%s0 + $0x80] sm:$0xf]
  %v47 = vld [vmem:[%s0 + $0x84] sm:$0xf]
  %v48 = vld [vmem:[%s0 + $0x88] sm:$0xf]
  %v49 = vld [vmem:[%s0 + $0x8c] sm:$0xf]
  %v50 = vld [vmem:[%s0 + $0x90] sm:$0xf]
  %v51 = vld [vmem:[%s0 + $0x94] sm:$0xf]
  %v52 = vld [vmem:[%s0 + $0x98] sm:$0xf]
  %v53 = vld [vmem:[%s0 + $0x9c] sm:$0xf]
  %v54 = vld [vmem:[%s0 + $0xa0] sm:$0xf]
  %v55 = vld [vmem:[%s0 + $0xa4] sm:$0xf]
  %v56 = vld [vmem:[%s0 + $0xa8] sm:$0xf]
  %v57 = vld [vmem:[%s0 + $0xac] sm:$0xf]
  %v58 = vld [vmem:[%s0 + $0xb0] sm:$0xf]
  %v59 = vld [vmem:[%s0 + $0xb4] sm:$0xf]
  %v60 = vld [vmem:[%s0 + $0xb8] sm:$0xf]
  %v61 = vld [vmem:[%s0 + $0xbc] sm:$0xf]
  %v62 = vld [vmem:[%s0 + $0xc0] sm:$0xf]
  %v63 = vld [vmem:[%s0 + $0xc4] sm:$0xf]
  %v64 = vld [vmem:[%s0 + $0xc8] sm:$0xf]
  %v65 = vld [vmem:[%s0 + $0xcc] sm:$0xf]
  %v66 = vld [vmem:[%s0 + $0xd0] sm:$0xf]
  %v67 = vld [vmem:[%s0 + $0xd4] sm:$0xf]
  %v68 = vld [vmem:[%s0 + $0xd8] sm:$0xf]
  %v69 = vld [vmem:[%s0 + $0xdc] sm:$0xf]
  %v70 = vld [vmem:[%s0 + $0xe0] sm:$0xf]
  %v71 = vld [vmem:[%s0 + $0xe4] sm:$0xf]
  %v72 = vld [vmem:[%s0 + $0xe8] sm:$0xf]
  %v73 = vld [vmem:[%s0 + $0xec] sm:$0xf]
  %v74 = vld [vmem:[%s0 + $0xf0] sm:$0xf]
  %v75 = vld [vmem:[%s0 + $0xf4] sm:$0xf]
  %v76 = vld [vmem:[%s0 + $0xf8] sm:$0xf]
  %v77 = vld [vmem:[%s0 + $0xfc] sm:$0xf]
  %v78 = vunpack.c.l.bf16 %v14
  %v79 = vunpack.c.l.bf16 %v15
  %v80 = vunpack.c.l.bf16 %v16
  %v81 = vunpack.c.l.bf16 %v17
  %v82 = vunpack.c.l.bf16 %v18
  %v83 = vunpack.c.l.bf16 %v19
  %v84 = vunpack.c.l.bf16 %v20
  %v85 = vunpack.c.l.bf16 %v21
  %v86 = vunpack.c.l.bf16 %v22
  %v87 = vunpack.c.l.bf16 %v23
  %v88 = vunpack.c.l.bf16 %v24
  %v89 = vunpack.c.l.bf16 %v25
  %v90 = vunpack.c.l.bf16 %v26
  %v91 = vunpack.c.l.bf16 %v27
  %v92 = vunpack.c.l.bf16 %v28
  %v93 = vunpack.c.l.bf16 %v29
  %v94 = vunpack.c.l.bf16 %v30
  %v95 = vunpack.c.l.bf16 %v31
  %v96 = vunpack.c.l.bf16 %v32
  %v97 = vunpack.c.l.bf16 %v33
  %v98 = vunpack.c.l.bf16 %v34
  %v99 = vunpack.c.l.bf16 %v35
  %v100 = vunpack.c.l.bf16 %v36
  %v101 = vunpack.c.l.bf16 %v37
  %v102 = vunpack.c.l.bf16 %v38
  %v103 = vunpack.c.l.bf16 %v39
  %v104 = vunpack.c.l.bf16 %v40
  %v105 = vunpack.c.l.bf16 %v41
  %v106 = vunpack.c.l.bf16 %v42
  %v107 = vunpack.c.l.bf16 %v43
  %v108 = vunpack.c.l.bf16 %v44
  %v109 = vunpack.c.l.bf16 %v45
  %v110 = vunpack.c.l.bf16 %v46
  %v111 = vunpack.c.l.bf16 %v47
  %v112 = vunpack.c.l.bf16 %v48
  %v113 = vunpack.c.l.bf16 %v49
  %v114 = vunpack.c.l.bf16 %v50
  %v115 = vunpack.c.l.bf16 %v51
  %v116 = vunpack.c.l.bf16 %v52
  %v117 = vunpack.c.l.bf16 %v53
  %v118 = vunpack.c.l.bf16 %v54
  %v119 = vunpack.c.l.bf16 %v55
  %v120 = vunpack.c.l.bf16 %v56
  %v121 = vunpack.c.l.bf16 %v57
  %v122 = vunpack.c.l.bf16 %v58
  %v123 = vunpack.c.l.bf16 %v59
  %v124 = vunpack.c.l.bf16 %v60
  %v125 = vunpack.c.l.bf16 %v61
  %v126 = vunpack.c.l.bf16 %v62
  %v127 = vunpack.c.l.bf16 %v63
  %v128 = vunpack.c.l.bf16 %v64
  %v129 = vunpack.c.l.bf16 %v65
  %v130 = vunpack.c.l.bf16 %v66
  %v131 = vunpack.c.l.bf16 %v67
  %v132 = vunpack.c.l.bf16 %v68
  %v133 = vunpack.c.l.bf16 %v69
  %v134 = vunpack.c.l.bf16 %v70
  %v135 = vunpack.c.l.bf16 %v71
  %v136 = vunpack.c.l.bf16 %v72
  %v137 = vunpack.c.l.bf16 %v73
  %v138 = vunpack.c.l.bf16 %v74
  %v139 = vunpack.c.l.bf16 %v75
  %v140 = vunpack.c.l.bf16 %v76
  %v141 = vunpack.c.l.bf16 %v77
  %v142 = vmul.f32 %v78, %v78
  %v143 = vmul.f32 %v79, %v79
  %v144 = vmul.f32 %v80, %v80
  %v145 = vmul.f32 %v81, %v81
  %v146 = vmul.f32 %v82, %v82
  %v147 = vmul.f32 %v83, %v83
  %v148 = vmul.f32 %v84, %v84
  %v149 = vmul.f32 %v85, %v85
  %v150 = vmul.f32 %v86, %v86
  %v151 = vmul.f32 %v87, %v87
  %v152 = vmul.f32 %v88, %v88
  %v153 = vmul.f32 %v89, %v89
  %v154 = vmul.f32 %v90, %v90
  %v155 = vmul.f32 %v91, %v91
  %v156 = vmul.f32 %v92, %v92
  %v157 = vmul.f32 %v93, %v93
  %v158 = vmul.f32 %v94, %v94
  %v159 = vmul.f32 %v95, %v95
  %v160 = vmul.f32 %v96, %v96
  %v161 = vmul.f32 %v97, %v97
  %v162 = vmul.f32 %v98, %v98
  %v163 = vmul.f32 %v99, %v99
  %v164 = vmul.f32 %v100, %v100
  %v165 = vmul.f32 %v101, %v101
  %v166 = vmul.f32 %v102, %v102
  %v167 = vmul.f32 %v103, %v103
  %v168 = vmul.f32 %v104, %v104
  %v169 = vmul.f32 %v105, %v105
  %v170 = vmul.f32 %v106, %v106
  %v171 = vmul.f32 %v107, %v107
  %v172 = vmul.f32 %v108, %v108
  %v173 = vmul.f32 %v109, %v109
  %v174 = vmul.f32 %v110, %v110
  %v175 = vmul.f32 %v111, %v111
  %v176 = vmul.f32 %v112, %v112
  %v177 = vmul.f32 %v113, %v113
  %v178 = vmul.f32 %v114, %v114
  %v179 = vmul.f32 %v115, %v115
  %v180 = vmul.f32 %v116, %v116
  %v181 = vmul.f32 %v117, %v117
  %v182 = vmul.f32 %v118, %v118
  %v183 = vmul.f32 %v119, %v119
  %v184 = vmul.f32 %v120, %v120
  %v185 = vmul.f32 %v121, %v121
  %v186 = vmul.f32 %v122, %v122
  %v187 = vmul.f32 %v123, %v123
  %v188 = vmul.f32 %v124, %v124
  %v189 = vmul.f32 %v125, %v125
  %v190 = vmul.f32 %v126, %v126
  %v191 = vmul.f32 %v127, %v127
  %v192 = vmul.f32 %v128, %v128
  %v193 = vmul.f32 %v129, %v129
  %v194 = vmul.f32 %v130, %v130
  %v195 = vmul.f32 %v131, %v131
  %v196 = vmul.f32 %v132, %v132
  %v197 = vmul.f32 %v133, %v133
  %v198 = vmul.f32 %v134, %v134
  %v199 = vmul.f32 %v135, %v135
  %v200 = vmul.f32 %v136, %v136
  %v201 = vmul.f32 %v137, %v137
  %v202 = vmul.f32 %v138, %v138
  %v203 = vmul.f32 %v139, %v139
  %v204 = vmul.f32 %v140, %v140
  %v205 = vmul.f32 %v141, %v141
  %270 = vrot.lane.b32.xlu0 %v142, 120
  %v271 = vpop.permute.xlu0 %270
  %272 = vrot.lane.b32.xlu0 %v143, 120
  %v273 = vpop.permute.xlu0 %272
  %274 = vrot.lane.b32.xlu0 %v144, 120
  %v275 = vpop.permute.xlu0 %274
  %276 = vrot.lane.b32.xlu0 %v145, 120
  %v277 = vpop.permute.xlu0 %276
  %278 = vrot.lane.b32.xlu0 %v146, 120
  %v279 = vpop.permute.xlu0 %278
  %280 = vrot.lane.b32.xlu0 %v147, 120
  %v281 = vpop.permute.xlu0 %280
  %282 = vrot.lane.b32.xlu0 %v148, 120
  %v283 = vpop.permute.xlu0 %282
  %284 = vrot.lane.b32.xlu0 %v149, 120
  %v285 = vpop.permute.xlu0 %284
  %286 = vrot.lane.b32.xlu0 %v150, 120
  %v287 = vpop.permute.xlu0 %286
  %288 = vrot.lane.b32.xlu0 %v151, 120
  %v289 = vpop.permute.xlu0 %288
  %290 = vrot.lane.b32.xlu0 %v152, 120
  %v291 = vpop.permute.xlu0 %290
  %292 = vrot.lane.b32.xlu0 %v153, 120
  %v293 = vpop.permute.xlu0 %292
  %294 = vrot.lane.b32.xlu0 %v154, 120
  %v295 = vpop.permute.xlu0 %294
  %296 = vrot.lane.b32.xlu0 %v155, 120
  %v297 = vpop.permute.xlu0 %296
  %298 = vrot.lane.b32.xlu0 %v156, 120
  %v299 = vpop.permute.xlu0 %298
  %300 = vrot.lane.b32.xlu0 %v157, 120
  %v301 = vpop.permute.xlu0 %300
  %302 = vrot.lane.b32.xlu0 %v158, 120
  %v303 = vpop.permute.xlu0 %302
  %304 = vrot.lane.b32.xlu0 %v159, 120
  %v305 = vpop.permute.xlu0 %304
  %306 = vrot.lane.b32.xlu0 %v160, 120
  %v307 = vpop.permute.xlu0 %306
  %308 = vrot.lane.b32.xlu0 %v161, 120
  %v309 = vpop.permute.xlu0 %308
  %310 = vrot.lane.b32.xlu0 %v162, 120
  %v311 = vpop.permute.xlu0 %310
  %312 = vrot.lane.b32.xlu0 %v163, 120
  %v313 = vpop.permute.xlu0 %312
  %314 = vrot.lane.b32.xlu0 %v164, 120
  %v315 = vpop.permute.xlu0 %314
  %316 = vrot.lane.b32.xlu0 %v165, 120
  %v317 = vpop.permute.xlu0 %316
  %318 = vrot.lane.b32.xlu0 %v166, 120
  %v319 = vpop.permute.xlu0 %318
  %320 = vrot.lane.b32.xlu0 %v167, 120
  %v321 = vpop.permute.xlu0 %320
  %322 = vrot.lane.b32.xlu0 %v168, 120
  %v323 = vpop.permute.xlu0 %322
  %324 = vrot.lane.b32.xlu0 %v169, 120
  %v325 = vpop.permute.xlu0 %324
  %326 = vrot.lane.b32.xlu0 %v170, 120
  %v327 = vpop.permute.xlu0 %326
  %328 = vrot.lane.b32.xlu0 %v171, 120
  %v329 = vpop.permute.xlu0 %328
  %330 = vrot.lane.b32.xlu0 %v172, 120
  %v331 = vpop.permute.xlu0 %330
  %332 = vrot.lane.b32.xlu0 %v173, 120
  %v333 = vpop.permute.xlu0 %332
  %334 = vrot.lane.b32.xlu0 %v174, 120
  %v335 = vpop.permute.xlu0 %334
  %336 = vrot.lane.b32.xlu0 %v175, 120
  %v337 = vpop.permute.xlu0 %336
  %338 = vrot.lane.b32.xlu0 %v176, 120
  %v339 = vpop.permute.xlu0 %338
  %340 = vrot.lane.b32.xlu0 %v177, 120
  %v341 = vpop.permute.xlu0 %340
  %342 = vrot.lane.b32.xlu0 %v178, 120
  %v343 = vpop.permute.xlu0 %342
  %344 = vrot.lane.b32.xlu0 %v179, 120
  %v345 = vpop.permute.xlu0 %344
  %346 = vrot.lane.b32.xlu0 %v180, 120
  %v347 = vpop.permute.xlu0 %346
  %348 = vrot.lane.b32.xlu0 %v181, 120
  %v349 = vpop.permute.xlu0 %348
  %350 = vrot.lane.b32.xlu0 %v182, 120
  %v351 = vpop.permute.xlu0 %350
  %352 = vrot.lane.b32.xlu0 %v183, 120
  %v353 = vpop.permute.xlu0 %352
  %354 = vrot.lane.b32.xlu0 %v184, 120
  %v355 = vpop.permute.xlu0 %354
  %356 = vrot.lane.b32.xlu0 %v185, 120
  %v357 = vpop.permute.xlu0 %356
  %358 = vrot.lane.b32.xlu0 %v186, 120
  %v359 = vpop.permute.xlu0 %358
  %360 = vrot.lane.b32.xlu0 %v187, 120
  %v361 = vpop.permute.xlu0 %360
  %362 = vrot.lane.b32.xlu0 %v188, 120
  %v363 = vpop.permute.xlu0 %362
  %364 = vrot.lane.b32.xlu0 %v189, 120
  %v365 = vpop.permute.xlu0 %364
  %366 = vrot.lane.b32.xlu0 %v190, 120
  %v367 = vpop.permute.xlu0 %366
  %368 = vrot.lane.b32.xlu0 %v191, 120
  %v369 = vpop.permute.xlu0 %368
  %370 = vrot.lane.b32.xlu0 %v192, 120
  %v371 = vpop.permute.xlu0 %370
  %372 = vrot.lane.b32.xlu0 %v193, 120
  %v373 = vpop.permute.xlu0 %372
  %374 = vrot.lane.b32.xlu0 %v194, 120
  %v375 = vpop.permute.xlu0 %374
  %376 = vrot.lane.b32.xlu0 %v195, 120
  %v377 = vpop.permute.xlu0 %376
  %378 = vrot.lane.b32.xlu0 %v196, 120
  %v379 = vpop.permute.xlu0 %378
  %380 = vrot.lane.b32.xlu0 %v197, 120
  %v381 = vpop.permute.xlu0 %380
  %382 = vrot.lane.b32.xlu0 %v198, 120
  %v383 = vpop.permute.xlu0 %382
  %384 = vrot.lane.b32.xlu0 %v199, 120
  %v385 = vpop.permute.xlu0 %384
  %386 = vrot.lane.b32.xlu0 %v200, 120
  %v387 = vpop.permute.xlu0 %386
  %388 = vrot.lane.b32.xlu0 %v201, 120
  %v389 = vpop.permute.xlu0 %388
  %390 = vrot.lane.b32.xlu0 %v202, 120
  %v391 = vpop.permute.xlu0 %390
  %392 = vrot.lane.b32.xlu0 %v203, 120
  %v393 = vpop.permute.xlu0 %392
  %394 = vrot.lane.b32.xlu0 %v204, 120
  %v395 = vpop.permute.xlu0 %394
  %396 = vrot.lane.b32.xlu0 %v205, 120
  %v397 = vpop.permute.xlu0 %396
  %v462 = vadd.f32 %v142, %v271
  %v463 = vadd.f32 %v143, %v273
  %v464 = vadd.f32 %v144, %v275
  %v465 = vadd.f32 %v145, %v277
  %v466 = vadd.f32 %v146, %v279
  %v467 = vadd.f32 %v147, %v281
  %v468 = vadd.f32 %v148, %v283
  %v469 = vadd.f32 %v149, %v285
  %v470 = vadd.f32 %v150, %v287
  %v471 = vadd.f32 %v151, %v289
  %v472 = vadd.f32 %v152, %v291
  %v473 = vadd.f32 %v153, %v293
  %v474 = vadd.f32 %v154, %v295
  %v475 = vadd.f32 %v155, %v297
  %v476 = vadd.f32 %v156, %v299
  %v477 = vadd.f32 %v157, %v301
  %v478 = vadd.f32 %v158, %v303
  %v479 = vadd.f32 %v159, %v305
  %v480 = vadd.f32 %v160, %v307
  %v481 = vadd.f32 %v161, %v309
  %v482 = vadd.f32 %v162, %v311
  %v483 = vadd.f32 %v163, %v313
  %v484 = vadd.f32 %v164, %v315
  %v485 = vadd.f32 %v165, %v317
  %v486 = vadd.f32 %v166, %v319
  %v487 = vadd.f32 %v167, %v321
  %v488 = vadd.f32 %v168, %v323
  %v489 = vadd.f32 %v169, %v325
  %v490 = vadd.f32 %v170, %v327
  %v491 = vadd.f32 %v171, %v329
  %v492 = vadd.f32 %v172, %v331
  %v493 = vadd.f32 %v173, %v333
  %v494 = vadd.f32 %v174, %v335
  %v495 = vadd.f32 %v175, %v337
  %v496 = vadd.f32 %v176, %v339
  %v497 = vadd.f32 %v177, %v341
  %v498 = vadd.f32 %v178, %v343
  %v499 = vadd.f32 %v179, %v345
  %v500 = vadd.f32 %v180, %v347
  %v501 = vadd.f32 %v181, %v349
  %v502 = vadd.f32 %v182, %v351
  %v503 = vadd.f32 %v183, %v353
  %v504 = vadd.f32 %v184, %v355
  %v505 = vadd.f32 %v185, %v357
  %v506 = vadd.f32 %v186, %v359
  %v507 = vadd.f32 %v187, %v361
  %v508 = vadd.f32 %v188, %v363
  %v509 = vadd.f32 %v189, %v365
  %v510 = vadd.f32 %v190, %v367
  %v511 = vadd.f32 %v191, %v369
  %v512 = vadd.f32 %v192, %v371
  %v513 = vadd.f32 %v193, %v373
  %v514 = vadd.f32 %v194, %v375
  %v515 = vadd.f32 %v195, %v377
  %v516 = vadd.f32 %v196, %v379
  %v517 = vadd.f32 %v197, %v381
  %v518 = vadd.f32 %v198, %v383
  %v519 = vadd.f32 %v199, %v385
  %v520 = vadd.f32 %v200, %v387
  %v521 = vadd.f32 %v201, %v389
  %v522 = vadd.f32 %v202, %v391
  %v523 = vadd.f32 %v203, %v393
  %v524 = vadd.f32 %v204, %v395
  %v525 = vadd.f32 %v205, %v397
  %v526 = vadd.f32 %v462, 1e-30
  %v527 = vadd.f32 %v463, 1e-30
  %v528 = vadd.f32 %v464, 1e-30
  %v529 = vadd.f32 %v465, 1e-30
  %v530 = vadd.f32 %v466, 1e-30
  %v531 = vadd.f32 %v467, 1e-30
  %v532 = vadd.f32 %v468, 1e-30
  %v533 = vadd.f32 %v469, 1e-30
  %v534 = vadd.f32 %v470, 1e-30
  %v535 = vadd.f32 %v471, 1e-30
  %v536 = vadd.f32 %v472, 1e-30
  %v537 = vadd.f32 %v473, 1e-30
  %v538 = vadd.f32 %v474, 1e-30
  %v539 = vadd.f32 %v475, 1e-30
  %v540 = vadd.f32 %v476, 1e-30
  %v541 = vadd.f32 %v477, 1e-30
  %v542 = vadd.f32 %v478, 1e-30
  %v543 = vadd.f32 %v479, 1e-30
  %v544 = vadd.f32 %v480, 1e-30
  %v545 = vadd.f32 %v481, 1e-30
  %v546 = vadd.f32 %v482, 1e-30
  %v547 = vadd.f32 %v483, 1e-30
  %v548 = vadd.f32 %v484, 1e-30
  %v549 = vadd.f32 %v485, 1e-30
  %v550 = vadd.f32 %v486, 1e-30
  %v551 = vadd.f32 %v487, 1e-30
  %v552 = vadd.f32 %v488, 1e-30
  %v553 = vadd.f32 %v489, 1e-30
  %v554 = vadd.f32 %v490, 1e-30
  %v555 = vadd.f32 %v491, 1e-30
  %v556 = vadd.f32 %v492, 1e-30
  %v557 = vadd.f32 %v493, 1e-30
  %v558 = vadd.f32 %v494, 1e-30
  %v559 = vadd.f32 %v495, 1e-30
  %v560 = vadd.f32 %v496, 1e-30
  %v561 = vadd.f32 %v497, 1e-30
  %v562 = vadd.f32 %v498, 1e-30
  %v563 = vadd.f32 %v499, 1e-30
  %v564 = vadd.f32 %v500, 1e-30
  %v565 = vadd.f32 %v501, 1e-30
  %v566 = vadd.f32 %v502, 1e-30
  %v567 = vadd.f32 %v503, 1e-30
  %v568 = vadd.f32 %v504, 1e-30
  %v569 = vadd.f32 %v505, 1e-30
  %v570 = vadd.f32 %v506, 1e-30
  %v571 = vadd.f32 %v507, 1e-30
  %v572 = vadd.f32 %v508, 1e-30
  %v573 = vadd.f32 %v509, 1e-30
  %v574 = vadd.f32 %v510, 1e-30
  %v575 = vadd.f32 %v511, 1e-30
  %v576 = vadd.f32 %v512, 1e-30
  %v577 = vadd.f32 %v513, 1e-30
  %v578 = vadd.f32 %v514, 1e-30
  %v579 = vadd.f32 %v515, 1e-30
  %v580 = vadd.f32 %v516, 1e-30
  %v581 = vadd.f32 %v517, 1e-30
  %v582 = vadd.f32 %v518, 1e-30
  %v583 = vadd.f32 %v519, 1e-30
  %v584 = vadd.f32 %v520, 1e-30
  %v585 = vadd.f32 %v521, 1e-30
  %v586 = vadd.f32 %v522, 1e-30
  %v587 = vadd.f32 %v523, 1e-30
  %v588 = vadd.f32 %v524, 1e-30
  %v589 = vadd.f32 %v525, 1e-30
  %v590 = vrsqrt.pop %v526
  %v591 = vrsqrt.pop %v527
  %v592 = vrsqrt.pop %v528
  %v593 = vrsqrt.pop %v529
  %v594 = vrsqrt.pop %v530
  %v595 = vrsqrt.pop %v531
  %v596 = vrsqrt.pop %v532
  %v597 = vrsqrt.pop %v533
  %v598 = vrsqrt.pop %v534
  %v599 = vrsqrt.pop %v535
  %v600 = vrsqrt.pop %v536
  %v601 = vrsqrt.pop %v537
  %v602 = vrsqrt.pop %v538
  %v603 = vrsqrt.pop %v539
  %v604 = vrsqrt.pop %v540
  %v605 = vrsqrt.pop %v541
  %v606 = vrsqrt.pop %v542
  %v607 = vrsqrt.pop %v543
  %v608 = vrsqrt.pop %v544
  %v609 = vrsqrt.pop %v545
  %v610 = vrsqrt.pop %v546
  %v611 = vrsqrt.pop %v547
  %v612 = vrsqrt.pop %v548
  %v613 = vrsqrt.pop %v549
  %v614 = vrsqrt.pop %v550
  %v615 = vrsqrt.pop %v551
  %v616 = vrsqrt.pop %v552
  %v617 = vrsqrt.pop %v553
  %v618 = vrsqrt.pop %v554
  %v619 = vrsqrt.pop %v555
  %v620 = vrsqrt.pop %v556
  %v621 = vrsqrt.pop %v557
  %v622 = vrsqrt.pop %v558
  %v623 = vrsqrt.pop %v559
  %v624 = vrsqrt.pop %v560
  %v625 = vrsqrt.pop %v561
  %v626 = vrsqrt.pop %v562
  %v627 = vrsqrt.pop %v563
  %v628 = vrsqrt.pop %v564
  %v629 = vrsqrt.pop %v565
  %v630 = vrsqrt.pop %v566
  %v631 = vrsqrt.pop %v567
  %v632 = vrsqrt.pop %v568
  %v633 = vrsqrt.pop %v569
  %v634 = vrsqrt.pop %v570
  %v635 = vrsqrt.pop %v571
  %v636 = vrsqrt.pop %v572
  %v637 = vrsqrt.pop %v573
  %v638 = vrsqrt.pop %v574
  %v639 = vrsqrt.pop %v575
  %v640 = vrsqrt.pop %v576
  %v641 = vrsqrt.pop %v577
  %v642 = vrsqrt.pop %v578
  %v643 = vrsqrt.pop %v579
  %v644 = vrsqrt.pop %v580
  %v645 = vrsqrt.pop %v581
  %v646 = vrsqrt.pop %v582
  %v647 = vrsqrt.pop %v583
  %v648 = vrsqrt.pop %v584
  %v649 = vrsqrt.pop %v585
  %v650 = vrsqrt.pop %v586
  %v651 = vrsqrt.pop %v587
  %v652 = vrsqrt.pop %v588
  %v653 = vrsqrt.pop %v589
  %v654 = vmul.f32 %v462, %v590
  %v655 = vmul.f32 %v463, %v591
  %v656 = vmul.f32 %v464, %v592
  %v657 = vmul.f32 %v465, %v593
  %v658 = vmul.f32 %v466, %v594
  %v659 = vmul.f32 %v467, %v595
  %v660 = vmul.f32 %v468, %v596
  %v661 = vmul.f32 %v469, %v597
  %v662 = vmul.f32 %v470, %v598
  %v663 = vmul.f32 %v471, %v599
  %v664 = vmul.f32 %v472, %v600
  %v665 = vmul.f32 %v473, %v601
  %v666 = vmul.f32 %v474, %v602
  %v667 = vmul.f32 %v475, %v603
  %v668 = vmul.f32 %v476, %v604
  %v669 = vmul.f32 %v477, %v605
  %v670 = vmul.f32 %v478, %v606
  %v671 = vmul.f32 %v479, %v607
  %v672 = vmul.f32 %v480, %v608
  %v673 = vmul.f32 %v481, %v609
  %v674 = vmul.f32 %v482, %v610
  %v675 = vmul.f32 %v483, %v611
  %v676 = vmul.f32 %v484, %v612
  %v677 = vmul.f32 %v485, %v613
  %v678 = vmul.f32 %v486, %v614
  %v679 = vmul.f32 %v487, %v615
  %v680 = vmul.f32 %v488, %v616
  %v681 = vmul.f32 %v489, %v617
  %v682 = vmul.f32 %v490, %v618
  %v683 = vmul.f32 %v491, %v619
  %v684 = vmul.f32 %v492, %v620
  %v685 = vmul.f32 %v493, %v621
  %v686 = vmul.f32 %v494, %v622
  %v687 = vmul.f32 %v495, %v623
  %v688 = vmul.f32 %v496, %v624
  %v689 = vmul.f32 %v497, %v625
  %v690 = vmul.f32 %v498, %v626
  %v691 = vmul.f32 %v499, %v627
  %v692 = vmul.f32 %v500, %v628
  %v693 = vmul.f32 %v501, %v629
  %v694 = vmul.f32 %v502, %v630
  %v695 = vmul.f32 %v503, %v631
  %v696 = vmul.f32 %v504, %v632
  %v697 = vmul.f32 %v505, %v633
  %v698 = vmul.f32 %v506, %v634
  %v699 = vmul.f32 %v507, %v635
  %v700 = vmul.f32 %v508, %v636
  %v701 = vmul.f32 %v509, %v637
  %v702 = vmul.f32 %v510, %v638
  %v703 = vmul.f32 %v511, %v639
  %v704 = vmul.f32 %v512, %v640
  %v705 = vmul.f32 %v513, %v641
  %v706 = vmul.f32 %v514, %v642
  %v707 = vmul.f32 %v515, %v643
  %v708 = vmul.f32 %v516, %v644
  %v709 = vmul.f32 %v517, %v645
  %v710 = vmul.f32 %v518, %v646
  %v711 = vmul.f32 %v519, %v647
  %v712 = vmul.f32 %v520, %v648
  %v713 = vmul.f32 %v521, %v649
  %v714 = vmul.f32 %v522, %v650
  %v715 = vmul.f32 %v523, %v651
  %v716 = vmul.f32 %v524, %v652
  %v717 = vmul.f32 %v525, %v653
  %vm718 = vcmp.le.f32.partialorder %v462, 0.0
  %vm719 = vcmp.le.f32.partialorder %v463, 0.0
  %vm720 = vcmp.le.f32.partialorder %v464, 0.0
  %vm721 = vcmp.le.f32.partialorder %v465, 0.0
  %vm722 = vcmp.le.f32.partialorder %v466, 0.0
  %vm723 = vcmp.le.f32.partialorder %v467, 0.0
  %vm724 = vcmp.le.f32.partialorder %v468, 0.0
  %vm725 = vcmp.le.f32.partialorder %v469, 0.0
  %vm726 = vcmp.le.f32.partialorder %v470, 0.0
  %vm727 = vcmp.le.f32.partialorder %v471, 0.0
  %vm728 = vcmp.le.f32.partialorder %v472, 0.0
  %vm729 = vcmp.le.f32.partialorder %v473, 0.0
  %vm730 = vcmp.le.f32.partialorder %v474, 0.0
  %vm731 = vcmp.le.f32.partialorder %v475, 0.0
  %vm732 = vcmp.le.f32.partialorder %v476, 0.0
  %vm733 = vcmp.le.f32.partialorder %v477, 0.0
  %vm734 = vcmp.le.f32.partialorder %v478, 0.0
  %vm735 = vcmp.le.f32.partialorder %v479, 0.0
  %vm736 = vcmp.le.f32.partialorder %v480, 0.0
  %vm737 = vcmp.le.f32.partialorder %v481, 0.0
  %vm738 = vcmp.le.f32.partialorder %v482, 0.0
  %vm739 = vcmp.le.f32.partialorder %v483, 0.0
  %vm740 = vcmp.le.f32.partialorder %v484, 0.0
  %vm741 = vcmp.le.f32.partialorder %v485, 0.0
  %vm742 = vcmp.le.f32.partialorder %v486, 0.0
  %vm743 = vcmp.le.f32.partialorder %v487, 0.0
  %vm744 = vcmp.le.f32.partialorder %v488, 0.0
  %vm745 = vcmp.le.f32.partialorder %v489, 0.0
  %vm746 = vcmp.le.f32.partialorder %v490, 0.0
  %vm747 = vcmp.le.f32.partialorder %v491, 0.0
  %vm748 = vcmp.le.f32.partialorder %v492, 0.0
  %vm749 = vcmp.le.f32.partialorder %v493, 0.0
  %vm750 = vcmp.le.f32.partialorder %v494, 0.0
  %vm751 = vcmp.le.f32.partialorder %v495, 0.0
  %vm752 = vcmp.le.f32.partialorder %v496, 0.0
  %vm753 = vcmp.le.f32.partialorder %v497, 0.0
  %vm754 = vcmp.le.f32.partialorder %v498, 0.0
  %vm755 = vcmp.le.f32.partialorder %v499, 0.0
  %vm756 = vcmp.le.f32.partialorder %v500, 0.0
  %vm757 = vcmp.le.f32.partialorder %v501, 0.0
  %vm758 = vcmp.le.f32.partialorder %v502, 0.0
  %vm759 = vcmp.le.f32.partialorder %v503, 0.0
  %vm760 = vcmp.le.f32.partialorder %v504, 0.0
  %vm761 = vcmp.le.f32.partialorder %v505, 0.0
  %vm762 = vcmp.le.f32.partialorder %v506, 0.0
  %vm763 = vcmp.le.f32.partialorder %v507, 0.0
  %vm764 = vcmp.le.f32.partialorder %v508, 0.0
  %vm765 = vcmp.le.f32.partialorder %v509, 0.0
  %vm766 = vcmp.le.f32.partialorder %v510, 0.0
  %vm767 = vcmp.le.f32.partialorder %v511, 0.0
  %vm768 = vcmp.le.f32.partialorder %v512, 0.0
  %vm769 = vcmp.le.f32.partialorder %v513, 0.0
  %vm770 = vcmp.le.f32.partialorder %v514, 0.0
  %vm771 = vcmp.le.f32.partialorder %v515, 0.0
  %vm772 = vcmp.le.f32.partialorder %v516, 0.0
  %vm773 = vcmp.le.f32.partialorder %v517, 0.0
  %vm774 = vcmp.le.f32.partialorder %v518, 0.0
  %vm775 = vcmp.le.f32.partialorder %v519, 0.0
  %vm776 = vcmp.le.f32.partialorder %v520, 0.0
  %vm777 = vcmp.le.f32.partialorder %v521, 0.0
  %vm778 = vcmp.le.f32.partialorder %v522, 0.0
  %vm779 = vcmp.le.f32.partialorder %v523, 0.0
  %vm780 = vcmp.le.f32.partialorder %v524, 0.0
  %vm781 = vcmp.le.f32.partialorder %v525, 0.0
  %v782 = vmul.f32 %v78, %v590
  %v783 = vmul.f32 %v79, %v591
  %v784 = vmul.f32 %v80, %v592
  %v785 = vmul.f32 %v81, %v593
  %v786 = vmul.f32 %v82, %v594
  %v787 = vmul.f32 %v83, %v595
  %v788 = vmul.f32 %v84, %v596
  %v789 = vmul.f32 %v85, %v597
  %v790 = vmul.f32 %v86, %v598
  %v791 = vmul.f32 %v87, %v599
  %v792 = vmul.f32 %v88, %v600
  %v793 = vmul.f32 %v89, %v601
  %v794 = vmul.f32 %v90, %v602
  %v795 = vmul.f32 %v91, %v603
  %v796 = vmul.f32 %v92, %v604
  %v797 = vmul.f32 %v93, %v605
  %v798 = vmul.f32 %v94, %v606
  %v799 = vmul.f32 %v95, %v607
  %v800 = vmul.f32 %v96, %v608
  %v801 = vmul.f32 %v97, %v609
  %v802 = vmul.f32 %v98, %v610
  %v803 = vmul.f32 %v99, %v611
  %v804 = vmul.f32 %v100, %v612
  %v805 = vmul.f32 %v101, %v613
  %v806 = vmul.f32 %v102, %v614
  %v807 = vmul.f32 %v103, %v615
  %v808 = vmul.f32 %v104, %v616
  %v809 = vmul.f32 %v105, %v617
  %v810 = vmul.f32 %v106, %v618
  %v811 = vmul.f32 %v107, %v619
  %v812 = vmul.f32 %v108, %v620
  %v813 = vmul.f32 %v109, %v621
  %v814 = vmul.f32 %v110, %v622
  %v815 = vmul.f32 %v111, %v623
  %v816 = vmul.f32 %v112, %v624
  %v817 = vmul.f32 %v113, %v625
  %v818 = vmul.f32 %v114, %v626
  %v819 = vmul.f32 %v115, %v627
  %v820 = vmul.f32 %v116, %v628
  %v821 = vmul.f32 %v117, %v629
  %v822 = vmul.f32 %v118, %v630
  %v823 = vmul.f32 %v119, %v631
  %v824 = vmul.f32 %v120, %v632
  %v825 = vmul.f32 %v121, %v633
  %v826 = vmul.f32 %v122, %v634
  %v827 = vmul.f32 %v123, %v635
  %v828 = vmul.f32 %v124, %v636
  %v829 = vmul.f32 %v125, %v637
  %v830 = vmul.f32 %v126, %v638
  %v831 = vmul.f32 %v127, %v639
  %v832 = vmul.f32 %v128, %v640
  %v833 = vmul.f32 %v129, %v641
  %v834 = vmul.f32 %v130, %v642
  %v835 = vmul.f32 %v131, %v643
  %v836 = vmul.f32 %v132, %v644
  %v837 = vmul.f32 %v133, %v645
  %v838 = vmul.f32 %v134, %v646
  %v839 = vmul.f32 %v135, %v647
  %v840 = vmul.f32 %v136, %v648
  %v841 = vmul.f32 %v137, %v649
  %v842 = vmul.f32 %v138, %v650
  %v843 = vmul.f32 %v139, %v651
  %v844 = vmul.f32 %v140, %v652
  %v845 = vmul.f32 %v141, %v653
  %v846 = vsel %vm718, 1.0, %v782
  %v847 = vsel %vm719, 1.0, %v783
  %v848 = vsel %vm720, 1.0, %v784
  %v849 = vsel %vm721, 1.0, %v785
  %v850 = vsel %vm722, 1.0, %v786
  %v851 = vsel %vm723, 1.0, %v787
  %v852 = vsel %vm724, 1.0, %v788
  %v853 = vsel %vm725, 1.0, %v789
  %v854 = vsel %vm726, 1.0, %v790
  %v855 = vsel %vm727, 1.0, %v791
  %v856 = vsel %vm728, 1.0, %v792
  %v857 = vsel %vm729, 1.0, %v793
  %v858 = vsel %vm730, 1.0, %v794
  %v859 = vsel %vm731, 1.0, %v795
  %v860 = vsel %vm732, 1.0, %v796
  %v861 = vsel %vm733, 1.0, %v797
  %v862 = vsel %vm734, 1.0, %v798
  %v863 = vsel %vm735, 1.0, %v799
  %v864 = vsel %vm736, 1.0, %v800
  %v865 = vsel %vm737, 1.0, %v801
  %v866 = vsel %vm738, 1.0, %v802
  %v867 = vsel %vm739, 1.0, %v803
  %v868 = vsel %vm740, 1.0, %v804
  %v869 = vsel %vm741, 1.0, %v805
  %v870 = vsel %vm742, 1.0, %v806
  %v871 = vsel %vm743, 1.0, %v807
  %v872 = vsel %vm744, 1.0, %v808
  %v873 = vsel %vm745, 1.0, %v809
  %v874 = vsel %vm746, 1.0, %v810
  %v875 = vsel %vm747, 1.0, %v811
  %v876 = vsel %vm748, 1.0, %v812
  %v877 = vsel %vm749, 1.0, %v813
  %v878 = vsel %vm750, 1.0, %v814
  %v879 = vsel %vm751, 1.0, %v815
  %v880 = vsel %vm752, 1.0, %v816
  %v881 = vsel %vm753, 1.0, %v817
  %v882 = vsel %vm754, 1.0, %v818
  %v883 = vsel %vm755, 1.0, %v819
  %v884 = vsel %vm756, 1.0, %v820
  %v885 = vsel %vm757, 1.0, %v821
  %v886 = vsel %vm758, 1.0, %v822
  %v887 = vsel %vm759, 1.0, %v823
  %v888 = vsel %vm760, 1.0, %v824
  %v889 = vsel %vm761, 1.0, %v825
  %v890 = vsel %vm762, 1.0, %v826
  %v891 = vsel %vm763, 1.0, %v827
  %v892 = vsel %vm764, 1.0, %v828
  %v893 = vsel %vm765, 1.0, %v829
  %v894 = vsel %vm766, 1.0, %v830
  %v895 = vsel %vm767, 1.0, %v831
  %v896 = vsel %vm768, 1.0, %v832
  %v897 = vsel %vm769, 1.0, %v833
  %v898 = vsel %vm770, 1.0, %v834
  %v899 = vsel %vm771, 1.0, %v835
  %v900 = vsel %vm772, 1.0, %v836
  %v901 = vsel %vm773, 1.0, %v837
  %v902 = vsel %vm774, 1.0, %v838
  %v903 = vsel %vm775, 1.0, %v839
  %v904 = vsel %vm776, 1.0, %v840
  %v905 = vsel %vm777, 1.0, %v841
  %v906 = vsel %vm778, 1.0, %v842
  %v907 = vsel %vm779, 1.0, %v843
  %v908 = vsel %vm780, 1.0, %v844
  %v909 = vsel %vm781, 1.0, %v845
  %974 = vrot.lane.b32.xlu0 %v590, 8
  %v975 = vpop.permute.xlu0 %974
  %976 = vrot.lane.b32.xlu0 %v591, 8
  %v977 = vpop.permute.xlu0 %976
  %978 = vrot.lane.b32.xlu0 %v592, 8
  %v979 = vpop.permute.xlu0 %978
  %980 = vrot.lane.b32.xlu0 %v593, 8
  %v981 = vpop.permute.xlu0 %980
  %982 = vrot.lane.b32.xlu0 %v594, 8
  %v983 = vpop.permute.xlu0 %982
  %984 = vrot.lane.b32.xlu0 %v595, 8
  %v985 = vpop.permute.xlu0 %984
  %986 = vrot.lane.b32.xlu0 %v596, 8
  %v987 = vpop.permute.xlu0 %986
  %988 = vrot.lane.b32.xlu0 %v597, 8
  %v989 = vpop.permute.xlu0 %988
  %990 = vrot.lane.b32.xlu0 %v598, 8
  %v991 = vpop.permute.xlu0 %990
  %992 = vrot.lane.b32.xlu0 %v599, 8
  %v993 = vpop.permute.xlu0 %992
  %994 = vrot.lane.b32.xlu0 %v600, 8
  %v995 = vpop.permute.xlu0 %994
  %996 = vrot.lane.b32.xlu0 %v601, 8
  %v997 = vpop.permute.xlu0 %996
  %998 = vrot.lane.b32.xlu0 %v602, 8
  %v999 = vpop.permute.xlu0 %998
  %1000 = vrot.lane.b32.xlu0 %v603, 8
  %v1001 = vpop.permute.xlu0 %1000
  %1002 = vrot.lane.b32.xlu0 %v604, 8
  %v1003 = vpop.permute.xlu0 %1002
  %1004 = vrot.lane.b32.xlu0 %v605, 8
  %v1005 = vpop.permute.xlu0 %1004
  %1006 = vrot.lane.b32.xlu0 %v606, 8
  %v1007 = vpop.permute.xlu0 %1006
  %1008 = vrot.lane.b32.xlu0 %v607, 8
  %v1009 = vpop.permute.xlu0 %1008
  %1010 = vrot.lane.b32.xlu0 %v608, 8
  %v1011 = vpop.permute.xlu0 %1010
  %1012 = vrot.lane.b32.xlu0 %v609, 8
  %v1013 = vpop.permute.xlu0 %1012
  %1014 = vrot.lane.b32.xlu0 %v610, 8
  %v1015 = vpop.permute.xlu0 %1014
  %1016 = vrot.lane.b32.xlu0 %v611, 8
  %v1017 = vpop.permute.xlu0 %1016
  %1018 = vrot.lane.b32.xlu0 %v612, 8
  %v1019 = vpop.permute.xlu0 %1018
  %1020 = vrot.lane.b32.xlu0 %v613, 8
  %v1021 = vpop.permute.xlu0 %1020
  %1022 = vrot.lane.b32.xlu0 %v614, 8
  %v1023 = vpop.permute.xlu0 %1022
  %1024 = vrot.lane.b32.xlu0 %v615, 8
  %v1025 = vpop.permute.xlu0 %1024
  %1026 = vrot.lane.b32.xlu0 %v616, 8
  %v1027 = vpop.permute.xlu0 %1026
  %1028 = vrot.lane.b32.xlu0 %v617, 8
  %v1029 = vpop.permute.xlu0 %1028
  %1030 = vrot.lane.b32.xlu0 %v618, 8
  %v1031 = vpop.permute.xlu0 %1030
  %1032 = vrot.lane.b32.xlu0 %v619, 8
  %v1033 = vpop.permute.xlu0 %1032
  %1034 = vrot.lane.b32.xlu0 %v620, 8
  %v1035 = vpop.permute.xlu0 %1034
  %1036 = vrot.lane.b32.xlu0 %v621, 8
  %v1037 = vpop.permute.xlu0 %1036
  %1038 = vrot.lane.b32.xlu0 %v622, 8
  %v1039 = vpop.permute.xlu0 %1038
  %1040 = vrot.lane.b32.xlu0 %v623, 8
  %v1041 = vpop.permute.xlu0 %1040
  %1042 = vrot.lane.b32.xlu0 %v624, 8
  %v1043 = vpop.permute.xlu0 %1042
  %1044 = vrot.lane.b32.xlu0 %v625, 8
  %v1045 = vpop.permute.xlu0 %1044
  %1046 = vrot.lane.b32.xlu0 %v626, 8
  %v1047 = vpop.permute.xlu0 %1046
  %1048 = vrot.lane.b32.xlu0 %v627, 8
  %v1049 = vpop.permute.xlu0 %1048
  %1050 = vrot.lane.b32.xlu0 %v628, 8
  %v1051 = vpop.permute.xlu0 %1050
  %1052 = vrot.lane.b32.xlu0 %v629, 8
  %v1053 = vpop.permute.xlu0 %1052
  %1054 = vrot.lane.b32.xlu0 %v630, 8
  %v1055 = vpop.permute.xlu0 %1054
  %1056 = vrot.lane.b32.xlu0 %v631, 8
  %v1057 = vpop.permute.xlu0 %1056
  %1058 = vrot.lane.b32.xlu0 %v632, 8
  %v1059 = vpop.permute.xlu0 %1058
  %1060 = vrot.lane.b32.xlu0 %v633, 8
  %v1061 = vpop.permute.xlu0 %1060
  %1062 = vrot.lane.b32.xlu0 %v634, 8
  %v1063 = vpop.permute.xlu0 %1062
  %1064 = vrot.lane.b32.xlu0 %v635, 8
  %v1065 = vpop.permute.xlu0 %1064
  %1066 = vrot.lane.b32.xlu0 %v636, 8
  %v1067 = vpop.permute.xlu0 %1066
  %1068 = vrot.lane.b32.xlu0 %v637, 8
  %v1069 = vpop.permute.xlu0 %1068
  %1070 = vrot.lane.b32.xlu0 %v638, 8
  %v1071 = vpop.permute.xlu0 %1070
  %1072 = vrot.lane.b32.xlu0 %v639, 8
  %v1073 = vpop.permute.xlu0 %1072
  %1074 = vrot.lane.b32.xlu0 %v640, 8
  %v1075 = vpop.permute.xlu0 %1074
  %1076 = vrot.lane.b32.xlu0 %v641, 8
  %v1077 = vpop.permute.xlu0 %1076
  %1078 = vrot.lane.b32.xlu0 %v642, 8
  %v1079 = vpop.permute.xlu0 %1078
  %1080 = vrot.lane.b32.xlu0 %v643, 8
  %v1081 = vpop.permute.xlu0 %1080
  %1082 = vrot.lane.b32.xlu0 %v644, 8
  %v1083 = vpop.permute.xlu0 %1082
  %1084 = vrot.lane.b32.xlu0 %v645, 8
  %v1085 = vpop.permute.xlu0 %1084
  %1086 = vrot.lane.b32.xlu0 %v646, 8
  %v1087 = vpop.permute.xlu0 %1086
  %1088 = vrot.lane.b32.xlu0 %v647, 8
  %v1089 = vpop.permute.xlu0 %1088
  %1090 = vrot.lane.b32.xlu0 %v648, 8
  %v1091 = vpop.permute.xlu0 %1090
  %1092 = vrot.lane.b32.xlu0 %v649, 8
  %v1093 = vpop.permute.xlu0 %1092
  %1094 = vrot.lane.b32.xlu0 %v650, 8
  %v1095 = vpop.permute.xlu0 %1094
  %1096 = vrot.lane.b32.xlu0 %v651, 8
  %v1097 = vpop.permute.xlu0 %1096
  %1098 = vrot.lane.b32.xlu0 %v652, 8
  %v1099 = vpop.permute.xlu0 %1098
  %1100 = vrot.lane.b32.xlu0 %v653, 8
  %v1101 = vpop.permute.xlu0 %1100
  %v1166 = vmul.f32 %v78, %v975
  %v1167 = vmul.f32 %v79, %v977
  %v1168 = vmul.f32 %v80, %v979
  %v1169 = vmul.f32 %v81, %v981
  %v1170 = vmul.f32 %v82, %v983
  %v1171 = vmul.f32 %v83, %v985
  %v1172 = vmul.f32 %v84, %v987
  %v1173 = vmul.f32 %v85, %v989
  %v1174 = vmul.f32 %v86, %v991
  %v1175 = vmul.f32 %v87, %v993
  %v1176 = vmul.f32 %v88, %v995
  %v1177 = vmul.f32 %v89, %v997
  %v1178 = vmul.f32 %v90, %v999
  %v1179 = vmul.f32 %v91, %v1001
  %v1180 = vmul.f32 %v92, %v1003
  %v1181 = vmul.f32 %v93, %v1005
  %v1182 = vmul.f32 %v94, %v1007
  %v1183 = vmul.f32 %v95, %v1009
  %v1184 = vmul.f32 %v96, %v1011
  %v1185 = vmul.f32 %v97, %v1013
  %v1186 = vmul.f32 %v98, %v1015
  %v1187 = vmul.f32 %v99, %v1017
  %v1188 = vmul.f32 %v100, %v1019
  %v1189 = vmul.f32 %v101, %v1021
  %v1190 = vmul.f32 %v102, %v1023
  %v1191 = vmul.f32 %v103, %v1025
  %v1192 = vmul.f32 %v104, %v1027
  %v1193 = vmul.f32 %v105, %v1029
  %v1194 = vmul.f32 %v106, %v1031
  %v1195 = vmul.f32 %v107, %v1033
  %v1196 = vmul.f32 %v108, %v1035
  %v1197 = vmul.f32 %v109, %v1037
  %v1198 = vmul.f32 %v110, %v1039
  %v1199 = vmul.f32 %v111, %v1041
  %v1200 = vmul.f32 %v112, %v1043
  %v1201 = vmul.f32 %v113, %v1045
  %v1202 = vmul.f32 %v114, %v1047
  %v1203 = vmul.f32 %v115, %v1049
  %v1204 = vmul.f32 %v116, %v1051
  %v1205 = vmul.f32 %v117, %v1053
  %v1206 = vmul.f32 %v118, %v1055
  %v1207 = vmul.f32 %v119, %v1057
  %v1208 = vmul.f32 %v120, %v1059
  %v1209 = vmul.f32 %v121, %v1061
  %v1210 = vmul.f32 %v122, %v1063
  %v1211 = vmul.f32 %v123, %v1065
  %v1212 = vmul.f32 %v124, %v1067
  %v1213 = vmul.f32 %v125, %v1069
  %v1214 = vmul.f32 %v126, %v1071
  %v1215 = vmul.f32 %v127, %v1073
  %v1216 = vmul.f32 %v128, %v1075
  %v1217 = vmul.f32 %v129, %v1077
  %v1218 = vmul.f32 %v130, %v1079
  %v1219 = vmul.f32 %v131, %v1081
  %v1220 = vmul.f32 %v132, %v1083
  %v1221 = vmul.f32 %v133, %v1085
  %v1222 = vmul.f32 %v134, %v1087
  %v1223 = vmul.f32 %v135, %v1089
  %v1224 = vmul.f32 %v136, %v1091
  %v1225 = vmul.f32 %v137, %v1093
  %v1226 = vmul.f32 %v138, %v1095
  %v1227 = vmul.f32 %v139, %v1097
  %v1228 = vmul.f32 %v140, %v1099
  %v1229 = vmul.f32 %v141, %v1101
  %1294 = vrot.lane.b32.xlu0 %v1166, 120
  %v1295 = vpop.permute.xlu0 %1294
  %1296 = vrot.lane.b32.xlu0 %v1167, 120
  %v1297 = vpop.permute.xlu0 %1296
  %1298 = vrot.lane.b32.xlu0 %v1168, 120
  %v1299 = vpop.permute.xlu0 %1298
  %1300 = vrot.lane.b32.xlu0 %v1169, 120
  %v1301 = vpop.permute.xlu0 %1300
  %1302 = vrot.lane.b32.xlu0 %v1170, 120
  %v1303 = vpop.permute.xlu0 %1302
  %1304 = vrot.lane.b32.xlu0 %v1171, 120
  %v1305 = vpop.permute.xlu0 %1304
  %1306 = vrot.lane.b32.xlu0 %v1172, 120
  %v1307 = vpop.permute.xlu0 %1306
  %1308 = vrot.lane.b32.xlu0 %v1173, 120
  %v1309 = vpop.permute.xlu0 %1308
  %1310 = vrot.lane.b32.xlu0 %v1174, 120
  %v1311 = vpop.permute.xlu0 %1310
  %1312 = vrot.lane.b32.xlu0 %v1175, 120
  %v1313 = vpop.permute.xlu0 %1312
  %1314 = vrot.lane.b32.xlu0 %v1176, 120
  %v1315 = vpop.permute.xlu0 %1314
  %1316 = vrot.lane.b32.xlu0 %v1177, 120
  %v1317 = vpop.permute.xlu0 %1316
  %1318 = vrot.lane.b32.xlu0 %v1178, 120
  %v1319 = vpop.permute.xlu0 %1318
  %1320 = vrot.lane.b32.xlu0 %v1179, 120
  %v1321 = vpop.permute.xlu0 %1320
  %1322 = vrot.lane.b32.xlu0 %v1180, 120
  %v1323 = vpop.permute.xlu0 %1322
  %1324 = vrot.lane.b32.xlu0 %v1181, 120
  %v1325 = vpop.permute.xlu0 %1324
  %1326 = vrot.lane.b32.xlu0 %v1182, 120
  %v1327 = vpop.permute.xlu0 %1326
  %1328 = vrot.lane.b32.xlu0 %v1183, 120
  %v1329 = vpop.permute.xlu0 %1328
  %1330 = vrot.lane.b32.xlu0 %v1184, 120
  %v1331 = vpop.permute.xlu0 %1330
  %1332 = vrot.lane.b32.xlu0 %v1185, 120
  %v1333 = vpop.permute.xlu0 %1332
  %1334 = vrot.lane.b32.xlu0 %v1186, 120
  %v1335 = vpop.permute.xlu0 %1334
  %1336 = vrot.lane.b32.xlu0 %v1187, 120
  %v1337 = vpop.permute.xlu0 %1336
  %1338 = vrot.lane.b32.xlu0 %v1188, 120
  %v1339 = vpop.permute.xlu0 %1338
  %1340 = vrot.lane.b32.xlu0 %v1189, 120
  %v1341 = vpop.permute.xlu0 %1340
  %1342 = vrot.lane.b32.xlu0 %v1190, 120
  %v1343 = vpop.permute.xlu0 %1342
  %1344 = vrot.lane.b32.xlu0 %v1191, 120
  %v1345 = vpop.permute.xlu0 %1344
  %1346 = vrot.lane.b32.xlu0 %v1192, 120
  %v1347 = vpop.permute.xlu0 %1346
  %1348 = vrot.lane.b32.xlu0 %v1193, 120
  %v1349 = vpop.permute.xlu0 %1348
  %1350 = vrot.lane.b32.xlu0 %v1194, 120
  %v1351 = vpop.permute.xlu0 %1350
  %1352 = vrot.lane.b32.xlu0 %v1195, 120
  %v1353 = vpop.permute.xlu0 %1352
  %1354 = vrot.lane.b32.xlu0 %v1196, 120
  %v1355 = vpop.permute.xlu0 %1354
  %1356 = vrot.lane.b32.xlu0 %v1197, 120
  %v1357 = vpop.permute.xlu0 %1356
  %1358 = vrot.lane.b32.xlu0 %v1198, 120
  %v1359 = vpop.permute.xlu0 %1358
  %1360 = vrot.lane.b32.xlu0 %v1199, 120
  %v1361 = vpop.permute.xlu0 %1360
  %1362 = vrot.lane.b32.xlu0 %v1200, 120
  %v1363 = vpop.permute.xlu0 %1362
  %1364 = vrot.lane.b32.xlu0 %v1201, 120
  %v1365 = vpop.permute.xlu0 %1364
  %1366 = vrot.lane.b32.xlu0 %v1202, 120
  %v1367 = vpop.permute.xlu0 %1366
  %1368 = vrot.lane.b32.xlu0 %v1203, 120
  %v1369 = vpop.permute.xlu0 %1368
  %1370 = vrot.lane.b32.xlu0 %v1204, 120
  %v1371 = vpop.permute.xlu0 %1370
  %1372 = vrot.lane.b32.xlu0 %v1205, 120
  %v1373 = vpop.permute.xlu0 %1372
  %1374 = vrot.lane.b32.xlu0 %v1206, 120
  %v1375 = vpop.permute.xlu0 %1374
  %1376 = vrot.lane.b32.xlu0 %v1207, 120
  %v1377 = vpop.permute.xlu0 %1376
  %1378 = vrot.lane.b32.xlu0 %v1208, 120
  %v1379 = vpop.permute.xlu0 %1378
  %1380 = vrot.lane.b32.xlu0 %v1209, 120
  %v1381 = vpop.permute.xlu0 %1380
  %1382 = vrot.lane.b32.xlu0 %v1210, 120
  %v1383 = vpop.permute.xlu0 %1382
  %1384 = vrot.lane.b32.xlu0 %v1211, 120
  %v1385 = vpop.permute.xlu0 %1384
  %1386 = vrot.lane.b32.xlu0 %v1212, 120
  %v1387 = vpop.permute.xlu0 %1386
  %1388 = vrot.lane.b32.xlu0 %v1213, 120
  %v1389 = vpop.permute.xlu0 %1388
  %1390 = vrot.lane.b32.xlu0 %v1214, 120
  %v1391 = vpop.permute.xlu0 %1390
  %1392 = vrot.lane.b32.xlu0 %v1215, 120
  %v1393 = vpop.permute.xlu0 %1392
  %1394 = vrot.lane.b32.xlu0 %v1216, 120
  %v1395 = vpop.permute.xlu0 %1394
  %1396 = vrot.lane.b32.xlu0 %v1217, 120
  %v1397 = vpop.permute.xlu0 %1396
  %1398 = vrot.lane.b32.xlu0 %v1218, 120
  %v1399 = vpop.permute.xlu0 %1398
  %1400 = vrot.lane.b32.xlu0 %v1219, 120
  %v1401 = vpop.permute.xlu0 %1400
  %1402 = vrot.lane.b32.xlu0 %v1220, 120
  %v1403 = vpop.permute.xlu0 %1402
  %1404 = vrot.lane.b32.xlu0 %v1221, 120
  %v1405 = vpop.permute.xlu0 %1404
  %1406 = vrot.lane.b32.xlu0 %v1222, 120
  %v1407 = vpop.permute.xlu0 %1406
  %1408 = vrot.lane.b32.xlu0 %v1223, 120
  %v1409 = vpop.permute.xlu0 %1408
  %1410 = vrot.lane.b32.xlu0 %v1224, 120
  %v1411 = vpop.permute.xlu0 %1410
  %1412 = vrot.lane.b32.xlu0 %v1225, 120
  %v1413 = vpop.permute.xlu0 %1412
  %1414 = vrot.lane.b32.xlu0 %v1226, 120
  %v1415 = vpop.permute.xlu0 %1414
  %1416 = vrot.lane.b32.xlu0 %v1227, 120
  %v1417 = vpop.permute.xlu0 %1416
  %1418 = vrot.lane.b32.xlu0 %v1228, 120
  %v1419 = vpop.permute.xlu0 %1418
  %1420 = vrot.lane.b32.xlu0 %v1229, 120
  %v1421 = vpop.permute.xlu0 %1420
  %v1486 = vsel %vm718, 0.0, %v1295
  %v1487 = vsel %vm719, 0.0, %v1297
  %v1488 = vsel %vm720, 0.0, %v1299
  %v1489 = vsel %vm721, 0.0, %v1301
  %v1490 = vsel %vm722, 0.0, %v1303
  %v1491 = vsel %vm723, 0.0, %v1305
  %v1492 = vsel %vm724, 0.0, %v1307
  %v1493 = vsel %vm725, 0.0, %v1309
  %v1494 = vsel %vm726, 0.0, %v1311
  %v1495 = vsel %vm727, 0.0, %v1313
  %v1496 = vsel %vm728, 0.0, %v1315
  %v1497 = vsel %vm729, 0.0, %v1317
  %v1498 = vsel %vm730, 0.0, %v1319
  %v1499 = vsel %vm731, 0.0, %v1321
  %v1500 = vsel %vm732, 0.0, %v1323
  %v1501 = vsel %vm733, 0.0, %v1325
  %v1502 = vsel %vm734, 0.0, %v1327
  %v1503 = vsel %vm735, 0.0, %v1329
  %v1504 = vsel %vm736, 0.0, %v1331
  %v1505 = vsel %vm737, 0.0, %v1333
  %v1506 = vsel %vm738, 0.0, %v1335
  %v1507 = vsel %vm739, 0.0, %v1337
  %v1508 = vsel %vm740, 0.0, %v1339
  %v1509 = vsel %vm741, 0.0, %v1341
  %v1510 = vsel %vm742, 0.0, %v1343
  %v1511 = vsel %vm743, 0.0, %v1345
  %v1512 = vsel %vm744, 0.0, %v1347
  %v1513 = vsel %vm745, 0.0, %v1349
  %v1514 = vsel %vm746, 0.0, %v1351
  %v1515 = vsel %vm747, 0.0, %v1353
  %v1516 = vsel %vm748, 0.0, %v1355
  %v1517 = vsel %vm749, 0.0, %v1357
  %v1518 = vsel %vm750, 0.0, %v1359
  %v1519 = vsel %vm751, 0.0, %v1361
  %v1520 = vsel %vm752, 0.0, %v1363
  %v1521 = vsel %vm753, 0.0, %v1365
  %v1522 = vsel %vm754, 0.0, %v1367
  %v1523 = vsel %vm755, 0.0, %v1369
  %v1524 = vsel %vm756, 0.0, %v1371
  %v1525 = vsel %vm757, 0.0, %v1373
  %v1526 = vsel %vm758, 0.0, %v1375
  %v1527 = vsel %vm759, 0.0, %v1377
  %v1528 = vsel %vm760, 0.0, %v1379
  %v1529 = vsel %vm761, 0.0, %v1381
  %v1530 = vsel %vm762, 0.0, %v1383
  %v1531 = vsel %vm763, 0.0, %v1385
  %v1532 = vsel %vm764, 0.0, %v1387
  %v1533 = vsel %vm765, 0.0, %v1389
  %v1534 = vsel %vm766, 0.0, %v1391
  %v1535 = vsel %vm767, 0.0, %v1393
  %v1536 = vsel %vm768, 0.0, %v1395
  %v1537 = vsel %vm769, 0.0, %v1397
  %v1538 = vsel %vm770, 0.0, %v1399
  %v1539 = vsel %vm771, 0.0, %v1401
  %v1540 = vsel %vm772, 0.0, %v1403
  %v1541 = vsel %vm773, 0.0, %v1405
  %v1542 = vsel %vm774, 0.0, %v1407
  %v1543 = vsel %vm775, 0.0, %v1409
  %v1544 = vsel %vm776, 0.0, %v1411
  %v1545 = vsel %vm777, 0.0, %v1413
  %v1546 = vsel %vm778, 0.0, %v1415
  %v1547 = vsel %vm779, 0.0, %v1417
  %v1548 = vsel %vm780, 0.0, %v1419
  %v1549 = vsel %vm781, 0.0, %v1421
  %v1550 = vld [vmem:[%s1] sm:$0x1]
  %v1552 = vlaneseq
  %v1553 = vshrl.u32 %v1552, 7
  %v1554 = vsub.s32 0, %v1553
  %v1555 = vrot.slane %v1550, %v1554
  %v1557 = vmul.f32 %v654, %v1555
  %v1558 = vmul.f32 %v655, %v1555
  %v1559 = vmul.f32 %v656, %v1555
  %v1560 = vmul.f32 %v657, %v1555
  %v1561 = vmul.f32 %v658, %v1555
  %v1562 = vmul.f32 %v659, %v1555
  %v1563 = vmul.f32 %v660, %v1555
  %v1564 = vmul.f32 %v661, %v1555
  %v1565 = vmul.f32 %v662, %v1555
  %v1566 = vmul.f32 %v663, %v1555
  %v1567 = vmul.f32 %v664, %v1555
  %v1568 = vmul.f32 %v665, %v1555
  %v1569 = vmul.f32 %v666, %v1555
  %v1570 = vmul.f32 %v667, %v1555
  %v1571 = vmul.f32 %v668, %v1555
  %v1572 = vmul.f32 %v669, %v1555
  %v1573 = vmul.f32 %v670, %v1555
  %v1574 = vmul.f32 %v671, %v1555
  %v1575 = vmul.f32 %v672, %v1555
  %v1576 = vmul.f32 %v673, %v1555
  %v1577 = vmul.f32 %v674, %v1555
  %v1578 = vmul.f32 %v675, %v1555
  %v1579 = vmul.f32 %v676, %v1555
  %v1580 = vmul.f32 %v677, %v1555
  %v1581 = vmul.f32 %v678, %v1555
  %v1582 = vmul.f32 %v679, %v1555
  %v1583 = vmul.f32 %v680, %v1555
  %v1584 = vmul.f32 %v681, %v1555
  %v1585 = vmul.f32 %v682, %v1555
  %v1586 = vmul.f32 %v683, %v1555
  %v1587 = vmul.f32 %v684, %v1555
  %v1588 = vmul.f32 %v685, %v1555
  %v1589 = vmul.f32 %v686, %v1555
  %v1590 = vmul.f32 %v687, %v1555
  %v1591 = vmul.f32 %v688, %v1555
  %v1592 = vmul.f32 %v689, %v1555
  %v1593 = vmul.f32 %v690, %v1555
  %v1594 = vmul.f32 %v691, %v1555
  %v1595 = vmul.f32 %v692, %v1555
  %v1596 = vmul.f32 %v693, %v1555
  %v1597 = vmul.f32 %v694, %v1555
  %v1598 = vmul.f32 %v695, %v1555
  %v1599 = vmul.f32 %v696, %v1555
  %v1600 = vmul.f32 %v697, %v1555
  %v1601 = vmul.f32 %v698, %v1555
  %v1602 = vmul.f32 %v699, %v1555
  %v1603 = vmul.f32 %v700, %v1555
  %v1604 = vmul.f32 %v701, %v1555
  %v1605 = vmul.f32 %v702, %v1555
  %v1606 = vmul.f32 %v703, %v1555
  %v1607 = vmul.f32 %v704, %v1555
  %v1608 = vmul.f32 %v705, %v1555
  %v1609 = vmul.f32 %v706, %v1555
  %v1610 = vmul.f32 %v707, %v1555
  %v1611 = vmul.f32 %v708, %v1555
  %v1612 = vmul.f32 %v709, %v1555
  %v1613 = vmul.f32 %v710, %v1555
  %v1614 = vmul.f32 %v711, %v1555
  %v1615 = vmul.f32 %v712, %v1555
  %v1616 = vmul.f32 %v713, %v1555
  %v1617 = vmul.f32 %v714, %v1555
  %v1618 = vmul.f32 %v715, %v1555
  %v1619 = vmul.f32 %v716, %v1555
  %v1620 = vmul.f32 %v717, %v1555
  %v1621 = vld [vmem:[%s2] sm:$0x1]
  %v1623 = vlaneseq
  %v1624 = vshrl.u32 %v1623, 7
  %v1625 = vsub.s32 0, %v1624
  %v1626 = vrot.slane %v1621, %v1625
  %v1628 = vadd.f32 %v1557, %v1626
  %v1629 = vadd.f32 %v1558, %v1626
  %v1630 = vadd.f32 %v1559, %v1626
  %v1631 = vadd.f32 %v1560, %v1626
  %v1632 = vadd.f32 %v1561, %v1626
  %v1633 = vadd.f32 %v1562, %v1626
  %v1634 = vadd.f32 %v1563, %v1626
  %v1635 = vadd.f32 %v1564, %v1626
  %v1636 = vadd.f32 %v1565, %v1626
  %v1637 = vadd.f32 %v1566, %v1626
  %v1638 = vadd.f32 %v1567, %v1626
  %v1639 = vadd.f32 %v1568, %v1626
  %v1640 = vadd.f32 %v1569, %v1626
  %v1641 = vadd.f32 %v1570, %v1626
  %v1642 = vadd.f32 %v1571, %v1626
  %v1643 = vadd.f32 %v1572, %v1626
  %v1644 = vadd.f32 %v1573, %v1626
  %v1645 = vadd.f32 %v1574, %v1626
  %v1646 = vadd.f32 %v1575, %v1626
  %v1647 = vadd.f32 %v1576, %v1626
  %v1648 = vadd.f32 %v1577, %v1626
  %v1649 = vadd.f32 %v1578, %v1626
  %v1650 = vadd.f32 %v1579, %v1626
  %v1651 = vadd.f32 %v1580, %v1626
  %v1652 = vadd.f32 %v1581, %v1626
  %v1653 = vadd.f32 %v1582, %v1626
  %v1654 = vadd.f32 %v1583, %v1626
  %v1655 = vadd.f32 %v1584, %v1626
  %v1656 = vadd.f32 %v1585, %v1626
  %v1657 = vadd.f32 %v1586, %v1626
  %v1658 = vadd.f32 %v1587, %v1626
  %v1659 = vadd.f32 %v1588, %v1626
  %v1660 = vadd.f32 %v1589, %v1626
  %v1661 = vadd.f32 %v1590, %v1626
  %v1662 = vadd.f32 %v1591, %v1626
  %v1663 = vadd.f32 %v1592, %v1626
  %v1664 = vadd.f32 %v1593, %v1626
  %v1665 = vadd.f32 %v1594, %v1626
  %v1666 = vadd.f32 %v1595, %v1626
  %v1667 = vadd.f32 %v1596, %v1626
  %v1668 = vadd.f32 %v1597, %v1626
  %v1669 = vadd.f32 %v1598, %v1626
  %v1670 = vadd.f32 %v1599, %v1626
  %v1671 = vadd.f32 %v1600, %v1626
  %v1672 = vadd.f32 %v1601, %v1626
  %v1673 = vadd.f32 %v1602, %v1626
  %v1674 = vadd.f32 %v1603, %v1626
  %v1675 = vadd.f32 %v1604, %v1626
  %v1676 = vadd.f32 %v1605, %v1626
  %v1677 = vadd.f32 %v1606, %v1626
  %v1678 = vadd.f32 %v1607, %v1626
  %v1679 = vadd.f32 %v1608, %v1626
  %v1680 = vadd.f32 %v1609, %v1626
  %v1681 = vadd.f32 %v1610, %v1626
  %v1682 = vadd.f32 %v1611, %v1626
  %v1683 = vadd.f32 %v1612, %v1626
  %v1684 = vadd.f32 %v1613, %v1626
  %v1685 = vadd.f32 %v1614, %v1626
  %v1686 = vadd.f32 %v1615, %v1626
  %v1687 = vadd.f32 %v1616, %v1626
  %v1688 = vadd.f32 %v1617, %v1626
  %v1689 = vadd.f32 %v1618, %v1626
  %v1690 = vadd.f32 %v1619, %v1626
  %v1691 = vadd.f32 %v1620, %v1626
  %v1692 = vmul.f32 %v1628, %v846
  %v1693 = vmul.f32 %v1629, %v847
  %v1694 = vmul.f32 %v1630, %v848
  %v1695 = vmul.f32 %v1631, %v849
  %v1696 = vmul.f32 %v1632, %v850
  %v1697 = vmul.f32 %v1633, %v851
  %v1698 = vmul.f32 %v1634, %v852
  %v1699 = vmul.f32 %v1635, %v853
  %v1700 = vmul.f32 %v1636, %v854
  %v1701 = vmul.f32 %v1637, %v855
  %v1702 = vmul.f32 %v1638, %v856
  %v1703 = vmul.f32 %v1639, %v857
  %v1704 = vmul.f32 %v1640, %v858
  %v1705 = vmul.f32 %v1641, %v859
  %v1706 = vmul.f32 %v1642, %v860
  %v1707 = vmul.f32 %v1643, %v861
  %v1708 = vmul.f32 %v1644, %v862
  %v1709 = vmul.f32 %v1645, %v863
  %v1710 = vmul.f32 %v1646, %v864
  %v1711 = vmul.f32 %v1647, %v865
  %v1712 = vmul.f32 %v1648, %v866
  %v1713 = vmul.f32 %v1649, %v867
  %v1714 = vmul.f32 %v1650, %v868
  %v1715 = vmul.f32 %v1651, %v869
  %v1716 = vmul.f32 %v1652, %v870
  %v1717 = vmul.f32 %v1653, %v871
  %v1718 = vmul.f32 %v1654, %v872
  %v1719 = vmul.f32 %v1655, %v873
  %v1720 = vmul.f32 %v1656, %v874
  %v1721 = vmul.f32 %v1657, %v875
  %v1722 = vmul.f32 %v1658, %v876
  %v1723 = vmul.f32 %v1659, %v877
  %v1724 = vmul.f32 %v1660, %v878
  %v1725 = vmul.f32 %v1661, %v879
  %v1726 = vmul.f32 %v1662, %v880
  %v1727 = vmul.f32 %v1663, %v881
  %v1728 = vmul.f32 %v1664, %v882
  %v1729 = vmul.f32 %v1665, %v883
  %v1730 = vmul.f32 %v1666, %v884
  %v1731 = vmul.f32 %v1667, %v885
  %v1732 = vmul.f32 %v1668, %v886
  %v1733 = vmul.f32 %v1669, %v887
  %v1734 = vmul.f32 %v1670, %v888
  %v1735 = vmul.f32 %v1671, %v889
  %v1736 = vmul.f32 %v1672, %v890
  %v1737 = vmul.f32 %v1673, %v891
  %v1738 = vmul.f32 %v1674, %v892
  %v1739 = vmul.f32 %v1675, %v893
  %v1740 = vmul.f32 %v1676, %v894
  %v1741 = vmul.f32 %v1677, %v895
  %v1742 = vmul.f32 %v1678, %v896
  %v1743 = vmul.f32 %v1679, %v897
  %v1744 = vmul.f32 %v1680, %v898
  %v1745 = vmul.f32 %v1681, %v899
  %v1746 = vmul.f32 %v1682, %v900
  %v1747 = vmul.f32 %v1683, %v901
  %v1748 = vmul.f32 %v1684, %v902
  %v1749 = vmul.f32 %v1685, %v903
  %v1750 = vmul.f32 %v1686, %v904
  %v1751 = vmul.f32 %v1687, %v905
  %v1752 = vmul.f32 %v1688, %v906
  %v1753 = vmul.f32 %v1689, %v907
  %v1754 = vmul.f32 %v1690, %v908
  %v1755 = vmul.f32 %v1691, %v909
  %v1756 = vmul.f32 %v1628, %v1486
  %v1757 = vmul.f32 %v1629, %v1487
  %v1758 = vmul.f32 %v1630, %v1488
  %v1759 = vmul.f32 %v1631, %v1489
  %v1760 = vmul.f32 %v1632, %v1490
  %v1761 = vmul.f32 %v1633, %v1491
  %v1762 = vmul.f32 %v1634, %v1492
  %v1763 = vmul.f32 %v1635, %v1493
  %v1764 = vmul.f32 %v1636, %v1494
  %v1765 = vmul.f32 %v1637, %v1495
  %v1766 = vmul.f32 %v1638, %v1496
  %v1767 = vmul.f32 %v1639, %v1497
  %v1768 = vmul.f32 %v1640, %v1498
  %v1769 = vmul.f32 %v1641, %v1499
  %v1770 = vmul.f32 %v1642, %v1500
  %v1771 = vmul.f32 %v1643, %v1501
  %v1772 = vmul.f32 %v1644, %v1502
  %v1773 = vmul.f32 %v1645, %v1503
  %v1774 = vmul.f32 %v1646, %v1504
  %v1775 = vmul.f32 %v1647, %v1505
  %v1776 = vmul.f32 %v1648, %v1506
  %v1777 = vmul.f32 %v1649, %v1507
  %v1778 = vmul.f32 %v1650, %v1508
  %v1779 = vmul.f32 %v1651, %v1509
  %v1780 = vmul.f32 %v1652, %v1510
  %v1781 = vmul.f32 %v1653, %v1511
  %v1782 = vmul.f32 %v1654, %v1512
  %v1783 = vmul.f32 %v1655, %v1513
  %v1784 = vmul.f32 %v1656, %v1514
  %v1785 = vmul.f32 %v1657, %v1515
  %v1786 = vmul.f32 %v1658, %v1516
  %v1787 = vmul.f32 %v1659, %v1517
  %v1788 = vmul.f32 %v1660, %v1518
  %v1789 = vmul.f32 %v1661, %v1519
  %v1790 = vmul.f32 %v1662, %v1520
  %v1791 = vmul.f32 %v1663, %v1521
  %v1792 = vmul.f32 %v1664, %v1522
  %v1793 = vmul.f32 %v1665, %v1523
  %v1794 = vmul.f32 %v1666, %v1524
  %v1795 = vmul.f32 %v1667, %v1525
  %v1796 = vmul.f32 %v1668, %v1526
  %v1797 = vmul.f32 %v1669, %v1527
  %v1798 = vmul.f32 %v1670, %v1528
  %v1799 = vmul.f32 %v1671, %v1529
  %v1800 = vmul.f32 %v1672, %v1530
  %v1801 = vmul.f32 %v1673, %v1531
  %v1802 = vmul.f32 %v1674, %v1532
  %v1803 = vmul.f32 %v1675, %v1533
  %v1804 = vmul.f32 %v1676, %v1534
  %v1805 = vmul.f32 %v1677, %v1535
  %v1806 = vmul.f32 %v1678, %v1536
  %v1807 = vmul.f32 %v1679, %v1537
  %v1808 = vmul.f32 %v1680, %v1538
  %v1809 = vmul.f32 %v1681, %v1539
  %v1810 = vmul.f32 %v1682, %v1540
  %v1811 = vmul.f32 %v1683, %v1541
  %v1812 = vmul.f32 %v1684, %v1542
  %v1813 = vmul.f32 %v1685, %v1543
  %v1814 = vmul.f32 %v1686, %v1544
  %v1815 = vmul.f32 %v1687, %v1545
  %v1816 = vmul.f32 %v1688, %v1546
  %v1817 = vmul.f32 %v1689, %v1547
  %v1818 = vmul.f32 %v1690, %v1548
  %v1819 = vmul.f32 %v1691, %v1549
  %vm1820 = vcmp.ge.f32.partialorder %v1692, 0.0
  %vm1821 = vcmp.ge.f32.partialorder %v1693, 0.0
  %vm1822 = vcmp.ge.f32.partialorder %v1694, 0.0
  %vm1823 = vcmp.ge.f32.partialorder %v1695, 0.0
  %vm1824 = vcmp.ge.f32.partialorder %v1696, 0.0
  %vm1825 = vcmp.ge.f32.partialorder %v1697, 0.0
  %vm1826 = vcmp.ge.f32.partialorder %v1698, 0.0
  %vm1827 = vcmp.ge.f32.partialorder %v1699, 0.0
  %vm1828 = vcmp.ge.f32.partialorder %v1700, 0.0
  %vm1829 = vcmp.ge.f32.partialorder %v1701, 0.0
  %vm1830 = vcmp.ge.f32.partialorder %v1702, 0.0
  %vm1831 = vcmp.ge.f32.partialorder %v1703, 0.0
  %vm1832 = vcmp.ge.f32.partialorder %v1704, 0.0
  %vm1833 = vcmp.ge.f32.partialorder %v1705, 0.0
  %vm1834 = vcmp.ge.f32.partialorder %v1706, 0.0
  %vm1835 = vcmp.ge.f32.partialorder %v1707, 0.0
  %vm1836 = vcmp.ge.f32.partialorder %v1708, 0.0
  %vm1837 = vcmp.ge.f32.partialorder %v1709, 0.0
  %vm1838 = vcmp.ge.f32.partialorder %v1710, 0.0
  %vm1839 = vcmp.ge.f32.partialorder %v1711, 0.0
  %vm1840 = vcmp.ge.f32.partialorder %v1712, 0.0
  %vm1841 = vcmp.ge.f32.partialorder %v1713, 0.0
  %vm1842 = vcmp.ge.f32.partialorder %v1714, 0.0
  %vm1843 = vcmp.ge.f32.partialorder %v1715, 0.0
  %vm1844 = vcmp.ge.f32.partialorder %v1716, 0.0
  %vm1845 = vcmp.ge.f32.partialorder %v1717, 0.0
  %vm1846 = vcmp.ge.f32.partialorder %v1718, 0.0
  %vm1847 = vcmp.ge.f32.partialorder %v1719, 0.0
  %vm1848 = vcmp.ge.f32.partialorder %v1720, 0.0
  %vm1849 = vcmp.ge.f32.partialorder %v1721, 0.0
  %vm1850 = vcmp.ge.f32.partialorder %v1722, 0.0
  %vm1851 = vcmp.ge.f32.partialorder %v1723, 0.0
  %vm1852 = vcmp.ge.f32.partialorder %v1724, 0.0
  %vm1853 = vcmp.ge.f32.partialorder %v1725, 0.0
  %vm1854 = vcmp.ge.f32.partialorder %v1726, 0.0
  %vm1855 = vcmp.ge.f32.partialorder %v1727, 0.0
  %vm1856 = vcmp.ge.f32.partialorder %v1728, 0.0
  %vm1857 = vcmp.ge.f32.partialorder %v1729, 0.0
  %vm1858 = vcmp.ge.f32.partialorder %v1730, 0.0
  %vm1859 = vcmp.ge.f32.partialorder %v1731, 0.0
  %vm1860 = vcmp.ge.f32.partialorder %v1732, 0.0
  %vm1861 = vcmp.ge.f32.partialorder %v1733, 0.0
  %vm1862 = vcmp.ge.f32.partialorder %v1734, 0.0
  %vm1863 = vcmp.ge.f32.partialorder %v1735, 0.0
  %vm1864 = vcmp.ge.f32.partialorder %v1736, 0.0
  %vm1865 = vcmp.ge.f32.partialorder %v1737, 0.0
  %vm1866 = vcmp.ge.f32.partialorder %v1738, 0.0
  %vm1867 = vcmp.ge.f32.partialorder %v1739, 0.0
  %vm1868 = vcmp.ge.f32.partialorder %v1740, 0.0
  %vm1869 = vcmp.ge.f32.partialorder %v1741, 0.0
  %vm1870 = vcmp.ge.f32.partialorder %v1742, 0.0
  %vm1871 = vcmp.ge.f32.partialorder %v1743, 0.0
  %vm1872 = vcmp.ge.f32.partialorder %v1744, 0.0
  %vm1873 = vcmp.ge.f32.partialorder %v1745, 0.0
  %vm1874 = vcmp.ge.f32.partialorder %v1746, 0.0
  %vm1875 = vcmp.ge.f32.partialorder %v1747, 0.0
  %vm1876 = vcmp.ge.f32.partialorder %v1748, 0.0
  %vm1877 = vcmp.ge.f32.partialorder %v1749, 0.0
  %vm1878 = vcmp.ge.f32.partialorder %v1750, 0.0
  %vm1879 = vcmp.ge.f32.partialorder %v1751, 0.0
  %vm1880 = vcmp.ge.f32.partialorder %v1752, 0.0
  %vm1881 = vcmp.ge.f32.partialorder %v1753, 0.0
  %vm1882 = vcmp.ge.f32.partialorder %v1754, 0.0
  %vm1883 = vcmp.ge.f32.partialorder %v1755, 0.0
  %v1884 = vmul.f32 %v1692, 0.1
  %v1885 = vmul.f32 %v1693, 0.1
  %v1886 = vmul.f32 %v1694, 0.1
  %v1887 = vmul.f32 %v1695, 0.1
  %v1888 = vmul.f32 %v1696, 0.1
  %v1889 = vmul.f32 %v1697, 0.1
  %v1890 = vmul.f32 %v1698, 0.1
  %v1891 = vmul.f32 %v1699, 0.1
  %v1892 = vmul.f32 %v1700, 0.1
  %v1893 = vmul.f32 %v1701, 0.1
  %v1894 = vmul.f32 %v1702, 0.1
  %v1895 = vmul.f32 %v1703, 0.1
  %v1896 = vmul.f32 %v1704, 0.1
  %v1897 = vmul.f32 %v1705, 0.1
  %v1898 = vmul.f32 %v1706, 0.1
  %v1899 = vmul.f32 %v1707, 0.1
  %v1900 = vmul.f32 %v1708, 0.1
  %v1901 = vmul.f32 %v1709, 0.1
  %v1902 = vmul.f32 %v1710, 0.1
  %v1903 = vmul.f32 %v1711, 0.1
  %v1904 = vmul.f32 %v1712, 0.1
  %v1905 = vmul.f32 %v1713, 0.1
  %v1906 = vmul.f32 %v1714, 0.1
  %v1907 = vmul.f32 %v1715, 0.1
  %v1908 = vmul.f32 %v1716, 0.1
  %v1909 = vmul.f32 %v1717, 0.1
  %v1910 = vmul.f32 %v1718, 0.1
  %v1911 = vmul.f32 %v1719, 0.1
  %v1912 = vmul.f32 %v1720, 0.1
  %v1913 = vmul.f32 %v1721, 0.1
  %v1914 = vmul.f32 %v1722, 0.1
  %v1915 = vmul.f32 %v1723, 0.1
  %v1916 = vmul.f32 %v1724, 0.1
  %v1917 = vmul.f32 %v1725, 0.1
  %v1918 = vmul.f32 %v1726, 0.1
  %v1919 = vmul.f32 %v1727, 0.1
  %v1920 = vmul.f32 %v1728, 0.1
  %v1921 = vmul.f32 %v1729, 0.1
  %v1922 = vmul.f32 %v1730, 0.1
  %v1923 = vmul.f32 %v1731, 0.1
  %v1924 = vmul.f32 %v1732, 0.1
  %v1925 = vmul.f32 %v1733, 0.1
  %v1926 = vmul.f32 %v1734, 0.1
  %v1927 = vmul.f32 %v1735, 0.1
  %v1928 = vmul.f32 %v1736, 0.1
  %v1929 = vmul.f32 %v1737, 0.1
  %v1930 = vmul.f32 %v1738, 0.1
  %v1931 = vmul.f32 %v1739, 0.1
  %v1932 = vmul.f32 %v1740, 0.1
  %v1933 = vmul.f32 %v1741, 0.1
  %v1934 = vmul.f32 %v1742, 0.1
  %v1935 = vmul.f32 %v1743, 0.1
  %v1936 = vmul.f32 %v1744, 0.1
  %v1937 = vmul.f32 %v1745, 0.1
  %v1938 = vmul.f32 %v1746, 0.1
  %v1939 = vmul.f32 %v1747, 0.1
  %v1940 = vmul.f32 %v1748, 0.1
  %v1941 = vmul.f32 %v1749, 0.1
  %v1942 = vmul.f32 %v1750, 0.1
  %v1943 = vmul.f32 %v1751, 0.1
  %v1944 = vmul.f32 %v1752, 0.1
  %v1945 = vmul.f32 %v1753, 0.1
  %v1946 = vmul.f32 %v1754, 0.1
  %v1947 = vmul.f32 %v1755, 0.1
  %v1948 = vsel %vm1820, %v1692, %v1884
  %v1949 = vsel %vm1821, %v1693, %v1885
  %v1950 = vsel %vm1822, %v1694, %v1886
  %v1951 = vsel %vm1823, %v1695, %v1887
  %v1952 = vsel %vm1824, %v1696, %v1888
  %v1953 = vsel %vm1825, %v1697, %v1889
  %v1954 = vsel %vm1826, %v1698, %v1890
  %v1955 = vsel %vm1827, %v1699, %v1891
  %v1956 = vsel %vm1828, %v1700, %v1892
  %v1957 = vsel %vm1829, %v1701, %v1893
  %v1958 = vsel %vm1830, %v1702, %v1894
  %v1959 = vsel %vm1831, %v1703, %v1895
  %v1960 = vsel %vm1832, %v1704, %v1896
  %v1961 = vsel %vm1833, %v1705, %v1897
  %v1962 = vsel %vm1834, %v1706, %v1898
  %v1963 = vsel %vm1835, %v1707, %v1899
  %v1964 = vsel %vm1836, %v1708, %v1900
  %v1965 = vsel %vm1837, %v1709, %v1901
  %v1966 = vsel %vm1838, %v1710, %v1902
  %v1967 = vsel %vm1839, %v1711, %v1903
  %v1968 = vsel %vm1840, %v1712, %v1904
  %v1969 = vsel %vm1841, %v1713, %v1905
  %v1970 = vsel %vm1842, %v1714, %v1906
  %v1971 = vsel %vm1843, %v1715, %v1907
  %v1972 = vsel %vm1844, %v1716, %v1908
  %v1973 = vsel %vm1845, %v1717, %v1909
  %v1974 = vsel %vm1846, %v1718, %v1910
  %v1975 = vsel %vm1847, %v1719, %v1911
  %v1976 = vsel %vm1848, %v1720, %v1912
  %v1977 = vsel %vm1849, %v1721, %v1913
  %v1978 = vsel %vm1850, %v1722, %v1914
  %v1979 = vsel %vm1851, %v1723, %v1915
  %v1980 = vsel %vm1852, %v1724, %v1916
  %v1981 = vsel %vm1853, %v1725, %v1917
  %v1982 = vsel %vm1854, %v1726, %v1918
  %v1983 = vsel %vm1855, %v1727, %v1919
  %v1984 = vsel %vm1856, %v1728, %v1920
  %v1985 = vsel %vm1857, %v1729, %v1921
  %v1986 = vsel %vm1858, %v1730, %v1922
  %v1987 = vsel %vm1859, %v1731, %v1923
  %v1988 = vsel %vm1860, %v1732, %v1924
  %v1989 = vsel %vm1861, %v1733, %v1925
  %v1990 = vsel %vm1862, %v1734, %v1926
  %v1991 = vsel %vm1863, %v1735, %v1927
  %v1992 = vsel %vm1864, %v1736, %v1928
  %v1993 = vsel %vm1865, %v1737, %v1929
  %v1994 = vsel %vm1866, %v1738, %v1930
  %v1995 = vsel %vm1867, %v1739, %v1931
  %v1996 = vsel %vm1868, %v1740, %v1932
  %v1997 = vsel %vm1869, %v1741, %v1933
  %v1998 = vsel %vm1870, %v1742, %v1934
  %v1999 = vsel %vm1871, %v1743, %v1935
  %v2000 = vsel %vm1872, %v1744, %v1936
  %v2001 = vsel %vm1873, %v1745, %v1937
  %v2002 = vsel %vm1874, %v1746, %v1938
  %v2003 = vsel %vm1875, %v1747, %v1939
  %v2004 = vsel %vm1876, %v1748, %v1940
  %v2005 = vsel %vm1877, %v1749, %v1941
  %v2006 = vsel %vm1878, %v1750, %v1942
  %v2007 = vsel %vm1879, %v1751, %v1943
  %v2008 = vsel %vm1880, %v1752, %v1944
  %v2009 = vsel %vm1881, %v1753, %v1945
  %v2010 = vsel %vm1882, %v1754, %v1946
  %v2011 = vsel %vm1883, %v1755, %v1947
  %vm2012 = vcmp.ge.f32.partialorder %v1756, 0.0
  %vm2013 = vcmp.ge.f32.partialorder %v1757, 0.0
  %vm2014 = vcmp.ge.f32.partialorder %v1758, 0.0
  %vm2015 = vcmp.ge.f32.partialorder %v1759, 0.0
  %vm2016 = vcmp.ge.f32.partialorder %v1760, 0.0
  %vm2017 = vcmp.ge.f32.partialorder %v1761, 0.0
  %vm2018 = vcmp.ge.f32.partialorder %v1762, 0.0
  %vm2019 = vcmp.ge.f32.partialorder %v1763, 0.0
  %vm2020 = vcmp.ge.f32.partialorder %v1764, 0.0
  %vm2021 = vcmp.ge.f32.partialorder %v1765, 0.0
  %vm2022 = vcmp.ge.f32.partialorder %v1766, 0.0
  %vm2023 = vcmp.ge.f32.partialorder %v1767, 0.0
  %vm2024 = vcmp.ge.f32.partialorder %v1768, 0.0
  %vm2025 = vcmp.ge.f32.partialorder %v1769, 0.0
  %vm2026 = vcmp.ge.f32.partialorder %v1770, 0.0
  %vm2027 = vcmp.ge.f32.partialorder %v1771, 0.0
  %vm2028 = vcmp.ge.f32.partialorder %v1772, 0.0
  %vm2029 = vcmp.ge.f32.partialorder %v1773, 0.0
  %vm2030 = vcmp.ge.f32.partialorder %v1774, 0.0
  %vm2031 = vcmp.ge.f32.partialorder %v1775, 0.0
  %vm2032 = vcmp.ge.f32.partialorder %v1776, 0.0
  %vm2033 = vcmp.ge.f32.partialorder %v1777, 0.0
  %vm2034 = vcmp.ge.f32.partialorder %v1778, 0.0
  %vm2035 = vcmp.ge.f32.partialorder %v1779, 0.0
  %vm2036 = vcmp.ge.f32.partialorder %v1780, 0.0
  %vm2037 = vcmp.ge.f32.partialorder %v1781, 0.0
  %vm2038 = vcmp.ge.f32.partialorder %v1782, 0.0
  %vm2039 = vcmp.ge.f32.partialorder %v1783, 0.0
  %vm2040 = vcmp.ge.f32.partialorder %v1784, 0.0
  %vm2041 = vcmp.ge.f32.partialorder %v1785, 0.0
  %vm2042 = vcmp.ge.f32.partialorder %v1786, 0.0
  %vm2043 = vcmp.ge.f32.partialorder %v1787, 0.0
  %vm2044 = vcmp.ge.f32.partialorder %v1788, 0.0
  %vm2045 = vcmp.ge.f32.partialorder %v1789, 0.0
  %vm2046 = vcmp.ge.f32.partialorder %v1790, 0.0
  %vm2047 = vcmp.ge.f32.partialorder %v1791, 0.0
  %vm2048 = vcmp.ge.f32.partialorder %v1792, 0.0
  %vm2049 = vcmp.ge.f32.partialorder %v1793, 0.0
  %vm2050 = vcmp.ge.f32.partialorder %v1794, 0.0
  %vm2051 = vcmp.ge.f32.partialorder %v1795, 0.0
  %vm2052 = vcmp.ge.f32.partialorder %v1796, 0.0
  %vm2053 = vcmp.ge.f32.partialorder %v1797, 0.0
  %vm2054 = vcmp.ge.f32.partialorder %v1798, 0.0
  %vm2055 = vcmp.ge.f32.partialorder %v1799, 0.0
  %vm2056 = vcmp.ge.f32.partialorder %v1800, 0.0
  %vm2057 = vcmp.ge.f32.partialorder %v1801, 0.0
  %vm2058 = vcmp.ge.f32.partialorder %v1802, 0.0
  %vm2059 = vcmp.ge.f32.partialorder %v1803, 0.0
  %vm2060 = vcmp.ge.f32.partialorder %v1804, 0.0
  %vm2061 = vcmp.ge.f32.partialorder %v1805, 0.0
  %vm2062 = vcmp.ge.f32.partialorder %v1806, 0.0
  %vm2063 = vcmp.ge.f32.partialorder %v1807, 0.0
  %vm2064 = vcmp.ge.f32.partialorder %v1808, 0.0
  %vm2065 = vcmp.ge.f32.partialorder %v1809, 0.0
  %vm2066 = vcmp.ge.f32.partialorder %v1810, 0.0
  %vm2067 = vcmp.ge.f32.partialorder %v1811, 0.0
  %vm2068 = vcmp.ge.f32.partialorder %v1812, 0.0
  %vm2069 = vcmp.ge.f32.partialorder %v1813, 0.0
  %vm2070 = vcmp.ge.f32.partialorder %v1814, 0.0
  %vm2071 = vcmp.ge.f32.partialorder %v1815, 0.0
  %vm2072 = vcmp.ge.f32.partialorder %v1816, 0.0
  %vm2073 = vcmp.ge.f32.partialorder %v1817, 0.0
  %vm2074 = vcmp.ge.f32.partialorder %v1818, 0.0
  %vm2075 = vcmp.ge.f32.partialorder %v1819, 0.0
  %v2076 = vmul.f32 %v1756, 0.1
  %v2077 = vmul.f32 %v1757, 0.1
  %v2078 = vmul.f32 %v1758, 0.1
  %v2079 = vmul.f32 %v1759, 0.1
  %v2080 = vmul.f32 %v1760, 0.1
  %v2081 = vmul.f32 %v1761, 0.1
  %v2082 = vmul.f32 %v1762, 0.1
  %v2083 = vmul.f32 %v1763, 0.1
  %v2084 = vmul.f32 %v1764, 0.1
  %v2085 = vmul.f32 %v1765, 0.1
  %v2086 = vmul.f32 %v1766, 0.1
  %v2087 = vmul.f32 %v1767, 0.1
  %v2088 = vmul.f32 %v1768, 0.1
  %v2089 = vmul.f32 %v1769, 0.1
  %v2090 = vmul.f32 %v1770, 0.1
  %v2091 = vmul.f32 %v1771, 0.1
  %v2092 = vmul.f32 %v1772, 0.1
  %v2093 = vmul.f32 %v1773, 0.1
  %v2094 = vmul.f32 %v1774, 0.1
  %v2095 = vmul.f32 %v1775, 0.1
  %v2096 = vmul.f32 %v1776, 0.1
  %v2097 = vmul.f32 %v1777, 0.1
  %v2098 = vmul.f32 %v1778, 0.1
  %v2099 = vmul.f32 %v1779, 0.1
  %v2100 = vmul.f32 %v1780, 0.1
  %v2101 = vmul.f32 %v1781, 0.1
  %v2102 = vmul.f32 %v1782, 0.1
  %v2103 = vmul.f32 %v1783, 0.1
  %v2104 = vmul.f32 %v1784, 0.1
  %v2105 = vmul.f32 %v1785, 0.1
  %v2106 = vmul.f32 %v1786, 0.1
  %v2107 = vmul.f32 %v1787, 0.1
  %v2108 = vmul.f32 %v1788, 0.1
  %v2109 = vmul.f32 %v1789, 0.1
  %v2110 = vmul.f32 %v1790, 0.1
  %v2111 = vmul.f32 %v1791, 0.1
  %v2112 = vmul.f32 %v1792, 0.1
  %v2113 = vmul.f32 %v1793, 0.1
  %v2114 = vmul.f32 %v1794, 0.1
  %v2115 = vmul.f32 %v1795, 0.1
  %v2116 = vmul.f32 %v1796, 0.1
  %v2117 = vmul.f32 %v1797, 0.1
  %v2118 = vmul.f32 %v1798, 0.1
  %v2119 = vmul.f32 %v1799, 0.1
  %v2120 = vmul.f32 %v1800, 0.1
  %v2121 = vmul.f32 %v1801, 0.1
  %v2122 = vmul.f32 %v1802, 0.1
  %v2123 = vmul.f32 %v1803, 0.1
  %v2124 = vmul.f32 %v1804, 0.1
  %v2125 = vmul.f32 %v1805, 0.1
  %v2126 = vmul.f32 %v1806, 0.1
  %v2127 = vmul.f32 %v1807, 0.1
  %v2128 = vmul.f32 %v1808, 0.1
  %v2129 = vmul.f32 %v1809, 0.1
  %v2130 = vmul.f32 %v1810, 0.1
  %v2131 = vmul.f32 %v1811, 0.1
  %v2132 = vmul.f32 %v1812, 0.1
  %v2133 = vmul.f32 %v1813, 0.1
  %v2134 = vmul.f32 %v1814, 0.1
  %v2135 = vmul.f32 %v1815, 0.1
  %v2136 = vmul.f32 %v1816, 0.1
  %v2137 = vmul.f32 %v1817, 0.1
  %v2138 = vmul.f32 %v1818, 0.1
  %v2139 = vmul.f32 %v1819, 0.1
  %v2140 = vsel %vm2012, %v1756, %v2076
  %v2141 = vsel %vm2013, %v1757, %v2077
  %v2142 = vsel %vm2014, %v1758, %v2078
  %v2143 = vsel %vm2015, %v1759, %v2079
  %v2144 = vsel %vm2016, %v1760, %v2080
  %v2145 = vsel %vm2017, %v1761, %v2081
  %v2146 = vsel %vm2018, %v1762, %v2082
  %v2147 = vsel %vm2019, %v1763, %v2083
  %v2148 = vsel %vm2020, %v1764, %v2084
  %v2149 = vsel %vm2021, %v1765, %v2085
  %v2150 = vsel %vm2022, %v1766, %v2086
  %v2151 = vsel %vm2023, %v1767, %v2087
  %v2152 = vsel %vm2024, %v1768, %v2088
  %v2153 = vsel %vm2025, %v1769, %v2089
  %v2154 = vsel %vm2026, %v1770, %v2090
  %v2155 = vsel %vm2027, %v1771, %v2091
  %v2156 = vsel %vm2028, %v1772, %v2092
  %v2157 = vsel %vm2029, %v1773, %v2093
  %v2158 = vsel %vm2030, %v1774, %v2094
  %v2159 = vsel %vm2031, %v1775, %v2095
  %v2160 = vsel %vm2032, %v1776, %v2096
  %v2161 = vsel %vm2033, %v1777, %v2097
  %v2162 = vsel %vm2034, %v1778, %v2098
  %v2163 = vsel %vm2035, %v1779, %v2099
  %v2164 = vsel %vm2036, %v1780, %v2100
  %v2165 = vsel %vm2037, %v1781, %v2101
  %v2166 = vsel %vm2038, %v1782, %v2102
  %v2167 = vsel %vm2039, %v1783, %v2103
  %v2168 = vsel %vm2040, %v1784, %v2104
  %v2169 = vsel %vm2041, %v1785, %v2105
  %v2170 = vsel %vm2042, %v1786, %v2106
  %v2171 = vsel %vm2043, %v1787, %v2107
  %v2172 = vsel %vm2044, %v1788, %v2108
  %v2173 = vsel %vm2045, %v1789, %v2109
  %v2174 = vsel %vm2046, %v1790, %v2110
  %v2175 = vsel %vm2047, %v1791, %v2111
  %v2176 = vsel %vm2048, %v1792, %v2112
  %v2177 = vsel %vm2049, %v1793, %v2113
  %v2178 = vsel %vm2050, %v1794, %v2114
  %v2179 = vsel %vm2051, %v1795, %v2115
  %v2180 = vsel %vm2052, %v1796, %v2116
  %v2181 = vsel %vm2053, %v1797, %v2117
  %v2182 = vsel %vm2054, %v1798, %v2118
  %v2183 = vsel %vm2055, %v1799, %v2119
  %v2184 = vsel %vm2056, %v1800, %v2120
  %v2185 = vsel %vm2057, %v1801, %v2121
  %v2186 = vsel %vm2058, %v1802, %v2122
  %v2187 = vsel %vm2059, %v1803, %v2123
  %v2188 = vsel %vm2060, %v1804, %v2124
  %v2189 = vsel %vm2061, %v1805, %v2125
  %v2190 = vsel %vm2062, %v1806, %v2126
  %v2191 = vsel %vm2063, %v1807, %v2127
  %v2192 = vsel %vm2064, %v1808, %v2128
  %v2193 = vsel %vm2065, %v1809, %v2129
  %v2194 = vsel %vm2066, %v1810, %v2130
  %v2195 = vsel %vm2067, %v1811, %v2131
  %v2196 = vsel %vm2068, %v1812, %v2132
  %v2197 = vsel %vm2069, %v1813, %v2133
  %v2198 = vsel %vm2070, %v1814, %v2134
  %v2199 = vsel %vm2071, %v1815, %v2135
  %v2200 = vsel %vm2072, %v1816, %v2136
  %v2201 = vsel %vm2073, %v1817, %v2137
  %v2202 = vsel %vm2074, %v1818, %v2138
  %v2203 = vsel %vm2075, %v1819, %v2139
  %2268 = vrot.lane.b32.xlu0 %v2140, 8
  %v2269 = vpop.permute.xlu0 %2268
  %2270 = vrot.lane.b32.xlu0 %v2141, 8
  %v2271 = vpop.permute.xlu0 %2270
  %2272 = vrot.lane.b32.xlu0 %v2142, 8
  %v2273 = vpop.permute.xlu0 %2272
  %2274 = vrot.lane.b32.xlu0 %v2143, 8
  %v2275 = vpop.permute.xlu0 %2274
  %2276 = vrot.lane.b32.xlu0 %v2144, 8
  %v2277 = vpop.permute.xlu0 %2276
  %2278 = vrot.lane.b32.xlu0 %v2145, 8
  %v2279 = vpop.permute.xlu0 %2278
  %2280 = vrot.lane.b32.xlu0 %v2146, 8
  %v2281 = vpop.permute.xlu0 %2280
  %2282 = vrot.lane.b32.xlu0 %v2147, 8
  %v2283 = vpop.permute.xlu0 %2282
  %2284 = vrot.lane.b32.xlu0 %v2148, 8
  %v2285 = vpop.permute.xlu0 %2284
  %2286 = vrot.lane.b32.xlu0 %v2149, 8
  %v2287 = vpop.permute.xlu0 %2286
  %2288 = vrot.lane.b32.xlu0 %v2150, 8
  %v2289 = vpop.permute.xlu0 %2288
  %2290 = vrot.lane.b32.xlu0 %v2151, 8
  %v2291 = vpop.permute.xlu0 %2290
  %2292 = vrot.lane.b32.xlu0 %v2152, 8
  %v2293 = vpop.permute.xlu0 %2292
  %2294 = vrot.lane.b32.xlu0 %v2153, 8
  %v2295 = vpop.permute.xlu0 %2294
  %2296 = vrot.lane.b32.xlu0 %v2154, 8
  %v2297 = vpop.permute.xlu0 %2296
  %2298 = vrot.lane.b32.xlu0 %v2155, 8
  %v2299 = vpop.permute.xlu0 %2298
  %2300 = vrot.lane.b32.xlu0 %v2156, 8
  %v2301 = vpop.permute.xlu0 %2300
  %2302 = vrot.lane.b32.xlu0 %v2157, 8
  %v2303 = vpop.permute.xlu0 %2302
  %2304 = vrot.lane.b32.xlu0 %v2158, 8
  %v2305 = vpop.permute.xlu0 %2304
  %2306 = vrot.lane.b32.xlu0 %v2159, 8
  %v2307 = vpop.permute.xlu0 %2306
  %2308 = vrot.lane.b32.xlu0 %v2160, 8
  %v2309 = vpop.permute.xlu0 %2308
  %2310 = vrot.lane.b32.xlu0 %v2161, 8
  %v2311 = vpop.permute.xlu0 %2310
  %2312 = vrot.lane.b32.xlu0 %v2162, 8
  %v2313 = vpop.permute.xlu0 %2312
  %2314 = vrot.lane.b32.xlu0 %v2163, 8
  %v2315 = vpop.permute.xlu0 %2314
  %2316 = vrot.lane.b32.xlu0 %v2164, 8
  %v2317 = vpop.permute.xlu0 %2316
  %2318 = vrot.lane.b32.xlu0 %v2165, 8
  %v2319 = vpop.permute.xlu0 %2318
  %2320 = vrot.lane.b32.xlu0 %v2166, 8
  %v2321 = vpop.permute.xlu0 %2320
  %2322 = vrot.lane.b32.xlu0 %v2167, 8
  %v2323 = vpop.permute.xlu0 %2322
  %2324 = vrot.lane.b32.xlu0 %v2168, 8
  %v2325 = vpop.permute.xlu0 %2324
  %2326 = vrot.lane.b32.xlu0 %v2169, 8
  %v2327 = vpop.permute.xlu0 %2326
  %2328 = vrot.lane.b32.xlu0 %v2170, 8
  %v2329 = vpop.permute.xlu0 %2328
  %2330 = vrot.lane.b32.xlu0 %v2171, 8
  %v2331 = vpop.permute.xlu0 %2330
  %2332 = vrot.lane.b32.xlu0 %v2172, 8
  %v2333 = vpop.permute.xlu0 %2332
  %2334 = vrot.lane.b32.xlu0 %v2173, 8
  %v2335 = vpop.permute.xlu0 %2334
  %2336 = vrot.lane.b32.xlu0 %v2174, 8
  %v2337 = vpop.permute.xlu0 %2336
  %2338 = vrot.lane.b32.xlu0 %v2175, 8
  %v2339 = vpop.permute.xlu0 %2338
  %2340 = vrot.lane.b32.xlu0 %v2176, 8
  %v2341 = vpop.permute.xlu0 %2340
  %2342 = vrot.lane.b32.xlu0 %v2177, 8
  %v2343 = vpop.permute.xlu0 %2342
  %2344 = vrot.lane.b32.xlu0 %v2178, 8
  %v2345 = vpop.permute.xlu0 %2344
  %2346 = vrot.lane.b32.xlu0 %v2179, 8
  %v2347 = vpop.permute.xlu0 %2346
  %2348 = vrot.lane.b32.xlu0 %v2180, 8
  %v2349 = vpop.permute.xlu0 %2348
  %2350 = vrot.lane.b32.xlu0 %v2181, 8
  %v2351 = vpop.permute.xlu0 %2350
  %2352 = vrot.lane.b32.xlu0 %v2182, 8
  %v2353 = vpop.permute.xlu0 %2352
  %2354 = vrot.lane.b32.xlu0 %v2183, 8
  %v2355 = vpop.permute.xlu0 %2354
  %2356 = vrot.lane.b32.xlu0 %v2184, 8
  %v2357 = vpop.permute.xlu0 %2356
  %2358 = vrot.lane.b32.xlu0 %v2185, 8
  %v2359 = vpop.permute.xlu0 %2358
  %2360 = vrot.lane.b32.xlu0 %v2186, 8
  %v2361 = vpop.permute.xlu0 %2360
  %2362 = vrot.lane.b32.xlu0 %v2187, 8
  %v2363 = vpop.permute.xlu0 %2362
  %2364 = vrot.lane.b32.xlu0 %v2188, 8
  %v2365 = vpop.permute.xlu0 %2364
  %2366 = vrot.lane.b32.xlu0 %v2189, 8
  %v2367 = vpop.permute.xlu0 %2366
  %2368 = vrot.lane.b32.xlu0 %v2190, 8
  %v2369 = vpop.permute.xlu0 %2368
  %2370 = vrot.lane.b32.xlu0 %v2191, 8
  %v2371 = vpop.permute.xlu0 %2370
  %2372 = vrot.lane.b32.xlu0 %v2192, 8
  %v2373 = vpop.permute.xlu0 %2372
  %2374 = vrot.lane.b32.xlu0 %v2193, 8
  %v2375 = vpop.permute.xlu0 %2374
  %2376 = vrot.lane.b32.xlu0 %v2194, 8
  %v2377 = vpop.permute.xlu0 %2376
  %2378 = vrot.lane.b32.xlu0 %v2195, 8
  %v2379 = vpop.permute.xlu0 %2378
  %2380 = vrot.lane.b32.xlu0 %v2196, 8
  %v2381 = vpop.permute.xlu0 %2380
  %2382 = vrot.lane.b32.xlu0 %v2197, 8
  %v2383 = vpop.permute.xlu0 %2382
  %2384 = vrot.lane.b32.xlu0 %v2198, 8
  %v2385 = vpop.permute.xlu0 %2384
  %2386 = vrot.lane.b32.xlu0 %v2199, 8
  %v2387 = vpop.permute.xlu0 %2386
  %2388 = vrot.lane.b32.xlu0 %v2200, 8
  %v2389 = vpop.permute.xlu0 %2388
  %2390 = vrot.lane.b32.xlu0 %v2201, 8
  %v2391 = vpop.permute.xlu0 %2390
  %2392 = vrot.lane.b32.xlu0 %v2202, 8
  %v2393 = vpop.permute.xlu0 %2392
  %2394 = vrot.lane.b32.xlu0 %v2203, 8
  %v2395 = vpop.permute.xlu0 %2394
  %vm2460 = vcmask 64512
  %v2461 = vsel %vm2460, %v1948, %v2269
  %v2462 = vsel %vm2460, %v1949, %v2271
  %v2463 = vsel %vm2460, %v1950, %v2273
  %v2464 = vsel %vm2460, %v1951, %v2275
  %v2465 = vsel %vm2460, %v1952, %v2277
  %v2466 = vsel %vm2460, %v1953, %v2279
  %v2467 = vsel %vm2460, %v1954, %v2281
  %v2468 = vsel %vm2460, %v1955, %v2283
  %v2469 = vsel %vm2460, %v1956, %v2285
  %v2470 = vsel %vm2460, %v1957, %v2287
  %v2471 = vsel %vm2460, %v1958, %v2289
  %v2472 = vsel %vm2460, %v1959, %v2291
  %v2473 = vsel %vm2460, %v1960, %v2293
  %v2474 = vsel %vm2460, %v1961, %v2295
  %v2475 = vsel %vm2460, %v1962, %v2297
  %v2476 = vsel %vm2460, %v1963, %v2299
  %v2477 = vsel %vm2460, %v1964, %v2301
  %v2478 = vsel %vm2460, %v1965, %v2303
  %v2479 = vsel %vm2460, %v1966, %v2305
  %v2480 = vsel %vm2460, %v1967, %v2307
  %v2481 = vsel %vm2460, %v1968, %v2309
  %v2482 = vsel %vm2460, %v1969, %v2311
  %v2483 = vsel %vm2460, %v1970, %v2313
  %v2484 = vsel %vm2460, %v1971, %v2315
  %v2485 = vsel %vm2460, %v1972, %v2317
  %v2486 = vsel %vm2460, %v1973, %v2319
  %v2487 = vsel %vm2460, %v1974, %v2321
  %v2488 = vsel %vm2460, %v1975, %v2323
  %v2489 = vsel %vm2460, %v1976, %v2325
  %v2490 = vsel %vm2460, %v1977, %v2327
  %v2491 = vsel %vm2460, %v1978, %v2329
  %v2492 = vsel %vm2460, %v1979, %v2331
  %v2493 = vsel %vm2460, %v1980, %v2333
  %v2494 = vsel %vm2460, %v1981, %v2335
  %v2495 = vsel %vm2460, %v1982, %v2337
  %v2496 = vsel %vm2460, %v1983, %v2339
  %v2497 = vsel %vm2460, %v1984, %v2341
  %v2498 = vsel %vm2460, %v1985, %v2343
  %v2499 = vsel %vm2460, %v1986, %v2345
  %v2500 = vsel %vm2460, %v1987, %v2347
  %v2501 = vsel %vm2460, %v1988, %v2349
  %v2502 = vsel %vm2460, %v1989, %v2351
  %v2503 = vsel %vm2460, %v1990, %v2353
  %v2504 = vsel %vm2460, %v1991, %v2355
  %v2505 = vsel %vm2460, %v1992, %v2357
  %v2506 = vsel %vm2460, %v1993, %v2359
  %v2507 = vsel %vm2460, %v1994, %v2361
  %v2508 = vsel %vm2460, %v1995, %v2363
  %v2509 = vsel %vm2460, %v1996, %v2365
  %v2510 = vsel %vm2460, %v1997, %v2367
  %v2511 = vsel %vm2460, %v1998, %v2369
  %v2512 = vsel %vm2460, %v1999, %v2371
  %v2513 = vsel %vm2460, %v2000, %v2373
  %v2514 = vsel %vm2460, %v2001, %v2375
  %v2515 = vsel %vm2460, %v2002, %v2377
  %v2516 = vsel %vm2460, %v2003, %v2379
  %v2517 = vsel %vm2460, %v2004, %v2381
  %v2518 = vsel %vm2460, %v2005, %v2383
  %v2519 = vsel %vm2460, %v2006, %v2385
  %v2520 = vsel %vm2460, %v2007, %v2387
  %v2521 = vsel %vm2460, %v2008, %v2389
  %v2522 = vsel %vm2460, %v2009, %v2391
  %v2523 = vsel %vm2460, %v2010, %v2393
  %v2524 = vsel %vm2460, %v2011, %v2395
  %v2525 = vpack.c.bf16 %v2462, %v2461
  %v2526 = vpack.c.bf16 %v2464, %v2463
  %v2527 = vpack.c.bf16 %v2466, %v2465
  %v2528 = vpack.c.bf16 %v2468, %v2467
  %v2529 = vpack.c.bf16 %v2470, %v2469
  %v2530 = vpack.c.bf16 %v2472, %v2471
  %v2531 = vpack.c.bf16 %v2474, %v2473
  %v2532 = vpack.c.bf16 %v2476, %v2475
  %v2533 = vpack.c.bf16 %v2478, %v2477
  %v2534 = vpack.c.bf16 %v2480, %v2479
  %v2535 = vpack.c.bf16 %v2482, %v2481
  %v2536 = vpack.c.bf16 %v2484, %v2483
  %v2537 = vpack.c.bf16 %v2486, %v2485
  %v2538 = vpack.c.bf16 %v2488, %v2487
  %v2539 = vpack.c.bf16 %v2490, %v2489
  %v2540 = vpack.c.bf16 %v2492, %v2491
  %v2541 = vpack.c.bf16 %v2494, %v2493
  %v2542 = vpack.c.bf16 %v2496, %v2495
  %v2543 = vpack.c.bf16 %v2498, %v2497
  %v2544 = vpack.c.bf16 %v2500, %v2499
  %v2545 = vpack.c.bf16 %v2502, %v2501
  %v2546 = vpack.c.bf16 %v2504, %v2503
  %v2547 = vpack.c.bf16 %v2506, %v2505
  %v2548 = vpack.c.bf16 %v2508, %v2507
  %v2549 = vpack.c.bf16 %v2510, %v2509
  %v2550 = vpack.c.bf16 %v2512, %v2511
  %v2551 = vpack.c.bf16 %v2514, %v2513
  %v2552 = vpack.c.bf16 %v2516, %v2515
  %v2553 = vpack.c.bf16 %v2518, %v2517
  %v2554 = vpack.c.bf16 %v2520, %v2519
  %v2555 = vpack.c.bf16 %v2522, %v2521
  %v2556 = vpack.c.bf16 %v2524, %v2523
  %v2589 = vunpack.c.l.b16 %v2525
  %v2590 = vunpack.c.h.b16 %v2525
  %v2591 = vunpack.c.l.b16 %v2526
  %v2592 = vunpack.c.h.b16 %v2526
  %v2593 = vunpack.c.l.b16 %v2527
  %v2594 = vunpack.c.h.b16 %v2527
  %v2595 = vunpack.c.l.b16 %v2528
  %v2596 = vunpack.c.h.b16 %v2528
  %v2597 = vunpack.c.l.b16 %v2529
  %v2598 = vunpack.c.h.b16 %v2529
  %v2599 = vunpack.c.l.b16 %v2530
  %v2600 = vunpack.c.h.b16 %v2530
  %v2601 = vunpack.c.l.b16 %v2531
  %v2602 = vunpack.c.h.b16 %v2531
  %v2603 = vunpack.c.l.b16 %v2532
  %v2604 = vunpack.c.h.b16 %v2532
  %v2605 = vunpack.c.l.b16 %v2533
  %v2606 = vunpack.c.h.b16 %v2533
  %v2607 = vunpack.c.l.b16 %v2534
  %v2608 = vunpack.c.h.b16 %v2534
  %v2609 = vunpack.c.l.b16 %v2535
  %v2610 = vunpack.c.h.b16 %v2535
  %v2611 = vunpack.c.l.b16 %v2536
  %v2612 = vunpack.c.h.b16 %v2536
  %v2613 = vunpack.c.l.b16 %v2537
  %v2614 = vunpack.c.h.b16 %v2537
  %v2615 = vunpack.c.l.b16 %v2538
  %v2616 = vunpack.c.h.b16 %v2538
  %v2617 = vunpack.c.l.b16 %v2539
  %v2618 = vunpack.c.h.b16 %v2539
  %v2619 = vunpack.c.l.b16 %v2540
  %v2620 = vunpack.c.h.b16 %v2540
  %v2621 = vunpack.c.l.b16 %v2541
  %v2622 = vunpack.c.h.b16 %v2541
  %v2623 = vunpack.c.l.b16 %v2542
  %v2624 = vunpack.c.h.b16 %v2542
  %v2625 = vunpack.c.l.b16 %v2543
  %v2626 = vunpack.c.h.b16 %v2543
  %v2627 = vunpack.c.l.b16 %v2544
  %v2628 = vunpack.c.h.b16 %v2544
  %v2629 = vunpack.c.l.b16 %v2545
  %v2630 = vunpack.c.h.b16 %v2545
  %v2631 = vunpack.c.l.b16 %v2546
  %v2632 = vunpack.c.h.b16 %v2546
  %v2633 = vunpack.c.l.b16 %v2547
  %v2634 = vunpack.c.h.b16 %v2547
  %v2635 = vunpack.c.l.b16 %v2548
  %v2636 = vunpack.c.h.b16 %v2548
  %v2637 = vunpack.c.l.b16 %v2549
  %v2638 = vunpack.c.h.b16 %v2549
  %v2639 = vunpack.c.l.b16 %v2550
  %v2640 = vunpack.c.h.b16 %v2550
  %v2641 = vunpack.c.l.b16 %v2551
  %v2642 = vunpack.c.h.b16 %v2551
  %v2643 = vunpack.c.l.b16 %v2552
  %v2644 = vunpack.c.h.b16 %v2552
  %v2645 = vunpack.c.l.b16 %v2553
  %v2646 = vunpack.c.h.b16 %v2553
  %v2647 = vunpack.c.l.b16 %v2554
  %v2648 = vunpack.c.h.b16 %v2554
  %v2649 = vunpack.c.l.b16 %v2555
  %v2650 = vunpack.c.h.b16 %v2555
  %v2651 = vunpack.c.l.b16 %v2556
  %v2652 = vunpack.c.h.b16 %v2556
  %v2653 = vpack.c.b16 %v2589, %v2589
  %v2654 = vpack.c.b16 %v2590, %v2590
  %v2655 = vpack.c.b16 %v2591, %v2591
  %v2656 = vpack.c.b16 %v2592, %v2592
  %v2657 = vpack.c.b16 %v2593, %v2593
  %v2658 = vpack.c.b16 %v2594, %v2594
  %v2659 = vpack.c.b16 %v2595, %v2595
  %v2660 = vpack.c.b16 %v2596, %v2596
  %v2661 = vpack.c.b16 %v2597, %v2597
  %v2662 = vpack.c.b16 %v2598, %v2598
  %v2663 = vpack.c.b16 %v2599, %v2599
  %v2664 = vpack.c.b16 %v2600, %v2600
  %v2665 = vpack.c.b16 %v2601, %v2601
  %v2666 = vpack.c.b16 %v2602, %v2602
  %v2667 = vpack.c.b16 %v2603, %v2603
  %v2668 = vpack.c.b16 %v2604, %v2604
  %v2669 = vpack.c.b16 %v2605, %v2605
  %v2670 = vpack.c.b16 %v2606, %v2606
  %v2671 = vpack.c.b16 %v2607, %v2607
  %v2672 = vpack.c.b16 %v2608, %v2608
  %v2673 = vpack.c.b16 %v2609, %v2609
  %v2674 = vpack.c.b16 %v2610, %v2610
  %v2675 = vpack.c.b16 %v2611, %v2611
  %v2676 = vpack.c.b16 %v2612, %v2612
  %v2677 = vpack.c.b16 %v2613, %v2613
  %v2678 = vpack.c.b16 %v2614, %v2614
  %v2679 = vpack.c.b16 %v2615, %v2615
  %v2680 = vpack.c.b16 %v2616, %v2616
  %v2681 = vpack.c.b16 %v2617, %v2617
  %v2682 = vpack.c.b16 %v2618, %v2618
  %v2683 = vpack.c.b16 %v2619, %v2619
  %v2684 = vpack.c.b16 %v2620, %v2620
  %v2685 = vpack.c.b16 %v2621, %v2621
  %v2686 = vpack.c.b16 %v2622, %v2622
  %v2687 = vpack.c.b16 %v2623, %v2623
  %v2688 = vpack.c.b16 %v2624, %v2624
  %v2689 = vpack.c.b16 %v2625, %v2625
  %v2690 = vpack.c.b16 %v2626, %v2626
  %v2691 = vpack.c.b16 %v2627, %v2627
  %v2692 = vpack.c.b16 %v2628, %v2628
  %v2693 = vpack.c.b16 %v2629, %v2629
  %v2694 = vpack.c.b16 %v2630, %v2630
  %v2695 = vpack.c.b16 %v2631, %v2631
  %v2696 = vpack.c.b16 %v2632, %v2632
  %v2697 = vpack.c.b16 %v2633, %v2633
  %v2698 = vpack.c.b16 %v2634, %v2634
  %v2699 = vpack.c.b16 %v2635, %v2635
  %v2700 = vpack.c.b16 %v2636, %v2636
  %v2701 = vpack.c.b16 %v2637, %v2637
  %v2702 = vpack.c.b16 %v2638, %v2638
  %v2703 = vpack.c.b16 %v2639, %v2639
  %v2704 = vpack.c.b16 %v2640, %v2640
  %v2705 = vpack.c.b16 %v2641, %v2641
  %v2706 = vpack.c.b16 %v2642, %v2642
  %v2707 = vpack.c.b16 %v2643, %v2643
  %v2708 = vpack.c.b16 %v2644, %v2644
  %v2709 = vpack.c.b16 %v2645, %v2645
  %v2710 = vpack.c.b16 %v2646, %v2646
  %v2711 = vpack.c.b16 %v2647, %v2647
  %v2712 = vpack.c.b16 %v2648, %v2648
  %v2713 = vpack.c.b16 %v2649, %v2649
  %v2714 = vpack.c.b16 %v2650, %v2650
  %v2715 = vpack.c.b16 %v2651, %v2651
  %v2716 = vpack.c.b16 %v2652, %v2652
  %vm2781 = vcmask 125952
  %2782 = vst.msk [vmem:[%s3] sm:$0xf] %vm2781, %v2653
  %2783 = vst.msk [vmem:[%s3 + $0x4] sm:$0xf] %vm2781, %v2654
  %2784 = vst.msk [vmem:[%s3 + $0x8] sm:$0xf] %vm2781, %v2655
  %2785 = vst.msk [vmem:[%s3 + $0xc] sm:$0xf] %vm2781, %v2656
  %2786 = vst.msk [vmem:[%s3 + $0x10] sm:$0xf] %vm2781, %v2657
  %2787 = vst.msk [vmem:[%s3 + $0x14] sm:$0xf] %vm2781, %v2658
  %2788 = vst.msk [vmem:[%s3 + $0x18] sm:$0xf] %vm2781, %v2659
  %2789 = vst.msk [vmem:[%s3 + $0x1c] sm:$0xf] %vm2781, %v2660
  %2790 = vst.msk [vmem:[%s3 + $0x20] sm:$0xf] %vm2781, %v2661
  %2791 = vst.msk [vmem:[%s3 + $0x24] sm:$0xf] %vm2781, %v2662
  %2792 = vst.msk [vmem:[%s3 + $0x28] sm:$0xf] %vm2781, %v2663
  %2793 = vst.msk [vmem:[%s3 + $0x2c] sm:$0xf] %vm2781, %v2664
  %2794 = vst.msk [vmem:[%s3 + $0x30] sm:$0xf] %vm2781, %v2665
  %2795 = vst.msk [vmem:[%s3 + $0x34] sm:$0xf] %vm2781, %v2666
  %2796 = vst.msk [vmem:[%s3 + $0x38] sm:$0xf] %vm2781, %v2667
  %2797 = vst.msk [vmem:[%s3 + $0x3c] sm:$0xf] %vm2781, %v2668
  %2798 = vst.msk [vmem:[%s3 + $0x40] sm:$0xf] %vm2781, %v2669
  %2799 = vst.msk [vmem:[%s3 + $0x44] sm:$0xf] %vm2781, %v2670
  %2800 = vst.msk [vmem:[%s3 + $0x48] sm:$0xf] %vm2781, %v2671
  %2801 = vst.msk [vmem:[%s3 + $0x4c] sm:$0xf] %vm2781, %v2672
  %2802 = vst.msk [vmem:[%s3 + $0x50] sm:$0xf] %vm2781, %v2673
  %2803 = vst.msk [vmem:[%s3 + $0x54] sm:$0xf] %vm2781, %v2674
  %2804 = vst.msk [vmem:[%s3 + $0x58] sm:$0xf] %vm2781, %v2675
  %2805 = vst.msk [vmem:[%s3 + $0x5c] sm:$0xf] %vm2781, %v2676
  %2806 = vst.msk [vmem:[%s3 + $0x60] sm:$0xf] %vm2781, %v2677
  %2807 = vst.msk [vmem:[%s3 + $0x64] sm:$0xf] %vm2781, %v2678
  %2808 = vst.msk [vmem:[%s3 + $0x68] sm:$0xf] %vm2781, %v2679
  %2809 = vst.msk [vmem:[%s3 + $0x6c] sm:$0xf] %vm2781, %v2680
  %2810 = vst.msk [vmem:[%s3 + $0x70] sm:$0xf] %vm2781, %v2681
  %2811 = vst.msk [vmem:[%s3 + $0x74] sm:$0xf] %vm2781, %v2682
  %2812 = vst.msk [vmem:[%s3 + $0x78] sm:$0xf] %vm2781, %v2683
  %2813 = vst.msk [vmem:[%s3 + $0x7c] sm:$0xf] %vm2781, %v2684
  %2814 = vst.msk [vmem:[%s3 + $0x80] sm:$0xf] %vm2781, %v2685
  %2815 = vst.msk [vmem:[%s3 + $0x84] sm:$0xf] %vm2781, %v2686
  %2816 = vst.msk [vmem:[%s3 + $0x88] sm:$0xf] %vm2781, %v2687
  %2817 = vst.msk [vmem:[%s3 + $0x8c] sm:$0xf] %vm2781, %v2688
  %2818 = vst.msk [vmem:[%s3 + $0x90] sm:$0xf] %vm2781, %v2689
  %2819 = vst.msk [vmem:[%s3 + $0x94] sm:$0xf] %vm2781, %v2690
  %2820 = vst.msk [vmem:[%s3 + $0x98] sm:$0xf] %vm2781, %v2691
  %2821 = vst.msk [vmem:[%s3 + $0x9c] sm:$0xf] %vm2781, %v2692
  %2822 = vst.msk [vmem:[%s3 + $0xa0] sm:$0xf] %vm2781, %v2693
  %2823 = vst.msk [vmem:[%s3 + $0xa4] sm:$0xf] %vm2781, %v2694
  %2824 = vst.msk [vmem:[%s3 + $0xa8] sm:$0xf] %vm2781, %v2695
  %2825 = vst.msk [vmem:[%s3 + $0xac] sm:$0xf] %vm2781, %v2696
  %2826 = vst.msk [vmem:[%s3 + $0xb0] sm:$0xf] %vm2781, %v2697
  %2827 = vst.msk [vmem:[%s3 + $0xb4] sm:$0xf] %vm2781, %v2698
  %2828 = vst.msk [vmem:[%s3 + $0xb8] sm:$0xf] %vm2781, %v2699
  %2829 = vst.msk [vmem:[%s3 + $0xbc] sm:$0xf] %vm2781, %v2700
  %2830 = vst.msk [vmem:[%s3 + $0xc0] sm:$0xf] %vm2781, %v2701
  %2831 = vst.msk [vmem:[%s3 + $0xc4] sm:$0xf] %vm2781, %v2702
  %2832 = vst.msk [vmem:[%s3 + $0xc8] sm:$0xf] %vm2781, %v2703
  %2833 = vst.msk [vmem:[%s3 + $0xcc] sm:$0xf] %vm2781, %v2704
  %2834 = vst.msk [vmem:[%s3 + $0xd0] sm:$0xf] %vm2781, %v2705
  %2835 = vst.msk [vmem:[%s3 + $0xd4] sm:$0xf] %vm2781, %v2706
  %2836 = vst.msk [vmem:[%s3 + $0xd8] sm:$0xf] %vm2781, %v2707
  %2837 = vst.msk [vmem:[%s3 + $0xdc] sm:$0xf] %vm2781, %v2708
  %2838 = vst.msk [vmem:[%s3 + $0xe0] sm:$0xf] %vm2781, %v2709
  %2839 = vst.msk [vmem:[%s3 + $0xe4] sm:$0xf] %vm2781, %v2710
  %2840 = vst.msk [vmem:[%s3 + $0xe8] sm:$0xf] %vm2781, %v2711
  %2841 = vst.msk [vmem:[%s3 + $0xec] sm:$0xf] %vm2781, %v2712
  %2842 = vst.msk [vmem:[%s3 + $0xf0] sm:$0xf] %vm2781, %v2713
  %2843 = vst.msk [vmem:[%s3 + $0xf4] sm:$0xf] %vm2781, %v2714
  %2844 = vst.msk [vmem:[%s3 + $0xf8] sm:$0xf] %vm2781, %v2715
  %2845 = vst.msk [vmem:[%s3 + $0xfc] sm:$0xf] %vm2781, %v2716
  // Predicated region
  $region14: #{_lambda_.6} parent=0 // pred_check
    _
  $region15: #{_lambda_.6} parent=0 // pred_check_branch
    %2847 = sbr.rel (0) target = $region17
  $region16: #{_lambda_.6} parent=0 // pred_region
    _
  $region17: #{_lambda_.6} parent=0 // pred_fallthru
    _
  // Predicated region
  $region18: #{_lambda_.6} parent=0 // pred_check
    _
  $region19: #{_lambda_.6} parent=0 // pred_check_branch
    %2849 = sbr.rel (0) target = $region21
  $region20: #{_lambda_.6} parent=0 // pred_region
    _
  $region21: #{_lambda_.6} parent=0 // pred_fallthru
    _

// kernel: _lambda_.5
$region0: #{_lambda_.5}
  #allocation0 [shape = 'u32[]', space=smem, size = 0x4, offset = 0x4, fixed_abs, tag = 'smem constant byte address 0x4 - core index']
  #allocation1 [shape = 'u32[144,128]{1,0:T(1,128)}', space=vmem, size = 0x12000, scoped, tag = 'internal scratch']
  %s0 = inlined_call_operand.vmem [shape: bf16[2,6,10,10,16], index: 0, kind: input, shape index: {}, may-alias: {0,1,2}]
  %s1 = inlined_call_operand.vmem [shape: bf16[2,6,10,10,16], index: 1, kind: input, shape index: {}, may-alias: {0,1,2}]
  %s2 = inlined_call_operand.vmem [shape: bf16[2,6,10,10,16], index: 2, kind: input, shape index: {}, may-alias: {0,1,2}]
  %s3 = inlined_call_operand.vmem [shape: bf16[432,16], index: 3, kind: input, shape index: {}]
  %s4 = inlined_call_operand.vmem [shape: f32[1,16], index: 4, kind: input, shape index: {}]
  %s5 = inlined_call_operand.vmem [shape: bf16[2,4,64,16], index: 5, kind: output, shape index: {0}]
  %s6 = inlined_call_operand.vmem [shape: f32[2,4,8,16], index: 6, kind: output, shape index: {1}]
  %7 = xla_tuple %s5, %s6
  %s8 = sld [smem:[#allocation0]]
  $region61: #{_lambda_.5} parent=0
    _
  %s10 = ssub.s32 1, %s8
  %s11 = scalar_select 0, %s10, %s8
  loop: start=0, step=1, limit=10
  $region2: #{_lambda_.5} parent=0 // loop_pre_header
    _
  $region3: #{_lambda_.5} parent=0 // loop_header
    %s13 = sphi 0, %s17
    %p14 = scmp.ge.s32.totalorder %s13, 10
    %s20 = sphi 0, %s32
    %s21 = sphi 0, %s28
    %s22 = sphi 0, %s20
    %s23 = sphi 0, %s21
    %s24 = sphi 0, %s22
    %s25 = sphi 0, %s23
    %s37 = sphi 0, %s39
    %s40 = sphi 0, %s37
    %s41 = sphi 0, %s40
    %s57 = sphi 0, %s41
    %s67 = sphi 0, %s69
    %s70 = sphi 0, %s67
    %s71 = sphi 0, %s70
    %s87 = sphi 0, %s71
    %s97 = sphi 0, %s99
    %s100 = sphi 0, %s97
    %s101 = sphi 0, %s100
    %s117 = sphi 0, %s101
    %s121 = sphi 0, %s121
    %s123 = sphi 0, %s121
    %s124 = sphi 0, %s123
    %s138 = sphi 0, %s124
    %s142 = sphi 0, %s142
    %s144 = sphi 0, %s142
    %s145 = sphi 0, %s144
    %s159 = sphi 0, %s145
    %s167 = sphi 0, %s169
    %s170 = sphi 0, %s167
    %s171 = sphi 0, %s170
    %s187 = sphi 0, %s171
    %s195 = sphi 0, %s197
    %s198 = sphi 0, %s195
    %s199 = sphi 0, %s198
    %s215 = sphi 0, %s199
  $region4: #{_lambda_.5} parent=0 // loop_header_branch
    %16 = sbr.rel (%p14) target = $region8
  $region5: #{_lambda_.5} parent=0 // loop_body
    %s18 = ssub.s32 %s13, 1
    %s19 = ssub.s32 %s13, 2
    %s26 = sadd.s32 1, %s21
    %p27 = scmp.ge.s32.totalorder %s26, 4
    %s28 = scalar_select %p27, 0, %s26
    %s29 = sadd.s32 1, %s20
    %s30 = scalar_select %p27, %s29, %s20
    %p31 = scmp.ge.s32.totalorder %s30, 2
    %s32 = scalar_select %p31, 0, %s30
    %s33 = ssub.s32 %s20, %s32
    %s34 = ssub.s32 %s21, %s28
    %s35 = sor.u32 %s33, %s34
    %p36 = scmp.eq.s32.totalorder %s35, 0
    %s38 = sadd.s32 %s37, 1
    %s39 = scalar_select %p36, %s37, %s38
    %p42 = pneg %p36
    %p43 = scmp.eq.s32.totalorder %s13, 7
    %p44 = por %p42, %p43
    %p45 = scmp.ne.s32.totalorder %s37, %s40
    %p46 = scmp.eq.s32.totalorder %s13, 0
    %p47 = por %p45, %p46
    %p48 = scmp.ne.s32.totalorder %s37, %s40
    %p49 = scmp.eq.s32.totalorder %s18, 7
    %p50 = por %p48, %p49
    %p51 = scmp.ne.s32.totalorder %s40, %s41
    %p52 = scmp.eq.s32.totalorder %s18, 0
    %p53 = por %p51, %p52
    %p54 = scmp.ne.s32.totalorder %s40, %s41
    %p55 = scmp.eq.s32.totalorder %s19, 7
    %p56 = por %p54, %p55
    %p58 = scmp.ne.s32.totalorder %s41, %s57
    %p59 = scmp.eq.s32.totalorder %s19, 0
    %p60 = por %p58, %p59
    %s61 = sadd.s32 %s21, 1
    %s62 = sadd.s32 %s28, 1
    %s63 = ssub.s32 %s20, %s32
    %s64 = ssub.s32 %s61, %s62
    %s65 = sor.u32 %s63, %s64
    %p66 = scmp.eq.s32.totalorder %s65, 0
    %s68 = sadd.s32 %s67, 1
    %s69 = scalar_select %p66, %s67, %s68
    %p72 = pneg %p66
    %p73 = scmp.eq.s32.totalorder %s13, 7
    %p74 = por %p72, %p73
    %p75 = scmp.ne.s32.totalorder %s67, %s70
    %p76 = scmp.eq.s32.totalorder %s13, 0
    %p77 = por %p75, %p76
    %p78 = scmp.ne.s32.totalorder %s67, %s70
    %p79 = scmp.eq.s32.totalorder %s18, 7
    %p80 = por %p78, %p79
    %p81 = scmp.ne.s32.totalorder %s70, %s71
    %p82 = scmp.eq.s32.totalorder %s18, 0
    %p83 = por %p81, %p82
    %p84 = scmp.ne.s32.totalorder %s70, %s71
    %p85 = scmp.eq.s32.totalorder %s19, 7
    %p86 = por %p84, %p85
    %p88 = scmp.ne.s32.totalorder %s71, %s87
    %p89 = scmp.eq.s32.totalorder %s19, 0
    %p90 = por %p88, %p89
    %s91 = sadd.s32 %s21, 2
    %s92 = sadd.s32 %s28, 2
    %s93 = ssub.s32 %s20, %s32
    %s94 = ssub.s32 %s91, %s92
    %s95 = sor.u32 %s93, %s94
    %p96 = scmp.eq.s32.totalorder %s95, 0
    %s98 = sadd.s32 %s97, 1
    %s99 = scalar_select %p96, %s97, %s98
    %p102 = pneg %p96
    %p103 = scmp.eq.s32.totalorder %s13, 7
    %p104 = por %p102, %p103
    %p105 = scmp.ne.s32.totalorder %s97, %s100
    %p106 = scmp.eq.s32.totalorder %s13, 0
    %p107 = por %p105, %p106
    %p108 = scmp.ne.s32.totalorder %s97, %s100
    %p109 = scmp.eq.s32.totalorder %s18, 7
    %p110 = por %p108, %p109
    %p111 = scmp.ne.s32.totalorder %s100, %s101
    %p112 = scmp.eq.s32.totalorder %s18, 0
    %p113 = por %p111, %p112
    %p114 = scmp.ne.s32.totalorder %s100, %s101
    %p115 = scmp.eq.s32.totalorder %s19, 7
    %p116 = por %p114, %p115
    %p118 = scmp.ne.s32.totalorder %s101, %s117
    %p119 = scmp.eq.s32.totalorder %s19, 0
    %p120 = por %p118, %p119
    %s122 = sadd.s32 %s121, 1
    %p125 = scmp.eq.s32.totalorder %s13, 7
    %p126 = scmp.ne.s32.totalorder %s121, %s123
    %p127 = scmp.eq.s32.totalorder %s13, 0
    %p128 = por %p126, %p127
    %p129 = scmp.ne.s32.totalorder %s121, %s123
    %p130 = scmp.eq.s32.totalorder %s18, 7
    %p131 = por %p129, %p130
    %p132 = scmp.ne.s32.totalorder %s123, %s124
    %p133 = scmp.eq.s32.totalorder %s18, 0
    %p134 = por %p132, %p133
    %p135 = scmp.ne.s32.totalorder %s123, %s124
    %p136 = scmp.eq.s32.totalorder %s19, 7
    %p137 = por %p135, %p136
    %p139 = scmp.ne.s32.totalorder %s124, %s138
    %p140 = scmp.eq.s32.totalorder %s19, 0
    %p141 = por %p139, %p140
    %s143 = sadd.s32 %s142, 1
    %p146 = scmp.eq.s32.totalorder %s13, 7
    %p147 = scmp.ne.s32.totalorder %s142, %s144
    %p148 = scmp.eq.s32.totalorder %s13, 0
    %p149 = por %p147, %p148
    %p150 = scmp.ne.s32.totalorder %s142, %s144
    %p151 = scmp.eq.s32.totalorder %s18, 7
    %p152 = por %p150, %p151
    %p153 = scmp.ne.s32.totalorder %s144, %s145
    %p154 = scmp.eq.s32.totalorder %s18, 0
    %p155 = por %p153, %p154
    %p156 = scmp.ne.s32.totalorder %s144, %s145
    %p157 = scmp.eq.s32.totalorder %s19, 7
    %p158 = por %p156, %p157
    %p160 = scmp.ne.s32.totalorder %s145, %s159
    %p161 = scmp.eq.s32.totalorder %s19, 0
    %p162 = por %p160, %p161
    %s163 = ssub.s32 %s20, %s32
    %s164 = ssub.s32 %s21, %s28
    %s165 = sor.u32 %s163, %s164
    %p166 = scmp.eq.s32.totalorder %s165, 0
    %s168 = sadd.s32 %s167, 1
    %s169 = scalar_select %p166, %s167, %s168
    %p172 = pneg %p166
    %p173 = scmp.eq.s32.totalorder %s13, 7
    %p174 = por %p172, %p173
    %p175 = scmp.ne.s32.totalorder %s167, %s170
    %p176 = scmp.eq.s32.totalorder %s13, 0
    %p177 = por %p175, %p176
    %p178 = scmp.ne.s32.totalorder %s167, %s170
    %p179 = scmp.eq.s32.totalorder %s18, 7
    %p180 = por %p178, %p179
    %p181 = scmp.ne.s32.totalorder %s170, %s171
    %p182 = scmp.eq.s32.totalorder %s18, 0
    %p183 = por %p181, %p182
    %p184 = scmp.ne.s32.totalorder %s170, %s171
    %p185 = scmp.eq.s32.totalorder %s19, 7
    %p186 = por %p184, %p185
    %p188 = scmp.ne.s32.totalorder %s171, %s187
    %p189 = scmp.eq.s32.totalorder %s19, 0
    %p190 = por %p188, %p189
    %s191 = ssub.s32 %s20, %s32
    %s192 = ssub.s32 %s21, %s28
    %s193 = sor.u32 %s191, %s192
    %p194 = scmp.eq.s32.totalorder %s193, 0
    %s196 = sadd.s32 %s195, 1
    %s197 = scalar_select %p194, %s195, %s196
    %p200 = pneg %p194
    %p201 = scmp.eq.s32.totalorder %s13, 7
    %p202 = por %p200, %p201
    %p203 = scmp.ne.s32.totalorder %s195, %s198
    %p204 = scmp.eq.s32.totalorder %s13, 0
    %p205 = por %p203, %p204
    %p206 = scmp.ne.s32.totalorder %s195, %s198
    %p207 = scmp.eq.s32.totalorder %s18, 7
    %p208 = por %p206, %p207
    %p209 = scmp.ne.s32.totalorder %s198, %s199
    %p210 = scmp.eq.s32.totalorder %s18, 0
    %p211 = por %p209, %p210
    %p212 = scmp.ne.s32.totalorder %s198, %s199
    %p213 = scmp.eq.s32.totalorder %s19, 7
    %p214 = por %p212, %p213
    %p216 = scmp.ne.s32.totalorder %s199, %s215
    %p217 = scmp.eq.s32.totalorder %s19, 0
    %p218 = por %p216, %p217
    %p219 = scmp.le.s32.totalorder 1, %s13
    %p220 = scmp.lt.s32.totalorder %s13, 9
    %p221 = pnand %p219, %p220
    %p222 = pneg %p221
    // Predicated region
    $region9: #{_lambda_.5} parent=5 // pred_check
      _
    $region10: #{_lambda_.5} parent=5 // pred_check_branch
      %224 = sbr.rel (%p221) target = $region12
    $region11: #{_lambda_.5} parent=5 // pred_region
      %s225 = ssub.s32 %s13, 1
      // Predicated region
      $region13: #{_lambda_.5} parent=11 // pred_check
        %p226 = pneg %p134
      $region14: #{_lambda_.5} parent=11 // pred_check_branch
        %228 = sbr.rel (%p226) target = $region16
      $region15: #{_lambda_.5} parent=11 // pred_region
        _
      $region16: #{_lambda_.5} parent=11 // pred_fallthru
        _
      // Predicated region
      $region17: #{_lambda_.5} parent=11 // pred_check
        %p229 = pneg %p155
      $region18: #{_lambda_.5} parent=11 // pred_check_branch
        %231 = sbr.rel (%p229) target = $region20
      $region19: #{_lambda_.5} parent=11 // pred_region
        _
      $region20: #{_lambda_.5} parent=11 // pred_fallthru
        _
    $region12: #{_lambda_.5} parent=5 // pred_fallthru
      _
    %p232 = scmp.lt.s32.totalorder %s13, 8
    // Predicated region
    $region21: #{_lambda_.5} parent=5 // pred_check
      %p233 = pneg %p232
    $region22: #{_lambda_.5} parent=5 // pred_check_branch
      %235 = sbr.rel (%p233) target = $region24
    $region23: #{_lambda_.5} parent=5 // pred_region
      // Predicated region
      $region25: #{_lambda_.5} parent=23 // pred_check
        %p236 = pneg %p47
      $region26: #{_lambda_.5} parent=23 // pred_check_branch
        %238 = sbr.rel (%p236) target = $region28
      $region27: #{_lambda_.5} parent=23 // pred_region
        %p239 = scmp.lt.s32.totalorder %s20, 1
        %s240 = scalar_select %p239, %s20, 1
        %p241 = scmp.lt.s32.totalorder %s21, 5
        %s242 = scalar_select %p241, %s21, 5
        %s243 = smul.addr %s242, 20
        %s244 = smul.addr %s240, 120
        %s245 = sadd.s32 %s243, %s244
        %s246 = smul.addr %s245, 4
        %s247 = scalar_lea.vmem %s0, %s246
      $region28: #{_lambda_.5} parent=23 // pred_fallthru
        _
      // Predicated region
      $region29: #{_lambda_.5} parent=23 // pred_check
        %p248 = pneg %p77
      $region30: #{_lambda_.5} parent=23 // pred_check_branch
        %250 = sbr.rel (%p248) target = $region32
      $region31: #{_lambda_.5} parent=23 // pred_region
        %s251 = sadd.s32 %s21, 1
        %p252 = scmp.lt.s32.totalorder %s20, 1
        %s253 = scalar_select %p252, %s20, 1
        %p254 = scmp.lt.s32.totalorder %s251, 5
        %s255 = scalar_select %p254, %s251, 5
        %s256 = smul.addr %s255, 20
        %s257 = smul.addr %s253, 120
        %s258 = sadd.s32 %s256, %s257
        %s259 = smul.addr %s258, 4
        %s260 = scalar_lea.vmem %s1, %s259
        %s261 = sadd.s32 %s21, 1
      $region32: #{_lambda_.5} parent=23 // pred_fallthru
        _
      // Predicated region
      $region33: #{_lambda_.5} parent=23 // pred_check
        %p262 = pneg %p107
      $region34: #{_lambda_.5} parent=23 // pred_check_branch
        %264 = sbr.rel (%p262) target = $region36
      $region35: #{_lambda_.5} parent=23 // pred_region
        %s265 = sadd.s32 %s21, 2
        %p266 = scmp.lt.s32.totalorder %s20, 1
        %s267 = scalar_select %p266, %s20, 1
        %p268 = scmp.lt.s32.totalorder %s265, 5
        %s269 = scalar_select %p268, %s265, 5
        %s270 = smul.addr %s269, 20
        %s271 = smul.addr %s267, 120
        %s272 = sadd.s32 %s270, %s271
        %s273 = smul.addr %s272, 4
        %s274 = scalar_lea.vmem %s2, %s273
        %s275 = sadd.s32 %s21, 2
      $region36: #{_lambda_.5} parent=23 // pred_fallthru
        _
    $region24: #{_lambda_.5} parent=5 // pred_fallthru
      _
    %p276 = scmp.le.s32.totalorder 1, %s13
    %p277 = scmp.lt.s32.totalorder %s13, 9
    %p278 = pnand %p276, %p277
    %p279 = pneg %p278
    // Predicated region
    $region37: #{_lambda_.5} parent=5 // pred_check
      _
    $region38: #{_lambda_.5} parent=5 // pred_check_branch
      %281 = sbr.rel (%p278) target = $region40
    $region39: #{_lambda_.5} parent=5 // pred_region
      %s282 = ssub.s32 %s13, 1
      %p283 = scmp.lt.s32.totalorder %s22, 1
      %s284 = scalar_select %p283, %s22, 1
      %p285 = scmp.lt.s32.totalorder %s23, 5
      %s286 = scalar_select %p285, %s23, 5
      %s287 = smul.addr %s286, 20
      %s288 = smul.addr %s284, 120
      %s289 = sadd.s32 %s287, %s288
      %s290 = smul.addr %s289, 4
      %s291 = scalar_lea.vmem %s0, %s290
      %p292 = pneg %p53
      %p293 = pneg %p50
      %s294 = sadd.s32 %s23, 1
      %p295 = scmp.lt.s32.totalorder %s22, 1
      %s296 = scalar_select %p295, %s22, 1
      %p297 = scmp.lt.s32.totalorder %s294, 5
      %s298 = scalar_select %p297, %s294, 5
      %s299 = smul.addr %s298, 20
      %s300 = smul.addr %s296, 120
      %s301 = sadd.s32 %s299, %s300
      %s302 = smul.addr %s301, 4
      %s303 = scalar_lea.vmem %s1, %s302
      %p304 = pneg %p83
      %p305 = pneg %p80
      %s306 = sadd.s32 %s23, 2
      %p307 = scmp.lt.s32.totalorder %s22, 1
      %s308 = scalar_select %p307, %s22, 1
      %p309 = scmp.lt.s32.totalorder %s306, 5
      %s310 = scalar_select %p309, %s306, 5
      %s311 = smul.addr %s310, 20
      %s312 = smul.addr %s308, 120
      %s313 = sadd.s32 %s311, %s312
      %s314 = smul.addr %s313, 4
      %s315 = scalar_lea.vmem %s2, %s314
      %p316 = pneg %p113
      %p317 = pneg %p110
      %p318 = pneg %p134
      %p319 = pneg %p131
      %p320 = pneg %p155
      %p321 = pneg %p152
      %p322 = pneg %p183
      %p323 = pneg %p180
      %p324 = scmp.lt.s32.totalorder %s22, 1
      %s325 = scalar_select %p324, %s22, 1
      %p326 = scmp.lt.s32.totalorder %s23, 3
      %s327 = scalar_select %p326, %s23, 3
      %s328 = smul.addr %s327, 8
      %s329 = smul.addr %s325, 32
      %s330 = sadd.s32 %s328, %s329
      %s331 = smul.addr %s330, 4
      %s332 = scalar_lea.vmem %s5, %s331
      %p333 = pneg %p211
      %p334 = pneg %p208
      %p335 = scmp.lt.s32.totalorder %s22, 1
      %s336 = scalar_select %p335, %s22, 1
      %p337 = scmp.lt.s32.totalorder %s23, 3
      %s338 = scalar_select %p337, %s23, 3
      %s339 = smul.addr %s336, 4
      %s340 = sadd.s32 %s338, %s339
      %s341 = smul.addr %s340, 8
      %s342 = scalar_lea.vmem %s6, %s341
      %p343 = scmp.lt.s32.totalorder %s22, 1
      %s344 = scalar_select %p343, %s22, 1
      %p345 = scmp.lt.s32.totalorder %s23, 5
      %s346 = scalar_select %p345, %s23, 5
      %s347 = smul.addr %s346, 20
      %s348 = smul.addr %s344, 120
      %s349 = sadd.s32 %s347, %s348
      %s350 = smul.addr %s349, 4
      %s351 = scalar_lea.vmem %s0, %s350
      %s352 = sadd.s32 %s23, 1
      %p353 = scmp.lt.s32.totalorder %s22, 1
      %s354 = scalar_select %p353, %s22, 1
      %p355 = scmp.lt.s32.totalorder %s352, 5
      %s356 = scalar_select %p355, %s352, 5
      %s357 = smul.addr %s356, 20
      %s358 = smul.addr %s354, 120
      %s359 = sadd.s32 %s357, %s358
      %s360 = smul.addr %s359, 4
      %s361 = scalar_lea.vmem %s1, %s360
      %s362 = sadd.s32 %s23, 1
      %s363 = sadd.s32 %s23, 2
      %p364 = scmp.lt.s32.totalorder %s22, 1
      %s365 = scalar_select %p364, %s22, 1
      %p366 = scmp.lt.s32.totalorder %s363, 5
      %s367 = scalar_select %p366, %s363, 5
      %s368 = smul.addr %s367, 20
      %s369 = smul.addr %s365, 120
      %s370 = sadd.s32 %s368, %s369
      %s371 = smul.addr %s370, 4
      %s372 = scalar_lea.vmem %s2, %s371
      %s373 = sadd.s32 %s23, 2
      %p374 = scmp.lt.s32.totalorder %s22, 1
      %s375 = scalar_select %p374, %s22, 1
      %p376 = scmp.lt.s32.totalorder %s23, 3
      %s377 = scalar_select %p376, %s23, 3
      %s378 = smul.addr %s377, 8
      %s379 = smul.addr %s375, 32
      %s380 = sadd.s32 %s378, %s379
      %s381 = smul.addr %s380, 4
      %s382 = scalar_lea.vmem %s5, %s381
      %p383 = scmp.lt.s32.totalorder %s22, 1
      %s384 = scalar_select %p383, %s22, 1
      %p385 = scmp.lt.s32.totalorder %s23, 3
      %s386 = scalar_select %p385, %s23, 3
      %s387 = smul.addr %s384, 4
      %s388 = sadd.s32 %s386, %s387
      %s389 = smul.addr %s388, 8
      %s390 = scalar_lea.vmem %s6, %s389
      %v392 = vld [vmem:[%s351] sm:$0xf]
      %v393 = vld [vmem:[%s351 + $0x4] sm:$0x1]
      %v394 = vld [vmem:[%s351 + $0x8] sm:$0xf]
      %v395 = vld [vmem:[%s351 + $0xc] sm:$0x1]
      %v396 = vld [vmem:[%s351 + $0x10] sm:$0xf]
      %v397 = vld [vmem:[%s351 + $0x14] sm:$0x1]
      %v398 = vld [vmem:[%s351 + $0x18] sm:$0xf]
      %v399 = vld [vmem:[%s351 + $0x1c] sm:$0x1]
      %v400 = vld [vmem:[%s351 + $0x20] sm:$0xf]
      %v401 = vld [vmem:[%s351 + $0x24] sm:$0x1]
      %v402 = vld [vmem:[%s351 + $0x28] sm:$0xf]
      %v403 = vld [vmem:[%s351 + $0x2c] sm:$0x1]
      %v404 = vld [vmem:[%s351 + $0x30] sm:$0xf]
      %v405 = vld [vmem:[%s351 + $0x34] sm:$0x1]
      %v406 = vld [vmem:[%s351 + $0x38] sm:$0xf]
      %v407 = vld [vmem:[%s351 + $0x3c] sm:$0x1]
      %v408 = vld [vmem:[%s351 + $0x40] sm:$0xf]
      %v409 = vld [vmem:[%s351 + $0x44] sm:$0x1]
      %v410 = vld [vmem:[%s351 + $0x48] sm:$0xf]
      %v411 = vld [vmem:[%s351 + $0x4c] sm:$0x1]
      %vm412 = vsmask.f32 3328
      %vm413 = vsmask.f32 7440
      %vm414 = vmor %vm412, %vm413
      %v416 = vshrl.u32 %v392, 16
      %v418 = vrot.slane %v416, 4
      %v419 = vshll.u32 %v392, 16
      %v421 = vrot.slane %v419, 5
      %v422 = vor.u32 %v418, %v421
      %v423 = vrot.slane %v422, 4
      %v425 = vshll.u32 %v393, 16
      %v427 = vrot.slane %v425, 5
      %v428 = vsel %vm414, %v423, %v427
      %v430 = vshrl.u32 %v394, 16
      %v432 = vrot.slane %v430, 4
      %v433 = vshll.u32 %v394, 16
      %v435 = vrot.slane %v433, 5
      %v436 = vor.u32 %v432, %v435
      %v437 = vrot.slane %v436, 4
      %v439 = vshll.u32 %v395, 16
      %v441 = vrot.slane %v439, 5
      %v442 = vsel %vm414, %v437, %v441
      %v444 = vshrl.u32 %v396, 16
      %v446 = vrot.slane %v444, 4
      %v447 = vshll.u32 %v396, 16
      %v449 = vrot.slane %v447, 5
      %v450 = vor.u32 %v446, %v449
      %v451 = vrot.slane %v450, 4
      %v453 = vshll.u32 %v397, 16
      %v455 = vrot.slane %v453, 5
      %v456 = vsel %vm414, %v451, %v455
      %v458 = vshrl.u32 %v398, 16
      %v460 = vrot.slane %v458, 4
      %v461 = vshll.u32 %v398, 16
      %v463 = vrot.slane %v461, 5
      %v464 = vor.u32 %v460, %v463
      %v465 = vrot.slane %v464, 4
      %v467 = vshll.u32 %v399, 16
      %v469 = vrot.slane %v467, 5
      %v470 = vsel %vm414, %v465, %v469
      %v472 = vshrl.u32 %v400, 16
      %v474 = vrot.slane %v472, 4
      %v475 = vshll.u32 %v400, 16
      %v477 = vrot.slane %v475, 5
      %v478 = vor.u32 %v474, %v477
      %v479 = vrot.slane %v478, 4
      %v481 = vshll.u32 %v401, 16
      %v483 = vrot.slane %v481, 5
      %v484 = vsel %vm414, %v479, %v483
      %v486 = vshrl.u32 %v402, 16
      %v488 = vrot.slane %v486, 4
      %v489 = vshll.u32 %v402, 16
      %v491 = vrot.slane %v489, 5
      %v492 = vor.u32 %v488, %v491
      %v493 = vrot.slane %v492, 4
      %v495 = vshll.u32 %v403, 16
      %v497 = vrot.slane %v495, 5
      %v498 = vsel %vm414, %v493, %v497
      %v500 = vshrl.u32 %v404, 16
      %v502 = vrot.slane %v500, 4
      %v503 = vshll.u32 %v404, 16
      %v505 = vrot.slane %v503, 5
      %v506 = vor.u32 %v502, %v505
      %v507 = vrot.slane %v506, 4
      %v509 = vshll.u32 %v405, 16
      %v511 = vrot.slane %v509, 5
      %v512 = vsel %vm414, %v507, %v511
      %v514 = vshrl.u32 %v406, 16
      %v516 = vrot.slane %v514, 4
      %v517 = vshll.u32 %v406, 16
      %v519 = vrot.slane %v517, 5
      %v520 = vor.u32 %v516, %v519
      %v521 = vrot.slane %v520, 4
      %v523 = vshll.u32 %v407, 16
      %v525 = vrot.slane %v523, 5
      %v526 = vsel %vm414, %v521, %v525
      %vm543 = vcmask 1042432
      %vm544 = vcmask 1046532
      %vm545 = vmor %vm543, %vm544
      %v546 = vrot.slane %v392, 5
      %v547 = vrot.slane %v546, 4
      %v548 = vrot.slane %v393, 5
      %v549 = vsel %vm545, %v547, %v548
      %v550 = vrot.slane %v394, 5
      %v551 = vrot.slane %v550, 4
      %v552 = vrot.slane %v395, 5
      %v553 = vsel %vm545, %v551, %v552
      %v554 = vrot.slane %v396, 5
      %v555 = vrot.slane %v554, 4
      %v556 = vrot.slane %v397, 5
      %v557 = vsel %vm545, %v555, %v556
      %v558 = vrot.slane %v398, 5
      %v559 = vrot.slane %v558, 4
      %v560 = vrot.slane %v399, 5
      %v561 = vsel %vm545, %v559, %v560
      %v562 = vrot.slane %v400, 5
      %v563 = vrot.slane %v562, 4
      %v564 = vrot.slane %v401, 5
      %v565 = vsel %vm545, %v563, %v564
      %v566 = vrot.slane %v402, 5
      %v567 = vrot.slane %v566, 4
      %v568 = vrot.slane %v403, 5
      %v569 = vsel %vm545, %v567, %v568
      %v570 = vrot.slane %v404, 5
      %v571 = vrot.slane %v570, 4
      %v572 = vrot.slane %v405, 5
      %v573 = vsel %vm545, %v571, %v572
      %v574 = vrot.slane %v406, 5
      %v575 = vrot.slane %v574, 4
      %v576 = vrot.slane %v407, 5
      %v577 = vsel %vm545, %v575, %v576
      %v579 = vshrl.u32 %v408, 16
      %v581 = vrot.slane %v579, 4
      %v582 = vshll.u32 %v408, 16
      %v584 = vrot.slane %v582, 5
      %v585 = vor.u32 %v581, %v584
      %v586 = vrot.slane %v585, 4
      %v588 = vshll.u32 %v409, 16
      %v590 = vrot.slane %v588, 5
      %v591 = vsel %vm414, %v586, %v590
      %v594 = vrot.slane %v408, 5
      %v595 = vrot.slane %v594, 4
      %v596 = vrot.slane %v409, 5
      %v597 = vsel %vm545, %v595, %v596
      %v599 = vshrl.u32 %v410, 16
      %v601 = vrot.slane %v599, 4
      %v602 = vshll.u32 %v410, 16
      %v604 = vrot.slane %v602, 5
      %v605 = vor.u32 %v601, %v604
      %v606 = vrot.slane %v605, 4
      %v608 = vshll.u32 %v411, 16
      %v610 = vrot.slane %v608, 5
      %v611 = vsel %vm414, %v606, %v610
      %v614 = vrot.slane %v410, 5
      %v615 = vrot.slane %v614, 4
      %v616 = vrot.slane %v411, 5
      %v617 = vsel %vm545, %v615, %v616
      %v618 = vld [vmem:[%s361] sm:$0xf]
      %v619 = vld [vmem:[%s361 + $0x4] sm:$0x1]
      %v620 = vld [vmem:[%s361 + $0x8] sm:$0xf]
      %v621 = vld [vmem:[%s361 + $0xc] sm:$0x1]
      %v622 = vld [vmem:[%s361 + $0x10] sm:$0xf]
      %v623 = vld [vmem:[%s361 + $0x14] sm:$0x1]
      %v624 = vld [vmem:[%s361 + $0x18] sm:$0xf]
      %v625 = vld [vmem:[%s361 + $0x1c] sm:$0x1]
      %v626 = vld [vmem:[%s361 + $0x20] sm:$0xf]
      %v627 = vld [vmem:[%s361 + $0x24] sm:$0x1]
      %v628 = vld [vmem:[%s361 + $0x28] sm:$0xf]
      %v629 = vld [vmem:[%s361 + $0x2c] sm:$0x1]
      %v630 = vld [vmem:[%s361 + $0x30] sm:$0xf]
      %v631 = vld [vmem:[%s361 + $0x34] sm:$0x1]
      %v632 = vld [vmem:[%s361 + $0x38] sm:$0xf]
      %v633 = vld [vmem:[%s361 + $0x3c] sm:$0x1]
      %v634 = vld [vmem:[%s361 + $0x40] sm:$0xf]
      %v635 = vld [vmem:[%s361 + $0x44] sm:$0x1]
      %v636 = vld [vmem:[%s361 + $0x48] sm:$0xf]
      %v637 = vld [vmem:[%s361 + $0x4c] sm:$0x1]
      %v639 = vshrl.u32 %v618, 16
      %v641 = vrot.slane %v639, 4
      %v642 = vshll.u32 %v618, 16
      %v644 = vrot.slane %v642, 5
      %v645 = vor.u32 %v641, %v644
      %v646 = vrot.slane %v645, 4
      %v648 = vshll.u32 %v619, 16
      %v650 = vrot.slane %v648, 5
      %v651 = vsel %vm414, %v646, %v650
      %v653 = vshrl.u32 %v620, 16
      %v655 = vrot.slane %v653, 4
      %v656 = vshll.u32 %v620, 16
      %v658 = vrot.slane %v656, 5
      %v659 = vor.u32 %v655, %v658
      %v660 = vrot.slane %v659, 4
      %v662 = vshll.u32 %v621, 16
      %v664 = vrot.slane %v662, 5
      %v665 = vsel %vm414, %v660, %v664
      %v667 = vshrl.u32 %v622, 16
      %v669 = vrot.slane %v667, 4
      %v670 = vshll.u32 %v622, 16
      %v672 = vrot.slane %v670, 5
      %v673 = vor.u32 %v669, %v672
      %v674 = vrot.slane %v673, 4
      %v676 = vshll.u32 %v623, 16
      %v678 = vrot.slane %v676, 5
      %v679 = vsel %vm414, %v674, %v678
      %v681 = vshrl.u32 %v624, 16
      %v683 = vrot.slane %v681, 4
      %v684 = vshll.u32 %v624, 16
      %v686 = vrot.slane %v684, 5
      %v687 = vor.u32 %v683, %v686
      %v688 = vrot.slane %v687, 4
      %v690 = vshll.u32 %v625, 16
      %v692 = vrot.slane %v690, 5
      %v693 = vsel %vm414, %v688, %v692
      %v695 = vshrl.u32 %v626, 16
      %v697 = vrot.slane %v695, 4
      %v698 = vshll.u32 %v626, 16
      %v700 = vrot.slane %v698, 5
      %v701 = vor.u32 %v697, %v700
      %v702 = vrot.slane %v701, 4
      %v704 = vshll.u32 %v627, 16
      %v706 = vrot.slane %v704, 5
      %v707 = vsel %vm414, %v702, %v706
      %v709 = vshrl.u32 %v628, 16
      %v711 = vrot.slane %v709, 4
      %v712 = vshll.u32 %v628, 16
      %v714 = vrot.slane %v712, 5
      %v715 = vor.u32 %v711, %v714
      %v716 = vrot.slane %v715, 4
      %v718 = vshll.u32 %v629, 16
      %v720 = vrot.slane %v718, 5
      %v721 = vsel %vm414, %v716, %v720
      %v723 = vshrl.u32 %v630, 16
      %v725 = vrot.slane %v723, 4
      %v726 = vshll.u32 %v630, 16
      %v728 = vrot.slane %v726, 5
      %v729 = vor.u32 %v725, %v728
      %v730 = vrot.slane %v729, 4
      %v732 = vshll.u32 %v631, 16
      %v734 = vrot.slane %v732, 5
      %v735 = vsel %vm414, %v730, %v734
      %v737 = vshrl.u32 %v632, 16
      %v739 = vrot.slane %v737, 4
      %v740 = vshll.u32 %v632, 16
      %v742 = vrot.slane %v740, 5
      %v743 = vor.u32 %v739, %v742
      %v744 = vrot.slane %v743, 4
      %v746 = vshll.u32 %v633, 16
      %v748 = vrot.slane %v746, 5
      %v749 = vsel %vm414, %v744, %v748
      %v766 = vrot.slane %v618, 5
      %v767 = vrot.slane %v766, 4
      %v768 = vrot.slane %v619, 5
      %v769 = vsel %vm545, %v767, %v768
      %v770 = vrot.slane %v620, 5
      %v771 = vrot.slane %v770, 4
      %v772 = vrot.slane %v621, 5
      %v773 = vsel %vm545, %v771, %v772
      %v774 = vrot.slane %v622, 5
      %v775 = vrot.slane %v774, 4
      %v776 = vrot.slane %v623, 5
      %v777 = vsel %vm545, %v775, %v776
      %v778 = vrot.slane %v624, 5
      %v779 = vrot.slane %v778, 4
      %v780 = vrot.slane %v625, 5
      %v781 = vsel %vm545, %v779, %v780
      %v782 = vrot.slane %v626, 5
      %v783 = vrot.slane %v782, 4
      %v784 = vrot.slane %v627, 5
      %v785 = vsel %vm545, %v783, %v784
      %v786 = vrot.slane %v628, 5
      %v787 = vrot.slane %v786, 4
      %v788 = vrot.slane %v629, 5
      %v789 = vsel %vm545, %v787, %v788
      %v790 = vrot.slane %v630, 5
      %v791 = vrot.slane %v790, 4
      %v792 = vrot.slane %v631, 5
      %v793 = vsel %vm545, %v791, %v792
      %v794 = vrot.slane %v632, 5
      %v795 = vrot.slane %v794, 4
      %v796 = vrot.slane %v633, 5
      %v797 = vsel %vm545, %v795, %v796
      %v799 = vshrl.u32 %v634, 16
      %v801 = vrot.slane %v799, 4
      %v802 = vshll.u32 %v634, 16
      %v804 = vrot.slane %v802, 5
      %v805 = vor.u32 %v801, %v804
      %v806 = vrot.slane %v805, 4
      %v808 = vshll.u32 %v635, 16
      %v810 = vrot.slane %v808, 5
      %v811 = vsel %vm414, %v806, %v810
      %v814 = vrot.slane %v634, 5
      %v815 = vrot.slane %v814, 4
      %v816 = vrot.slane %v635, 5
      %v817 = vsel %vm545, %v815, %v816
      %v819 = vshrl.u32 %v636, 16
      %v821 = vrot.slane %v819, 4
      %v822 = vshll.u32 %v636, 16
      %v824 = vrot.slane %v822, 5
      %v825 = vor.u32 %v821, %v824
      %v826 = vrot.slane %v825, 4
      %v828 = vshll.u32 %v637, 16
      %v830 = vrot.slane %v828, 5
      %v831 = vsel %vm414, %v826, %v830
      %v834 = vrot.slane %v636, 5
      %v835 = vrot.slane %v834, 4
      %v836 = vrot.slane %v637, 5
      %v837 = vsel %vm545, %v835, %v836
      %v838 = vld [vmem:[%s372] sm:$0xf]
      %v839 = vld [vmem:[%s372 + $0x4] sm:$0x1]
      %v840 = vld [vmem:[%s372 + $0x8] sm:$0xf]
      %v841 = vld [vmem:[%s372 + $0xc] sm:$0x1]
      %v842 = vld [vmem:[%s372 + $0x10] sm:$0xf]
      %v843 = vld [vmem:[%s372 + $0x14] sm:$0x1]
      %v844 = vld [vmem:[%s372 + $0x18] sm:$0xf]
      %v845 = vld [vmem:[%s372 + $0x1c] sm:$0x1]
      %v846 = vld [vmem:[%s372 + $0x20] sm:$0xf]
      %v847 = vld [vmem:[%s372 + $0x24] sm:$0x1]
      %v848 = vld [vmem:[%s372 + $0x28] sm:$0xf]
      %v849 = vld [vmem:[%s372 + $0x2c] sm:$0x1]
      %v850 = vld [vmem:[%s372 + $0x30] sm:$0xf]
      %v851 = vld [vmem:[%s372 + $0x34] sm:$0x1]
      %v852 = vld [vmem:[%s372 + $0x38] sm:$0xf]
      %v853 = vld [vmem:[%s372 + $0x3c] sm:$0x1]
      %v854 = vld [vmem:[%s372 + $0x40] sm:$0xf]
      %v855 = vld [vmem:[%s372 + $0x44] sm:$0x1]
      %v856 = vld [vmem:[%s372 + $0x48] sm:$0xf]
      %v857 = vld [vmem:[%s372 + $0x4c] sm:$0x1]
      %v859 = vshrl.u32 %v838, 16
      %v861 = vrot.slane %v859, 4
      %v862 = vshll.u32 %v838, 16
      %v864 = vrot.slane %v862, 5
      %v865 = vor.u32 %v861, %v864
      %v866 = vrot.slane %v865, 4
      %v868 = vshll.u32 %v839, 16
      %v870 = vrot.slane %v868, 5
      %v871 = vsel %vm414, %v866, %v870
      %v873 = vshrl.u32 %v840, 16
      %v875 = vrot.slane %v873, 4
      %v876 = vshll.u32 %v840, 16
      %v878 = vrot.slane %v876, 5
      %v879 = vor.u32 %v875, %v878
      %v880 = vrot.slane %v879, 4
      %v882 = vshll.u32 %v841, 16
      %v884 = vrot.slane %v882, 5
      %v885 = vsel %vm414, %v880, %v884
      %v887 = vshrl.u32 %v842, 16
      %v889 = vrot.slane %v887, 4
      %v890 = vshll.u32 %v842, 16
      %v892 = vrot.slane %v890, 5
      %v893 = vor.u32 %v889, %v892
      %v894 = vrot.slane %v893, 4
      %v896 = vshll.u32 %v843, 16
      %v898 = vrot.slane %v896, 5
      %v899 = vsel %vm414, %v894, %v898
      %v901 = vshrl.u32 %v844, 16
      %v903 = vrot.slane %v901, 4
      %v904 = vshll.u32 %v844, 16
      %v906 = vrot.slane %v904, 5
      %v907 = vor.u32 %v903, %v906
      %v908 = vrot.slane %v907, 4
      %v910 = vshll.u32 %v845, 16
      %v912 = vrot.slane %v910, 5
      %v913 = vsel %vm414, %v908, %v912
      %v915 = vshrl.u32 %v846, 16
      %v917 = vrot.slane %v915, 4
      %v918 = vshll.u32 %v846, 16
      %v920 = vrot.slane %v918, 5
      %v921 = vor.u32 %v917, %v920
      %v922 = vrot.slane %v921, 4
      %v924 = vshll.u32 %v847, 16
      %v926 = vrot.slane %v924, 5
      %v927 = vsel %vm414, %v922, %v926
      %v929 = vshrl.u32 %v848, 16
      %v931 = vrot.slane %v929, 4
      %v932 = vshll.u32 %v848, 16
      %v934 = vrot.slane %v932, 5
      %v935 = vor.u32 %v931, %v934
      %v936 = vrot.slane %v935, 4
      %v938 = vshll.u32 %v849, 16
      %v940 = vrot.slane %v938, 5
      %v941 = vsel %vm414, %v936, %v940
      %v943 = vshrl.u32 %v850, 16
      %v945 = vrot.slane %v943, 4
      %v946 = vshll.u32 %v850, 16
      %v948 = vrot.slane %v946, 5
      %v949 = vor.u32 %v945, %v948
      %v950 = vrot.slane %v949, 4
      %v952 = vshll.u32 %v851, 16
      %v954 = vrot.slane %v952, 5
      %v955 = vsel %vm414, %v950, %v954
      %v957 = vshrl.u32 %v852, 16
      %v959 = vrot.slane %v957, 4
      %v960 = vshll.u32 %v852, 16
      %v962 = vrot.slane %v960, 5
      %v963 = vor.u32 %v959, %v962
      %v964 = vrot.slane %v963, 4
      %v966 = vshll.u32 %v853, 16
      %v968 = vrot.slane %v966, 5
      %v969 = vsel %vm414, %v964, %v968
      %v986 = vrot.slane %v838, 5
      %v987 = vrot.slane %v986, 4
      %v988 = vrot.slane %v839, 5
      %v989 = vsel %vm545, %v987, %v988
      %v990 = vrot.slane %v840, 5
      %v991 = vrot.slane %v990, 4
      %v992 = vrot.slane %v841, 5
      %v993 = vsel %vm545, %v991, %v992
      %v994 = vrot.slane %v842, 5
      %v995 = vrot.slane %v994, 4
      %v996 = vrot.slane %v843, 5
      %v997 = vsel %vm545, %v995, %v996
      %v998 = vrot.slane %v844, 5
      %v999 = vrot.slane %v998, 4
      %v1000 = vrot.slane %v845, 5
      %v1001 = vsel %vm545, %v999, %v1000
      %v1002 = vrot.slane %v846, 5
      %v1003 = vrot.slane %v1002, 4
      %v1004 = vrot.slane %v847, 5
      %v1005 = vsel %vm545, %v1003, %v1004
      %v1006 = vrot.slane %v848, 5
      %v1007 = vrot.slane %v1006, 4
      %v1008 = vrot.slane %v849, 5
      %v1009 = vsel %vm545, %v1007, %v1008
      %v1010 = vrot.slane %v850, 5
      %v1011 = vrot.slane %v1010, 4
      %v1012 = vrot.slane %v851, 5
      %v1013 = vsel %vm545, %v1011, %v1012
      %v1014 = vrot.slane %v852, 5
      %v1015 = vrot.slane %v1014, 4
      %v1016 = vrot.slane %v853, 5
      %v1017 = vsel %vm545, %v1015, %v1016
      %v1019 = vshrl.u32 %v854, 16
      %v1021 = vrot.slane %v1019, 4
      %v1022 = vshll.u32 %v854, 16
      %v1024 = vrot.slane %v1022, 5
      %v1025 = vor.u32 %v1021, %v1024
      %v1026 = vrot.slane %v1025, 4
      %v1028 = vshll.u32 %v855, 16
      %v1030 = vrot.slane %v1028, 5
      %v1031 = vsel %vm414, %v1026, %v1030
      %v1034 = vrot.slane %v854, 5
      %v1035 = vrot.slane %v1034, 4
      %v1036 = vrot.slane %v855, 5
      %v1037 = vsel %vm545, %v1035, %v1036
      %v1039 = vshrl.u32 %v856, 16
      %v1041 = vrot.slane %v1039, 4
      %v1042 = vshll.u32 %v856, 16
      %v1044 = vrot.slane %v1042, 5
      %v1045 = vor.u32 %v1041, %v1044
      %v1046 = vrot.slane %v1045, 4
      %v1048 = vshll.u32 %v857, 16
      %v1050 = vrot.slane %v1048, 5
      %v1051 = vsel %vm414, %v1046, %v1050
      %v1054 = vrot.slane %v856, 5
      %v1055 = vrot.slane %v1054, 4
      %v1056 = vrot.slane %v857, 5
      %v1057 = vsel %vm545, %v1055, %v1056
      %v1058 = vunpack.c.l.b16 %v392
      %v1059 = vunpack.c.l.b16 %v394
      %v1060 = vunpack.c.l.b16 %v396
      %v1061 = vunpack.c.l.b16 %v398
      %v1062 = vunpack.c.l.b16 %v400
      %v1063 = vunpack.c.l.b16 %v402
      %v1064 = vunpack.c.l.b16 %v404
      %v1065 = vunpack.c.l.b16 %v406
      %v1066 = vpack.c.b16 %v1059, %v1058
      %v1067 = vpack.c.b16 %v1061, %v1060
      %v1068 = vpack.c.b16 %v1063, %v1062
      %v1069 = vpack.c.b16 %v1065, %v1064
      %v1070 = vunpack.c.l.b16 %v428
      %v1071 = vunpack.c.l.b16 %v442
      %v1072 = vunpack.c.l.b16 %v456
      %v1073 = vunpack.c.l.b16 %v470
      %v1074 = vunpack.c.l.b16 %v484
      %v1075 = vunpack.c.l.b16 %v498
      %v1076 = vunpack.c.l.b16 %v512
      %v1077 = vunpack.c.l.b16 %v526
      %v1078 = vpack.c.b16 %v1071, %v1070
      %v1079 = vpack.c.b16 %v1073, %v1072
      %v1080 = vpack.c.b16 %v1075, %v1074
      %v1081 = vpack.c.b16 %v1077, %v1076
      %1082 = vrot.lane.b32.xlu0 %v1078, 16
      %v1083 = vpop.permute.xlu0 %1082
      %1084 = vrot.lane.b32.xlu0 %v1079, 16
      %v1085 = vpop.permute.xlu0 %1084
      %1086 = vrot.lane.b32.xlu0 %v1080, 16
      %v1087 = vpop.permute.xlu0 %1086
      %1088 = vrot.lane.b32.xlu0 %v1081, 16
      %v1089 = vpop.permute.xlu0 %1088
      %v1090 = vunpack.c.l.b16 %v549
      %v1091 = vunpack.c.l.b16 %v553
      %v1092 = vunpack.c.l.b16 %v557
      %v1093 = vunpack.c.l.b16 %v561
      %v1094 = vunpack.c.l.b16 %v565
      %v1095 = vunpack.c.l.b16 %v569
      %v1096 = vunpack.c.l.b16 %v573
      %v1097 = vunpack.c.l.b16 %v577
      %v1098 = vpack.c.b16 %v1091, %v1090
      %v1099 = vpack.c.b16 %v1093, %v1092
      %v1100 = vpack.c.b16 %v1095, %v1094
      %v1101 = vpack.c.b16 %v1097, %v1096
      %1102 = vrot.lane.b32.xlu0 %v1098, 32
      %v1103 = vpop.permute.xlu0 %1102
      %1104 = vrot.lane.b32.xlu0 %v1099, 32
      %v1105 = vpop.permute.xlu0 %1104
      %1106 = vrot.lane.b32.xlu0 %v1100, 32
      %v1107 = vpop.permute.xlu0 %1106
      %1108 = vrot.lane.b32.xlu0 %v1101, 32
      %v1109 = vpop.permute.xlu0 %1108
      %v1110 = vunpack.c.l.b16 %v408
      %v1111 = vpack.c.b16 %v1060, %v1059
      %v1112 = vpack.c.b16 %v1062, %v1061
      %v1113 = vpack.c.b16 %v1064, %v1063
      %v1114 = vpack.c.b16 %v1110, %v1065
      %1115 = vrot.lane.b32.xlu0 %v1111, 48
      %v1116 = vpop.permute.xlu0 %1115
      %1117 = vrot.lane.b32.xlu0 %v1112, 48
      %v1118 = vpop.permute.xlu0 %1117
      %1119 = vrot.lane.b32.xlu0 %v1113, 48
      %v1120 = vpop.permute.xlu0 %1119
      %1121 = vrot.lane.b32.xlu0 %v1114, 48
      %v1122 = vpop.permute.xlu0 %1121
      %v1123 = vunpack.c.l.b16 %v591
      %v1124 = vpack.c.b16 %v1072, %v1071
      %v1125 = vpack.c.b16 %v1074, %v1073
      %v1126 = vpack.c.b16 %v1076, %v1075
      %v1127 = vpack.c.b16 %v1123, %v1077
      %1128 = vrot.lane.b32.xlu0 %v1124, 64
      %v1129 = vpop.permute.xlu0 %1128
      %1130 = vrot.lane.b32.xlu0 %v1125, 64
      %v1131 = vpop.permute.xlu0 %1130
      %1132 = vrot.lane.b32.xlu0 %v1126, 64
      %v1133 = vpop.permute.xlu0 %1132
      %1134 = vrot.lane.b32.xlu0 %v1127, 64
      %v1135 = vpop.permute.xlu0 %1134
      %v1136 = vunpack.c.l.b16 %v597
      %v1137 = vpack.c.b16 %v1092, %v1091
      %v1138 = vpack.c.b16 %v1094, %v1093
      %v1139 = vpack.c.b16 %v1096, %v1095
      %v1140 = vpack.c.b16 %v1136, %v1097
      %1141 = vrot.lane.b32.xlu0 %v1137, 80
      %v1142 = vpop.permute.xlu0 %1141
      %1143 = vrot.lane.b32.xlu0 %v1138, 80
      %v1144 = vpop.permute.xlu0 %1143
      %1145 = vrot.lane.b32.xlu0 %v1139, 80
      %v1146 = vpop.permute.xlu0 %1145
      %1147 = vrot.lane.b32.xlu0 %v1140, 80
      %v1148 = vpop.permute.xlu0 %1147
      %v1149 = vunpack.c.l.b16 %v410
      %v1150 = vpack.c.b16 %v1149, %v1110
      %1151 = vrot.lane.b32.xlu0 %v1067, 96
      %v1152 = vpop.permute.xlu0 %1151
      %1153 = vrot.lane.b32.xlu0 %v1068, 96
      %v1154 = vpop.permute.xlu0 %1153
      %1155 = vrot.lane.b32.xlu0 %v1069, 96
      %v1156 = vpop.permute.xlu0 %1155
      %1157 = vrot.lane.b32.xlu0 %v1150, 96
      %v1158 = vpop.permute.xlu0 %1157
      %v1159 = vunpack.c.l.b16 %v611
      %v1160 = vpack.c.b16 %v1159, %v1123
      %1161 = vrot.lane.b32.xlu0 %v1079, 112
      %v1162 = vpop.permute.xlu0 %1161
      %1163 = vrot.lane.b32.xlu0 %v1080, 112
      %v1164 = vpop.permute.xlu0 %1163
      %1165 = vrot.lane.b32.xlu0 %v1081, 112
      %v1166 = vpop.permute.xlu0 %1165
      %1167 = vrot.lane.b32.xlu0 %v1160, 112
      %v1168 = vpop.permute.xlu0 %1167
      %v1169 = vunpack.c.l.b16 %v617
      %v1170 = vpack.c.b16 %v1169, %v1136
      %v1171 = vunpack.c.l.b16 %v618
      %v1172 = vunpack.c.l.b16 %v620
      %v1173 = vunpack.c.l.b16 %v622
      %v1174 = vunpack.c.l.b16 %v624
      %v1175 = vunpack.c.l.b16 %v626
      %v1176 = vunpack.c.l.b16 %v628
      %v1177 = vunpack.c.l.b16 %v630
      %v1178 = vunpack.c.l.b16 %v632
      %v1179 = vpack.c.b16 %v1172, %v1171
      %v1180 = vpack.c.b16 %v1174, %v1173
      %v1181 = vpack.c.b16 %v1176, %v1175
      %v1182 = vpack.c.b16 %v1178, %v1177
      %1183 = vrot.lane.b32.xlu0 %v1179, 16
      %v1184 = vpop.permute.xlu0 %1183
      %1185 = vrot.lane.b32.xlu0 %v1180, 16
      %v1186 = vpop.permute.xlu0 %1185
      %1187 = vrot.lane.b32.xlu0 %v1181, 16
      %v1188 = vpop.permute.xlu0 %1187
      %1189 = vrot.lane.b32.xlu0 %v1182, 16
      %v1190 = vpop.permute.xlu0 %1189
      %v1191 = vunpack.c.l.b16 %v651
      %v1192 = vunpack.c.l.b16 %v665
      %v1193 = vunpack.c.l.b16 %v679
      %v1194 = vunpack.c.l.b16 %v693
      %v1195 = vunpack.c.l.b16 %v707
      %v1196 = vunpack.c.l.b16 %v721
      %v1197 = vunpack.c.l.b16 %v735
      %v1198 = vunpack.c.l.b16 %v749
      %v1199 = vpack.c.b16 %v1192, %v1191
      %v1200 = vpack.c.b16 %v1194, %v1193
      %v1201 = vpack.c.b16 %v1196, %v1195
      %v1202 = vpack.c.b16 %v1198, %v1197
      %1203 = vrot.lane.b32.xlu0 %v1199, 32
      %v1204 = vpop.permute.xlu0 %1203
      %1205 = vrot.lane.b32.xlu0 %v1200, 32
      %v1206 = vpop.permute.xlu0 %1205
      %1207 = vrot.lane.b32.xlu0 %v1201, 32
      %v1208 = vpop.permute.xlu0 %1207
      %1209 = vrot.lane.b32.xlu0 %v1202, 32
      %v1210 = vpop.permute.xlu0 %1209
      %v1211 = vunpack.c.l.b16 %v769
      %v1212 = vunpack.c.l.b16 %v773
      %v1213 = vunpack.c.l.b16 %v777
      %v1214 = vunpack.c.l.b16 %v781
      %v1215 = vunpack.c.l.b16 %v785
      %v1216 = vunpack.c.l.b16 %v789
      %v1217 = vunpack.c.l.b16 %v793
      %v1218 = vunpack.c.l.b16 %v797
      %v1219 = vpack.c.b16 %v1212, %v1211
      %v1220 = vpack.c.b16 %v1214, %v1213
      %v1221 = vpack.c.b16 %v1216, %v1215
      %v1222 = vpack.c.b16 %v1218, %v1217
      %1223 = vrot.lane.b32.xlu0 %v1219, 48
      %v1224 = vpop.permute.xlu0 %1223
      %1225 = vrot.lane.b32.xlu0 %v1220, 48
      %v1226 = vpop.permute.xlu0 %1225
      %1227 = vrot.lane.b32.xlu0 %v1221, 48
      %v1228 = vpop.permute.xlu0 %1227
      %1229 = vrot.lane.b32.xlu0 %v1222, 48
      %v1230 = vpop.permute.xlu0 %1229
      %v1231 = vunpack.c.l.b16 %v634
      %v1232 = vpack.c.b16 %v1173, %v1172
      %v1233 = vpack.c.b16 %v1175, %v1174
      %v1234 = vpack.c.b16 %v1177, %v1176
      %v1235 = vpack.c.b16 %v1231, %v1178
      %1236 = vrot.lane.b32.xlu0 %v1232, 64
      %v1237 = vpop.permute.xlu0 %1236
      %1238 = vrot.lane.b32.xlu0 %v1233, 64
      %v1239 = vpop.permute.xlu0 %1238
      %1240 = vrot.lane.b32.xlu0 %v1234, 64
      %v1241 = vpop.permute.xlu0 %1240
      %1242 = vrot.lane.b32.xlu0 %v1235, 64
      %v1243 = vpop.permute.xlu0 %1242
      %v1244 = vunpack.c.l.b16 %v811
      %v1245 = vpack.c.b16 %v1193, %v1192
      %v1246 = vpack.c.b16 %v1195, %v1194
      %v1247 = vpack.c.b16 %v1197, %v1196
      %v1248 = vpack.c.b16 %v1244, %v1198
      %1249 = vrot.lane.b32.xlu0 %v1245, 80
      %v1250 = vpop.permute.xlu0 %1249
      %1251 = vrot.lane.b32.xlu0 %v1246, 80
      %v1252 = vpop.permute.xlu0 %1251
      %1253 = vrot.lane.b32.xlu0 %v1247, 80
      %v1254 = vpop.permute.xlu0 %1253
      %1255 = vrot.lane.b32.xlu0 %v1248, 80
      %v1256 = vpop.permute.xlu0 %1255
      %v1257 = vunpack.c.l.b16 %v817
      %v1258 = vpack.c.b16 %v1213, %v1212
      %v1259 = vpack.c.b16 %v1215, %v1214
      %v1260 = vpack.c.b16 %v1217, %v1216
      %v1261 = vpack.c.b16 %v1257, %v1218
      %1262 = vrot.lane.b32.xlu0 %v1258, 96
      %v1263 = vpop.permute.xlu0 %1262
      %1264 = vrot.lane.b32.xlu0 %v1259, 96
      %v1265 = vpop.permute.xlu0 %1264
      %1266 = vrot.lane.b32.xlu0 %v1260, 96
      %v1267 = vpop.permute.xlu0 %1266
      %1268 = vrot.lane.b32.xlu0 %v1261, 96
      %v1269 = vpop.permute.xlu0 %1268
      %v1270 = vunpack.c.l.b16 %v636
      %v1271 = vpack.c.b16 %v1270, %v1231
      %1272 = vrot.lane.b32.xlu0 %v1180, 112
      %v1273 = vpop.permute.xlu0 %1272
      %1274 = vrot.lane.b32.xlu0 %v1181, 112
      %v1275 = vpop.permute.xlu0 %1274
      %1276 = vrot.lane.b32.xlu0 %v1182, 112
      %v1277 = vpop.permute.xlu0 %1276
      %1278 = vrot.lane.b32.xlu0 %v1271, 112
      %v1279 = vpop.permute.xlu0 %1278
      %vm1280 = vcmask 130048
      %v1283 = vsel %vm1280, %v1066, %v1083
      %v1286 = vsel %vm1280, %v1067, %v1085
      %v1289 = vsel %vm1280, %v1068, %v1087
      %v1292 = vsel %vm1280, %v1069, %v1089
      %vm1293 = vcmask 261120
      %v1295 = vsel %vm1293, %v1283, %v1103
      %v1297 = vsel %vm1293, %v1286, %v1105
      %v1299 = vsel %vm1293, %v1289, %v1107
      %v1301 = vsel %vm1293, %v1292, %v1109
      %vm1302 = vcmask 392192
      %v1304 = vsel %vm1302, %v1295, %v1116
      %v1306 = vsel %vm1302, %v1297, %v1118
      %v1308 = vsel %vm1302, %v1299, %v1120
      %v1310 = vsel %vm1302, %v1301, %v1122
      %vm1311 = vcmask 523264
      %v1313 = vsel %vm1311, %v1304, %v1129
      %v1315 = vsel %vm1311, %v1306, %v1131
      %v1317 = vsel %vm1311, %v1308, %v1133
      %v1319 = vsel %vm1311, %v1310, %v1135
      %vm1320 = vcmask 654336
      %v1322 = vsel %vm1320, %v1313, %v1142
      %v1324 = vsel %vm1320, %v1315, %v1144
      %v1326 = vsel %vm1320, %v1317, %v1146
      %v1328 = vsel %vm1320, %v1319, %v1148
      %vm1329 = vcmask 785408
      %v1331 = vsel %vm1329, %v1322, %v1152
      %v1333 = vsel %vm1329, %v1324, %v1154
      %v1335 = vsel %vm1329, %v1326, %v1156
      %v1337 = vsel %vm1329, %v1328, %v1158
      %vm1338 = vcmask 916480
      %v1340 = vsel %vm1338, %v1331, %v1162
      %v1343 = vsel %vm1338, %v1333, %v1164
      %v1346 = vsel %vm1338, %v1335, %v1166
      %v1349 = vsel %vm1338, %v1337, %v1168
      %v1353 = vsel %vm1280, %v1099, %v1184
      %v1356 = vsel %vm1280, %v1100, %v1186
      %v1359 = vsel %vm1280, %v1101, %v1188
      %v1362 = vsel %vm1280, %v1170, %v1190
      %v1364 = vsel %vm1293, %v1353, %v1204
      %v1366 = vsel %vm1293, %v1356, %v1206
      %v1368 = vsel %vm1293, %v1359, %v1208
      %v1370 = vsel %vm1293, %v1362, %v1210
      %v1372 = vsel %vm1302, %v1364, %v1224
      %v1374 = vsel %vm1302, %v1366, %v1226
      %v1376 = vsel %vm1302, %v1368, %v1228
      %v1378 = vsel %vm1302, %v1370, %v1230
      %v1380 = vsel %vm1311, %v1372, %v1237
      %v1382 = vsel %vm1311, %v1374, %v1239
      %v1384 = vsel %vm1311, %v1376, %v1241
      %v1386 = vsel %vm1311, %v1378, %v1243
      %v1388 = vsel %vm1320, %v1380, %v1250
      %v1390 = vsel %vm1320, %v1382, %v1252
      %v1392 = vsel %vm1320, %v1384, %v1254
      %v1394 = vsel %vm1320, %v1386, %v1256
      %v1396 = vsel %vm1329, %v1388, %v1263
      %v1398 = vsel %vm1329, %v1390, %v1265
      %v1400 = vsel %vm1329, %v1392, %v1267
      %v1402 = vsel %vm1329, %v1394, %v1269
      %v1404 = vsel %vm1338, %v1396, %v1273
      %v1407 = vsel %vm1338, %v1398, %v1275
      %v1410 = vsel %vm1338, %v1400, %v1277
      %v1413 = vsel %vm1338, %v1402, %v1279
      %v1415 = vunpack.c.l.b16 %v831
      %v1416 = vpack.c.b16 %v1415, %v1244
      %v1417 = vunpack.c.l.b16 %v837
      %v1418 = vpack.c.b16 %v1417, %v1257
      %1419 = vrot.lane.b32.xlu0 %v1220, 16
      %v1420 = vpop.permute.xlu0 %1419
      %1421 = vrot.lane.b32.xlu0 %v1221, 16
      %v1422 = vpop.permute.xlu0 %1421
      %1423 = vrot.lane.b32.xlu0 %v1222, 16
      %v1424 = vpop.permute.xlu0 %1423
      %1425 = vrot.lane.b32.xlu0 %v1418, 16
      %v1426 = vpop.permute.xlu0 %1425
      %v1427 = vunpack.c.l.b16 %v838
      %v1428 = vunpack.c.l.b16 %v840
      %v1429 = vunpack.c.l.b16 %v842
      %v1430 = vunpack.c.l.b16 %v844
      %v1431 = vunpack.c.l.b16 %v846
      %v1432 = vunpack.c.l.b16 %v848
      %v1433 = vunpack.c.l.b16 %v850
      %v1434 = vunpack.c.l.b16 %v852
      %v1435 = vpack.c.b16 %v1428, %v1427
      %v1436 = vpack.c.b16 %v1430, %v1429
      %v1437 = vpack.c.b16 %v1432, %v1431
      %v1438 = vpack.c.b16 %v1434, %v1433
      %1439 = vrot.lane.b32.xlu0 %v1435, 32
      %v1440 = vpop.permute.xlu0 %1439
      %1441 = vrot.lane.b32.xlu0 %v1436, 32
      %v1442 = vpop.permute.xlu0 %1441
      %1443 = vrot.lane.b32.xlu0 %v1437, 32
      %v1444 = vpop.permute.xlu0 %1443
      %1445 = vrot.lane.b32.xlu0 %v1438, 32
      %v1446 = vpop.permute.xlu0 %1445
      %v1447 = vunpack.c.l.b16 %v871
      %v1448 = vunpack.c.l.b16 %v885
      %v1449 = vunpack.c.l.b16 %v899
      %v1450 = vunpack.c.l.b16 %v913
      %v1451 = vunpack.c.l.b16 %v927
      %v1452 = vunpack.c.l.b16 %v941
      %v1453 = vunpack.c.l.b16 %v955
      %v1454 = vunpack.c.l.b16 %v969
      %v1455 = vpack.c.b16 %v1448, %v1447
      %v1456 = vpack.c.b16 %v1450, %v1449
      %v1457 = vpack.c.b16 %v1452, %v1451
      %v1458 = vpack.c.b16 %v1454, %v1453
      %1459 = vrot.lane.b32.xlu0 %v1455, 48
      %v1460 = vpop.permute.xlu0 %1459
      %1461 = vrot.lane.b32.xlu0 %v1456, 48
      %v1462 = vpop.permute.xlu0 %1461
      %1463 = vrot.lane.b32.xlu0 %v1457, 48
      %v1464 = vpop.permute.xlu0 %1463
      %1465 = vrot.lane.b32.xlu0 %v1458, 48
      %v1466 = vpop.permute.xlu0 %1465
      %v1467 = vunpack.c.l.b16 %v989
      %v1468 = vunpack.c.l.b16 %v993
      %v1469 = vunpack.c.l.b16 %v997
      %v1470 = vunpack.c.l.b16 %v1001
      %v1471 = vunpack.c.l.b16 %v1005
      %v1472 = vunpack.c.l.b16 %v1009
      %v1473 = vunpack.c.l.b16 %v1013
      %v1474 = vunpack.c.l.b16 %v1017
      %v1475 = vpack.c.b16 %v1468, %v1467
      %v1476 = vpack.c.b16 %v1470, %v1469
      %v1477 = vpack.c.b16 %v1472, %v1471
      %v1478 = vpack.c.b16 %v1474, %v1473
      %1479 = vrot.lane.b32.xlu0 %v1475, 64
      %v1480 = vpop.permute.xlu0 %1479
      %1481 = vrot.lane.b32.xlu0 %v1476, 64
      %v1482 = vpop.permute.xlu0 %1481
      %1483 = vrot.lane.b32.xlu0 %v1477, 64
      %v1484 = vpop.permute.xlu0 %1483
      %1485 = vrot.lane.b32.xlu0 %v1478, 64
      %v1486 = vpop.permute.xlu0 %1485
      %v1487 = vunpack.c.l.b16 %v854
      %v1488 = vpack.c.b16 %v1429, %v1428
      %v1489 = vpack.c.b16 %v1431, %v1430
      %v1490 = vpack.c.b16 %v1433, %v1432
      %v1491 = vpack.c.b16 %v1487, %v1434
      %1492 = vrot.lane.b32.xlu0 %v1488, 80
      %v1493 = vpop.permute.xlu0 %1492
      %1494 = vrot.lane.b32.xlu0 %v1489, 80
      %v1495 = vpop.permute.xlu0 %1494
      %1496 = vrot.lane.b32.xlu0 %v1490, 80
      %v1497 = vpop.permute.xlu0 %1496
      %1498 = vrot.lane.b32.xlu0 %v1491, 80
      %v1499 = vpop.permute.xlu0 %1498
      %v1500 = vunpack.c.l.b16 %v1031
      %v1501 = vpack.c.b16 %v1449, %v1448
      %v1502 = vpack.c.b16 %v1451, %v1450
      %v1503 = vpack.c.b16 %v1453, %v1452
      %v1504 = vpack.c.b16 %v1500, %v1454
      %1505 = vrot.lane.b32.xlu0 %v1501, 96
      %v1506 = vpop.permute.xlu0 %1505
      %1507 = vrot.lane.b32.xlu0 %v1502, 96
      %v1508 = vpop.permute.xlu0 %1507
      %1509 = vrot.lane.b32.xlu0 %v1503, 96
      %v1510 = vpop.permute.xlu0 %1509
      %1511 = vrot.lane.b32.xlu0 %v1504, 96
      %v1512 = vpop.permute.xlu0 %1511
      %v1513 = vunpack.c.l.b16 %v1037
      %v1514 = vpack.c.b16 %v1469, %v1468
      %v1515 = vpack.c.b16 %v1471, %v1470
      %v1516 = vpack.c.b16 %v1473, %v1472
      %v1517 = vpack.c.b16 %v1513, %v1474
      %1518 = vrot.lane.b32.xlu0 %v1514, 112
      %v1519 = vpop.permute.xlu0 %1518
      %1520 = vrot.lane.b32.xlu0 %v1515, 112
      %v1521 = vpop.permute.xlu0 %1520
      %1522 = vrot.lane.b32.xlu0 %v1516, 112
      %v1523 = vpop.permute.xlu0 %1522
      %1524 = vrot.lane.b32.xlu0 %v1517, 112
      %v1525 = vpop.permute.xlu0 %1524
      %v1526 = vunpack.c.l.b16 %v856
      %v1527 = vpack.c.b16 %v1526, %v1487
      %v1528 = vunpack.c.l.b16 %v1051
      %v1529 = vpack.c.b16 %v1528, %v1500
      %1530 = vrot.lane.b32.xlu0 %v1456, 16
      %v1531 = vpop.permute.xlu0 %1530
      %1532 = vrot.lane.b32.xlu0 %v1457, 16
      %v1533 = vpop.permute.xlu0 %1532
      %1534 = vrot.lane.b32.xlu0 %v1458, 16
      %v1535 = vpop.permute.xlu0 %1534
      %1536 = vrot.lane.b32.xlu0 %v1529, 16
      %v1537 = vpop.permute.xlu0 %1536
      %v1538 = vunpack.c.l.b16 %v1057
      %v1539 = vpack.c.b16 %v1538, %v1513
      %1540 = vrot.lane.b32.xlu0 %v1476, 32
      %v1541 = vpop.permute.xlu0 %1540
      %1542 = vrot.lane.b32.xlu0 %v1477, 32
      %v1543 = vpop.permute.xlu0 %1542
      %1544 = vrot.lane.b32.xlu0 %v1478, 32
      %v1545 = vpop.permute.xlu0 %1544
      %1546 = vrot.lane.b32.xlu0 %v1539, 32
      %v1547 = vpop.permute.xlu0 %1546
      %v1550 = vsel %vm1280, %v1200, %v1420
      %v1553 = vsel %vm1280, %v1201, %v1422
      %v1556 = vsel %vm1280, %v1202, %v1424
      %v1559 = vsel %vm1280, %v1416, %v1426
      %v1561 = vsel %vm1293, %v1550, %v1440
      %v1563 = vsel %vm1293, %v1553, %v1442
      %v1565 = vsel %vm1293, %v1556, %v1444
      %v1567 = vsel %vm1293, %v1559, %v1446
      %v1569 = vsel %vm1302, %v1561, %v1460
      %v1571 = vsel %vm1302, %v1563, %v1462
      %v1573 = vsel %vm1302, %v1565, %v1464
      %v1575 = vsel %vm1302, %v1567, %v1466
      %v1577 = vsel %vm1311, %v1569, %v1480
      %v1579 = vsel %vm1311, %v1571, %v1482
      %v1581 = vsel %vm1311, %v1573, %v1484
      %v1583 = vsel %vm1311, %v1575, %v1486
      %v1585 = vsel %vm1320, %v1577, %v1493
      %v1587 = vsel %vm1320, %v1579, %v1495
      %v1589 = vsel %vm1320, %v1581, %v1497
      %v1591 = vsel %vm1320, %v1583, %v1499
      %v1593 = vsel %vm1329, %v1585, %v1506
      %v1595 = vsel %vm1329, %v1587, %v1508
      %v1597 = vsel %vm1329, %v1589, %v1510
      %v1599 = vsel %vm1329, %v1591, %v1512
      %v1601 = vsel %vm1338, %v1593, %v1519
      %v1604 = vsel %vm1338, %v1595, %v1521
      %v1607 = vsel %vm1338, %v1597, %v1523
      %v1610 = vsel %vm1338, %v1599, %v1525
      %v1614 = vsel %vm1280, %v1436, %v1531
      %v1617 = vsel %vm1280, %v1437, %v1533
      %v1620 = vsel %vm1280, %v1438, %v1535
      %v1623 = vsel %vm1280, %v1527, %v1537
      %v1625 = vsel %vm1293, %v1614, %v1541
      %v1627 = vsel %vm1293, %v1617, %v1543
      %v1629 = vsel %vm1293, %v1620, %v1545
      %v1631 = vsel %vm1293, %v1623, %v1547
      %v1632 = vld [vmem:[%s3] sm:$0xf]
      %v1633 = vld [vmem:[%s3 + $0x4] sm:$0xf]
      %v1634 = vld [vmem:[%s3 + $0x8] sm:$0xf]
      %v1635 = vld [vmem:[%s3 + $0xc] sm:$0xf]
      %v1636 = vld [vmem:[%s3 + $0x10] sm:$0xf]
      %v1637 = vld [vmem:[%s3 + $0x14] sm:$0xf]
      %v1638 = vld [vmem:[%s3 + $0x18] sm:$0xf]
      %v1639 = vld [vmem:[%s3 + $0x1c] sm:$0xf]
      %v1640 = vld [vmem:[%s3 + $0x20] sm:$0xf]
      %v1641 = vld [vmem:[%s3 + $0x24] sm:$0xf]
      %v1642 = vld [vmem:[%s3 + $0x28] sm:$0xf]
      %v1643 = vld [vmem:[%s3 + $0x2c] sm:$0xf]
      %v1644 = vld [vmem:[%s3 + $0x30] sm:$0xf]
      %v1645 = vld [vmem:[%s3 + $0x34] sm:$0xf]
      %v1646 = vld [vmem:[%s3 + $0x38] sm:$0xf]
      %v1647 = vld [vmem:[%s3 + $0x3c] sm:$0xf]
      %v1648 = vld [vmem:[%s3 + $0x40] sm:$0xf]
      %v1649 = vld [vmem:[%s3 + $0x44] sm:$0xf]
      %v1650 = vld [vmem:[%s3 + $0x48] sm:$0xf]
      %v1651 = vld [vmem:[%s3 + $0x4c] sm:$0xf]
      %v1652 = vld [vmem:[%s3 + $0x50] sm:$0xf]
      %v1653 = vld [vmem:[%s3 + $0x54] sm:$0xf]
      %v1654 = vld [vmem:[%s3 + $0x58] sm:$0xf]
      %v1655 = vld [vmem:[%s3 + $0x5c] sm:$0xf]
      %v1656 = vld [vmem:[%s3 + $0x60] sm:$0xf]
      %v1657 = vld [vmem:[%s3 + $0x64] sm:$0xf]
      %v1658 = vld [vmem:[%s3 + $0x68] sm:$0xf]
      %v1659 = vld [vmem:[%s3 + $0x6c] sm:$0xf]
      %v1660 = vld [vmem:[%s3 + $0x70] sm:$0xf]
      %v1661 = vld [vmem:[%s3 + $0x74] sm:$0xf]
      %v1662 = vld [vmem:[%s3 + $0x78] sm:$0xf]
      %v1663 = vld [vmem:[%s3 + $0x7c] sm:$0xf]
      %v1664 = vld [vmem:[%s3 + $0x80] sm:$0xf]
      %v1665 = vld [vmem:[%s3 + $0x84] sm:$0xf]
      %v1666 = vld [vmem:[%s3 + $0x88] sm:$0xf]
      %v1667 = vld [vmem:[%s3 + $0x8c] sm:$0xf]
      %v1668 = vld [vmem:[%s3 + $0x90] sm:$0xf]
      %v1669 = vld [vmem:[%s3 + $0x94] sm:$0xf]
      %v1670 = vld [vmem:[%s3 + $0x98] sm:$0xf]
      %v1671 = vld [vmem:[%s3 + $0x9c] sm:$0xf]
      %v1672 = vld [vmem:[%s3 + $0xa0] sm:$0xf]
      %v1673 = vld [vmem:[%s3 + $0xa4] sm:$0xf]
      %v1674 = vld [vmem:[%s3 + $0xa8] sm:$0xf]
      %v1675 = vld [vmem:[%s3 + $0xac] sm:$0xf]
      %v1676 = vld [vmem:[%s3 + $0xb0] sm:$0xf]
      %v1677 = vld [vmem:[%s3 + $0xb4] sm:$0xf]
      %v1678 = vld [vmem:[%s3 + $0xb8] sm:$0xf]
      %v1679 = vld [vmem:[%s3 + $0xbc] sm:$0xf]
      %v1680 = vld [vmem:[%s3 + $0xc0] sm:$0xf]
      %v1681 = vld [vmem:[%s3 + $0xc4] sm:$0xf]
      %v1682 = vld [vmem:[%s3 + $0xc8] sm:$0xf]
      %v1683 = vld [vmem:[%s3 + $0xcc] sm:$0xf]
      %v1684 = vld [vmem:[%s3 + $0xd0] sm:$0xf]
      %v1685 = vld [vmem:[%s3 + $0xd4] sm:$0xf]
      %v1686 = vld [vmem:[%s4] sm:$0x1]
      %v1688 = vlaneseq
      %v1689 = vshrl.u32 %v1688, 7
      %v1690 = vsub.s32 0, %v1689
      %v1691 = vrot.slane %v1686, %v1690
      %v1747 = vunpack.c.l.b16 %v1632
      %v1748 = vunpack.c.l.b16 %v1633
      %v1749 = vunpack.c.l.b16 %v1634
      %v1750 = vunpack.c.l.b16 %v1635
      %v1751 = vunpack.c.l.b16 %v1636
      %v1752 = vunpack.c.l.b16 %v1637
      %v1753 = vunpack.c.l.b16 %v1638
      %v1754 = vunpack.c.l.b16 %v1639
      %v1755 = vunpack.c.l.b16 %v1640
      %v1756 = vunpack.c.l.b16 %v1641
      %v1757 = vunpack.c.l.b16 %v1642
      %v1758 = vunpack.c.l.b16 %v1643
      %v1759 = vunpack.c.l.b16 %v1644
      %v1760 = vunpack.c.l.b16 %v1645
      %v1761 = vunpack.c.l.b16 %v1646
      %v1762 = vunpack.c.l.b16 %v1647
      %v1763 = vunpack.c.l.b16 %v1648
      %v1764 = vunpack.c.l.b16 %v1649
      %v1765 = vunpack.c.l.b16 %v1650
      %v1766 = vunpack.c.l.b16 %v1651
      %v1767 = vunpack.c.l.b16 %v1652
      %v1768 = vunpack.c.l.b16 %v1653
      %v1769 = vunpack.c.l.b16 %v1654
      %v1770 = vunpack.c.l.b16 %v1655
      %v1771 = vunpack.c.l.b16 %v1656
      %v1772 = vunpack.c.l.b16 %v1657
      %v1773 = vunpack.c.l.b16 %v1658
      %v1774 = vunpack.c.l.b16 %v1659
      %v1775 = vunpack.c.l.b16 %v1660
      %v1776 = vunpack.c.l.b16 %v1661
      %v1777 = vunpack.c.l.b16 %v1662
      %v1778 = vunpack.c.l.b16 %v1663
      %v1779 = vunpack.c.l.b16 %v1664
      %v1780 = vunpack.c.l.b16 %v1665
      %v1781 = vunpack.c.l.b16 %v1666
      %v1782 = vunpack.c.l.b16 %v1667
      %v1783 = vunpack.c.l.b16 %v1668
      %v1784 = vunpack.c.l.b16 %v1669
      %v1785 = vunpack.c.l.b16 %v1670
      %v1786 = vunpack.c.l.b16 %v1671
      %v1787 = vunpack.c.l.b16 %v1672
      %v1788 = vunpack.c.l.b16 %v1673
      %v1789 = vunpack.c.l.b16 %v1674
      %v1790 = vunpack.c.l.b16 %v1675
      %v1791 = vunpack.c.l.b16 %v1676
      %v1792 = vunpack.c.l.b16 %v1677
      %v1793 = vunpack.c.l.b16 %v1678
      %v1794 = vunpack.c.l.b16 %v1679
      %v1795 = vunpack.c.l.b16 %v1680
      %v1796 = vunpack.c.l.b16 %v1681
      %v1797 = vunpack.c.l.b16 %v1682
      %v1798 = vunpack.c.l.b16 %v1683
      %v1799 = vunpack.c.l.b16 %v1684
      %v1800 = vunpack.c.l.b16 %v1685
      %v1801 = vpack.c.b16 %v1748, %v1747
      %v1802 = vpack.c.b16 %v1750, %v1749
      %v1803 = vpack.c.b16 %v1752, %v1751
      %v1804 = vpack.c.b16 %v1754, %v1753
      %v1805 = vpack.c.b16 %v1756, %v1755
      %v1806 = vpack.c.b16 %v1758, %v1757
      %v1807 = vpack.c.b16 %v1760, %v1759
      %v1808 = vpack.c.b16 %v1762, %v1761
      %v1809 = vpack.c.b16 %v1764, %v1763
      %v1810 = vpack.c.b16 %v1766, %v1765
      %v1811 = vpack.c.b16 %v1768, %v1767
      %v1812 = vpack.c.b16 %v1770, %v1769
      %v1813 = vpack.c.b16 %v1772, %v1771
      %v1814 = vpack.c.b16 %v1774, %v1773
      %v1815 = vpack.c.b16 %v1776, %v1775
      %v1816 = vpack.c.b16 %v1778, %v1777
      %v1817 = vpack.c.b16 %v1780, %v1779
      %v1818 = vpack.c.b16 %v1782, %v1781
      %v1819 = vpack.c.b16 %v1784, %v1783
      %v1820 = vpack.c.b16 %v1786, %v1785
      %v1821 = vpack.c.b16 %v1788, %v1787
      %v1822 = vpack.c.b16 %v1790, %v1789
      %v1823 = vpack.c.b16 %v1792, %v1791
      %v1824 = vpack.c.b16 %v1794, %v1793
      %v1825 = vpack.c.b16 %v1796, %v1795
      %v1826 = vpack.c.b16 %v1798, %v1797
      %v1827 = vpack.c.b16 %v1800, %v1799
      %v1855 = vsel %vm1302, %v1625, 0
      %v1857 = vsel %vm1302, %v1627, 0
      %v1859 = vsel %vm1302, %v1629, 0
      %v1861 = vsel %vm1302, %v1631, 0
      %1863 = vmatprep.subr.bf16.mxu0 0
      %1864 = vmatpush1.bf16.msra.mxu0 %v1801
      %1865 = vmatprep.subr.bf16.mxu0 0
      %1866 = vmatpush1.bf16.msra.mxu0 %v1802
      %1867 = vmatprep.subr.bf16.mxu0 0
      %1868 = vmatpush1.bf16.msra.mxu0 %v1803
      %1869 = vmatprep.subr.bf16.mxu0 0
      %1870 = vmatpush1.bf16.msra.mxu0 %v1804
      %1871 = vmatprep.subr.bf16.mxu0 0
      %1872 = vmatpush1.bf16.msra.mxu0 %v1805
      %1873 = vmatprep.subr.bf16.mxu0 0
      %1874 = vmatpush1.bf16.msra.mxu0 %v1806
      %1875 = vmatprep.subr.bf16.mxu0 0
      %1876 = vmatpush1.bf16.msra.mxu0 %v1807
      %1877 = vmatprep.subr.bf16.mxu0 0
      %1878 = vmatpush1.bf16.msra.mxu0 %v1808
      %1879 = vmatprep.subr.bf16.mxu0 0
      %1880 = vmatpush1.bf16.msra.mxu0 %v1809
      %1881 = vmatprep.subr.bf16.mxu0 0
      %1882 = vmatpush1.bf16.msra.mxu0 %v1810
      %1883 = vmatprep.subr.bf16.mxu0 0
      %1884 = vmatpush1.bf16.msra.mxu0 %v1811
      %1885 = vmatprep.subr.bf16.mxu0 0
      %1886 = vmatpush1.bf16.msra.mxu0 %v1812
      %1887 = vmatprep.subr.bf16.mxu0 0
      %1888 = vmatpush1.bf16.msra.mxu0 %v1813
      %1889 = vmatprep.subr.bf16.mxu0 0
      %1890 = vmatpush1.bf16.msra.mxu0 %v1814
      %1891 = vmatprep.subr.bf16.mxu0 0
      %1892 = vmatpush1.bf16.msra.mxu0 %v1815
      %1893 = vmatprep.subr.bf16.mxu0 0
      %1894 = vmatpush1.bf16.msra.mxu0 %v1816
      %1895 = vmatprep.mubr.bf16.mxu0 %v1404
      %1896 = vmatmul.mubr.bf16.gmra.mrb[0].mxu0 %v1340
      %v1897 = vpop.f32.mrb[0].mxu0
      %v1898 = vadd.f32 %v1691, %v1897
      %v1899 = vpop.f32.mrb[0].mxu0
      %v1900 = vpop.f32.mrb[0].mxu0
      %v1901 = vadd.f32 %v1691, %v1900
      %v1902 = vpop.f32.mrb[0].mxu0
      %1903 = vmatprep.mubr.bf16.mxu0 %v1407
      %1904 = vmatmul.mubr.bf16.gmra.mrb[0].mxu0 %v1343
      %v1905 = vpop.f32.mrb[0].mxu0
      %v1906 = vadd.f32 %v1691, %v1905
      %v1907 = vpop.f32.mrb[0].mxu0
      %v1908 = vpop.f32.mrb[0].mxu0
      %v1909 = vadd.f32 %v1691, %v1908
      %v1910 = vpop.f32.mrb[0].mxu0
      %1911 = vmatprep.mubr.bf16.mxu0 %v1410
      %1912 = vmatmul.mubr.bf16.gmra.mrb[0].mxu0 %v1346
      %v1913 = vpop.f32.mrb[0].mxu0
      %v1914 = vadd.f32 %v1691, %v1913
      %v1915 = vpop.f32.mrb[0].mxu0
      %v1916 = vpop.f32.mrb[0].mxu0
      %v1917 = vadd.f32 %v1691, %v1916
      %v1918 = vpop.f32.mrb[0].mxu0
      %1919 = vmatprep.mubr.bf16.mxu0 %v1413
      %1920 = vmatmul.mubr.bf16.gmra.mrb[0].mxu0 %v1349
      %v1921 = vpop.f32.mrb[0].mxu0
      %v1922 = vadd.f32 %v1691, %v1921
      %v1923 = vpop.f32.mrb[0].mxu0
      %v1924 = vpop.f32.mrb[0].mxu0
      %v1925 = vadd.f32 %v1691, %v1924
      %v1926 = vpop.f32.mrb[0].mxu0
      %1927 = vdwg.mxu0
      %1928 = vmatprep.subr.bf16.mxu0 0
      %1929 = vmatpush1.bf16.msra.mxu0 %v1817
      %1930 = vmatprep.subr.bf16.mxu0 0
      %1931 = vmatpush1.bf16.msra.mxu0 %v1818
      %1932 = vmatprep.subr.bf16.mxu0 0
      %1933 = vmatpush1.bf16.msra.mxu0 %v1819
      %1934 = vmatprep.subr.bf16.mxu0 0
      %1935 = vmatpush1.bf16.msra.mxu0 %v1820
      %1936 = vmatprep.subr.bf16.mxu0 0
      %1937 = vmatpush1.bf16.msra.mxu0 %v1821
      %1938 = vmatprep.subr.bf16.mxu0 0
      %1939 = vmatpush1.bf16.msra.mxu0 %v1822
      %1940 = vmatprep.subr.bf16.mxu0 0
      %1941 = vmatpush1.bf16.msra.mxu0 %v1823
      %1942 = vmatprep.subr.bf16.mxu0 0
      %1943 = vmatpush1.bf16.msra.mxu0 %v1824
      %1944 = vmatprep.subr.bf16.mxu0 0
      %1945 = vmatpush1.bf16.msra.mxu0 %v1825
      %1946 = vmatprep.subr.bf16.mxu0 0
      %1947 = vmatpush1.bf16.msra.mxu0 %v1826
      %1948 = vmatprep.subr.bf16.mxu0 0
      %1949 = vmatpush1.bf16.msra.mxu0 %v1827
      %1950 = vmatprep.subr.bf16.mxu0 0
      %1951 = vmatpush1.bf16.msra.mxu0 0
      %1952 = vmatprep.subr.bf16.mxu0 0
      %1953 = vmatpush1.bf16.msra.mxu0 0
      %1954 = vmatprep.subr.bf16.mxu0 0
      %1955 = vmatpush1.bf16.msra.mxu0 0
      %1956 = vmatprep.subr.bf16.mxu0 0
      %1957 = vmatpush1.bf16.msra.mxu0 0
      %1958 = vmatprep.subr.bf16.mxu0 0
      %1959 = vmatpush1.bf16.msra.mxu0 0
      %1960 = vmatprep.mubr.bf16.mxu0 %v1855
      %1961 = vmatmul.mubr.bf16.gmra.mrb[0].mxu0 %v1601
      %v1962 = vpop.f32.mrb[0].mxu0
      %v1963 = vadd.f32 %v1898, %v1962
      %v1964 = vpop.f32.mrb[0].mxu0
      %v1965 = vpop.f32.mrb[0].mxu0
      %v1966 = vadd.f32 %v1901, %v1965
      %v1967 = vpop.f32.mrb[0].mxu0
      %1968 = vmatprep.mubr.bf16.mxu0 %v1857
      %1969 = vmatmul.mubr.bf16.gmra.mrb[0].mxu0 %v1604
      %v1970 = vpop.f32.mrb[0].mxu0
      %v1971 = vadd.f32 %v1906, %v1970
      %v1972 = vpop.f32.mrb[0].mxu0
      %v1973 = vpop.f32.mrb[0].mxu0
      %v1974 = vadd.f32 %v1909, %v1973
      %v1975 = vpop.f32.mrb[0].mxu0
      %1976 = vmatprep.mubr.bf16.mxu0 %v1859
      %1977 = vmatmul.mubr.bf16.gmra.mrb[0].mxu0 %v1607
      %v1978 = vpop.f32.mrb[0].mxu0
      %v1979 = vadd.f32 %v1914, %v1978
      %v1980 = vpop.f32.mrb[0].mxu0
      %v1981 = vpop.f32.mrb[0].mxu0
      %v1982 = vadd.f32 %v1917, %v1981
      %v1983 = vpop.f32.mrb[0].mxu0
      %1984 = vmatprep.mubr.bf16.mxu0 %v1861
      %1985 = vmatmul.mubr.bf16.gmra.mrb[0].mxu0 %v1610
      %v1986 = vpop.f32.mrb[0].mxu0
      %v1987 = vadd.f32 %v1922, %v1986
      %v1988 = vpop.f32.mrb[0].mxu0
      %v1989 = vpop.f32.mrb[0].mxu0
      %v1990 = vadd.f32 %v1925, %v1989
      %v1991 = vpop.f32.mrb[0].mxu0
      %1992 = vdwg.mxu0
      %v1993 = vmul.f32 %v1963, %v1963
      %v1994 = vmul.f32 %v1966, %v1966
      %v1995 = vmul.f32 %v1971, %v1971
      %v1996 = vmul.f32 %v1974, %v1974
      %v1997 = vmul.f32 %v1979, %v1979
      %v1998 = vmul.f32 %v1982, %v1982
      %v1999 = vmul.f32 %v1987, %v1987
      %v2000 = vmul.f32 %v1990, %v1990
      %2009 = vrot.lane.b32.xlu0 %v1993, 120
      %v2010 = vpop.permute.xlu0 %2009
      %2011 = vrot.lane.b32.xlu0 %v1994, 120
      %v2012 = vpop.permute.xlu0 %2011
      %2013 = vrot.lane.b32.xlu0 %v1995, 120
      %v2014 = vpop.permute.xlu0 %2013
      %2015 = vrot.lane.b32.xlu0 %v1996, 120
      %v2016 = vpop.permute.xlu0 %2015
      %2017 = vrot.lane.b32.xlu0 %v1997, 120
      %v2018 = vpop.permute.xlu0 %2017
      %2019 = vrot.lane.b32.xlu0 %v1998, 120
      %v2020 = vpop.permute.xlu0 %2019
      %2021 = vrot.lane.b32.xlu0 %v1999, 120
      %v2022 = vpop.permute.xlu0 %2021
      %2023 = vrot.lane.b32.xlu0 %v2000, 120
      %v2024 = vpop.permute.xlu0 %2023
      %v2033 = vadd.f32 %v1993, %v2010
      %v2034 = vadd.f32 %v1994, %v2012
      %v2035 = vadd.f32 %v1995, %v2014
      %v2036 = vadd.f32 %v1996, %v2016
      %v2037 = vadd.f32 %v1997, %v2018
      %v2038 = vadd.f32 %v1998, %v2020
      %v2039 = vadd.f32 %v1999, %v2022
      %v2040 = vadd.f32 %v2000, %v2024
      %v2041 = vrsqrt.pop %v2033
      %v2042 = vmul.f32 %v2033, %v2041
      %vm2043 = vcmp.eq.f32.partialorder %v2033, inf
      %v2044 = vsel %vm2043, %v2033, %v2042
      %vm2045 = vcmp.eq.f32.partialorder %v2033, 0.0
      %v2046 = vand.u32 %v2033, 2147483648
      %v2047 = vsel %vm2045, %v2046, %v2044
      %v2048 = vrsqrt.pop %v2034
      %v2049 = vmul.f32 %v2034, %v2048
      %vm2050 = vcmp.eq.f32.partialorder %v2034, inf
      %v2051 = vsel %vm2050, %v2034, %v2049
      %vm2052 = vcmp.eq.f32.partialorder %v2034, 0.0
      %v2053 = vand.u32 %v2034, 2147483648
      %v2054 = vsel %vm2052, %v2053, %v2051
      %v2055 = vrsqrt.pop %v2035
      %v2056 = vmul.f32 %v2035, %v2055
      %vm2057 = vcmp.eq.f32.partialorder %v2035, inf
      %v2058 = vsel %vm2057, %v2035, %v2056
      %vm2059 = vcmp.eq.f32.partialorder %v2035, 0.0
      %v2060 = vand.u32 %v2035, 2147483648
      %v2061 = vsel %vm2059, %v2060, %v2058
      %v2062 = vrsqrt.pop %v2036
      %v2063 = vmul.f32 %v2036, %v2062
      %vm2064 = vcmp.eq.f32.partialorder %v2036, inf
      %v2065 = vsel %vm2064, %v2036, %v2063
      %vm2066 = vcmp.eq.f32.partialorder %v2036, 0.0
      %v2067 = vand.u32 %v2036, 2147483648
      %v2068 = vsel %vm2066, %v2067, %v2065
      %v2069 = vrsqrt.pop %v2037
      %v2070 = vmul.f32 %v2037, %v2069
      %vm2071 = vcmp.eq.f32.partialorder %v2037, inf
      %v2072 = vsel %vm2071, %v2037, %v2070
      %vm2073 = vcmp.eq.f32.partialorder %v2037, 0.0
      %v2074 = vand.u32 %v2037, 2147483648
      %v2075 = vsel %vm2073, %v2074, %v2072
      %v2076 = vrsqrt.pop %v2038
      %v2077 = vmul.f32 %v2038, %v2076
      %vm2078 = vcmp.eq.f32.partialorder %v2038, inf
      %v2079 = vsel %vm2078, %v2038, %v2077
      %vm2080 = vcmp.eq.f32.partialorder %v2038, 0.0
      %v2081 = vand.u32 %v2038, 2147483648
      %v2082 = vsel %vm2080, %v2081, %v2079
      %v2083 = vrsqrt.pop %v2039
      %v2084 = vmul.f32 %v2039, %v2083
      %vm2085 = vcmp.eq.f32.partialorder %v2039, inf
      %v2086 = vsel %vm2085, %v2039, %v2084
      %vm2087 = vcmp.eq.f32.partialorder %v2039, 0.0
      %v2088 = vand.u32 %v2039, 2147483648
      %v2089 = vsel %vm2087, %v2088, %v2086
      %v2090 = vrsqrt.pop %v2040
      %v2091 = vmul.f32 %v2040, %v2090
      %vm2092 = vcmp.eq.f32.partialorder %v2040, inf
      %v2093 = vsel %vm2092, %v2040, %v2091
      %vm2094 = vcmp.eq.f32.partialorder %v2040, 0.0
      %v2095 = vand.u32 %v2040, 2147483648
      %v2096 = vsel %vm2094, %v2095, %v2093
      %vm2097 = vcmask 64512
      %v2098 = vsel %vm2097, %v2047, 0.0
      %v2099 = vsel %vm2097, %v2054, 0.0
      %v2100 = vadd.f32 %v2098, %v2099
      %v2101 = vsel %vm2097, %v2061, 0.0
      %v2102 = vadd.f32 %v2100, %v2101
      %v2103 = vsel %vm2097, %v2068, 0.0
      %v2104 = vadd.f32 %v2102, %v2103
      %v2105 = vsel %vm2097, %v2075, 0.0
      %v2106 = vadd.f32 %v2104, %v2105
      %v2107 = vsel %vm2097, %v2082, 0.0
      %v2108 = vadd.f32 %v2106, %v2107
      %v2109 = vsel %vm2097, %v2089, 0.0
      %v2110 = vadd.f32 %v2108, %v2109
      %v2111 = vsel %vm2097, %v2096, 0.0
      %v2112 = vadd.f32 %v2110, %v2111
      %v2113 = vrot.slane %v2112, 4
      %v2114 = vadd.f32 %v2112, %v2113
      %v2115 = vrot.slane %v2114, 2
      %v2116 = vadd.f32 %v2114, %v2115
      %v2117 = vrot.slane %v2116, 1
      %v2118 = vadd.f32 %v2116, %v2117
      %v2119 = vsel %vm2097, %v2033, 0.0
      %v2120 = vsel %vm2097, %v2034, 0.0
      %v2121 = vadd.f32 %v2119, %v2120
      %v2122 = vsel %vm2097, %v2035, 0.0
      %v2123 = vadd.f32 %v2121, %v2122
      %v2124 = vsel %vm2097, %v2036, 0.0
      %v2125 = vadd.f32 %v2123, %v2124
      %v2126 = vsel %vm2097, %v2037, 0.0
      %v2127 = vadd.f32 %v2125, %v2126
      %v2128 = vsel %vm2097, %v2038, 0.0
      %v2129 = vadd.f32 %v2127, %v2128
      %v2130 = vsel %vm2097, %v2039, 0.0
      %v2131 = vadd.f32 %v2129, %v2130
      %v2132 = vsel %vm2097, %v2040, 0.0
      %v2133 = vadd.f32 %v2131, %v2132
      %v2134 = vrot.slane %v2133, 4
      %v2135 = vadd.f32 %v2133, %v2134
      %v2136 = vrot.slane %v2135, 2
      %v2137 = vadd.f32 %v2135, %v2136
      %v2138 = vrot.slane %v2137, 1
      %v2139 = vadd.f32 %v2137, %v2138
      %2141 = vrot.lane.b32.xlu0 %v2139, 8
      %v2142 = vpop.permute.xlu0 %2141
      %v2144 = vsel %vm2097, %v2118, %v2142
      %v2145 = vlaneseq
      %v2146 = vshrl.u32 %v2145, 7
      %v2147 = vsub.s32 0, %v2146
      %v2148 = vrot.slane %v2144, %v2147
      %2149 = vst.msk [vmem:[%s390] sm:$0xff] %vm1280, %v2148
      %v2150 = vpack.c.bf16 %v1966, %v1963
      %v2151 = vpack.c.bf16 %v1974, %v1971
      %v2152 = vpack.c.bf16 %v1982, %v1979
      %v2153 = vpack.c.bf16 %v1990, %v1987
      %v2158 = vunpack.c.l.b16 %v2150
      %v2159 = vunpack.c.h.b16 %v2150
      %v2160 = vunpack.c.l.b16 %v2151
      %v2161 = vunpack.c.h.b16 %v2151
      %v2162 = vunpack.c.l.b16 %v2152
      %v2163 = vunpack.c.h.b16 %v2152
      %v2164 = vunpack.c.l.b16 %v2153
      %v2165 = vunpack.c.h.b16 %v2153
      %v2166 = vpack.c.b16 %v2158, %v2158
      %v2167 = vpack.c.b16 %v2159, %v2159
      %v2168 = vpack.c.b16 %v2160, %v2160
      %v2169 = vpack.c.b16 %v2161, %v2161
      %v2170 = vpack.c.b16 %v2162, %v2162
      %v2171 = vpack.c.b16 %v2163, %v2163
      %v2172 = vpack.c.b16 %v2164, %v2164
      %v2173 = vpack.c.b16 %v2165, %v2165
      %vm2182 = vcmask 125952
      %2183 = vst.msk [vmem:[%s382] sm:$0xf] %vm2182, %v2166
      %2184 = vst.msk [vmem:[%s382 + $0x4] sm:$0xf] %vm2182, %v2167
      %2185 = vst.msk [vmem:[%s382 + $0x8] sm:$0xf] %vm2182, %v2168
      %2186 = vst.msk [vmem:[%s382 + $0xc] sm:$0xf] %vm2182, %v2169
      %2187 = vst.msk [vmem:[%s382 + $0x10] sm:$0xf] %vm2182, %v2170
      %2188 = vst.msk [vmem:[%s382 + $0x14] sm:$0xf] %vm2182, %v2171
      %2189 = vst.msk [vmem:[%s382 + $0x18] sm:$0xf] %vm2182, %v2172
      %2190 = vst.msk [vmem:[%s382 + $0x1c] sm:$0xf] %vm2182, %v2173
      %p2191 = scmp.lt.s32.totalorder %s22, 1
      %s2192 = scalar_select %p2191, %s22, 1
      %p2193 = scmp.lt.s32.totalorder %s23, 3
      %s2194 = scalar_select %p2193, %s23, 3
      %s2195 = smul.addr %s2194, 8
      %s2196 = smul.addr %s2192, 32
      %s2197 = sadd.s32 %s2195, %s2196
      %s2198 = smul.addr %s2197, 4
      %s2199 = scalar_lea.vmem %s5, %s2198
      %p2200 = scmp.lt.s32.totalorder %s22, 1
      %s2201 = scalar_select %p2200, %s22, 1
      %p2202 = scmp.lt.s32.totalorder %s23, 3
      %s2203 = scalar_select %p2202, %s23, 3
      %s2204 = smul.addr %s2201, 4
      %s2205 = sadd.s32 %s2203, %s2204
      %s2206 = smul.addr %s2205, 8
      %s2207 = scalar_lea.vmem %s6, %s2206
      // Predicated region
      $region41: #{_lambda_.5} parent=39 // pred_check
        %p2208 = pneg %p180
      $region42: #{_lambda_.5} parent=39 // pred_check_branch
        %2210 = sbr.rel (%p2208) target = $region44
      $region43: #{_lambda_.5} parent=39 // pred_region
        _
      $region44: #{_lambda_.5} parent=39 // pred_fallthru
        _
      // Predicated region
      $region45: #{_lambda_.5} parent=39 // pred_check
        %p2211 = pneg %p208
      $region46: #{_lambda_.5} parent=39 // pred_check_branch
        %2213 = sbr.rel (%p2211) target = $region48
      $region47: #{_lambda_.5} parent=39 // pred_region
        _
      $region48: #{_lambda_.5} parent=39 // pred_fallthru
        _
    $region40: #{_lambda_.5} parent=5 // pred_fallthru
      _
    %p2214 = scmp.le.s32.totalorder 2, %s13
    // Predicated region
    $region49: #{_lambda_.5} parent=5 // pred_check
      %p2215 = pneg %p2214
    $region50: #{_lambda_.5} parent=5 // pred_check_branch
      %2217 = sbr.rel (%p2215) target = $region52
    $region51: #{_lambda_.5} parent=5 // pred_region
      %s2218 = ssub.s32 %s13, 2
      // Predicated region
      $region53: #{_lambda_.5} parent=51 // pred_check
        %p2219 = pneg %p186
      $region54: #{_lambda_.5} parent=51 // pred_check_branch
        %2221 = sbr.rel (%p2219) target = $region56
      $region55: #{_lambda_.5} parent=51 // pred_region
        %p2222 = scmp.lt.s32.totalorder %s24, 1
        %s2223 = scalar_select %p2222, %s24, 1
        %p2224 = scmp.lt.s32.totalorder %s25, 3
        %s2225 = scalar_select %p2224, %s25, 3
        %s2226 = smul.addr %s2225, 8
        %s2227 = smul.addr %s2223, 32
        %s2228 = sadd.s32 %s2226, %s2227
        %s2229 = smul.addr %s2228, 4
        %s2230 = scalar_lea.vmem %s5, %s2229
      $region56: #{_lambda_.5} parent=51 // pred_fallthru
        _
      // Predicated region
      $region57: #{_lambda_.5} parent=51 // pred_check
        %p2231 = pneg %p214
      $region58: #{_lambda_.5} parent=51 // pred_check_branch
        %2233 = sbr.rel (%p2231) target = $region60
      $region59: #{_lambda_.5} parent=51 // pred_region
        %p2234 = scmp.lt.s32.totalorder %s24, 1
        %s2235 = scalar_select %p2234, %s24, 1
        %p2236 = scmp.lt.s32.totalorder %s25, 3
        %s2237 = scalar_select %p2236, %s25, 3
        %s2238 = smul.addr %s2235, 4
        %s2239 = sadd.s32 %s2237, %s2238
        %s2240 = smul.addr %s2239, 8
        %s2241 = scalar_lea.vmem %s6, %s2240
      $region60: #{_lambda_.5} parent=51 // pred_fallthru
        _
    $region52: #{_lambda_.5} parent=5 // pred_fallthru
      _
  $region6: #{_lambda_.5} parent=0 // loop_footer
    %s17 = sadd.s32 1, %s13
  $region7: #{_lambda_.5} parent=0 // loop_footer_branch
    %12 = sbr.rel target = $region3
  $region8: #{_lambda_.5} parent=0 // loop_exit
    _

// kernel: _lambda_.9
$region0: #{_lambda_.9}
  #allocation0 [shape = 'u32[]', space=smem, size = 0x4, offset = 0x4, fixed_abs, tag = 'smem constant byte address 0x4 - core index']
  #allocation1 [shape = 'u32[144,128]{1,0:T(1,128)}', space=vmem, size = 0x12000, scoped, tag = 'internal scratch']
  %s0 = inlined_call_operand.vmem [shape: bf16[2,6,10,10,16], index: 0, kind: input, shape index: {}, may-alias: {0,1,2}]
  %s1 = inlined_call_operand.vmem [shape: bf16[2,6,10,10,16], index: 1, kind: input, shape index: {}, may-alias: {0,1,2}]
  %s2 = inlined_call_operand.vmem [shape: bf16[2,6,10,10,16], index: 2, kind: input, shape index: {}, may-alias: {0,1,2}]
  %s3 = inlined_call_operand.vmem [shape: bf16[432,16], index: 3, kind: input, shape index: {}]
  %s4 = inlined_call_operand.vmem [shape: f32[1,16], index: 4, kind: input, shape index: {}]
  %s5 = inlined_call_operand.vmem [shape: bf16[2,4,64,16], index: 5, kind: output, shape index: {}]
  %s6 = sld [smem:[#allocation0]]
  $region53: #{_lambda_.9} parent=0
    _
  %s8 = ssub.s32 1, %s6
  %s9 = scalar_select 0, %s8, %s6
  loop: start=0, step=1, limit=10
  $region2: #{_lambda_.9} parent=0 // loop_pre_header
    _
  $region3: #{_lambda_.9} parent=0 // loop_header
    %s11 = sphi 0, %s15
    %p12 = scmp.ge.s32.totalorder %s11, 10
    %s18 = sphi 0, %s30
    %s19 = sphi 0, %s26
    %s20 = sphi 0, %s18
    %s21 = sphi 0, %s19
    %s22 = sphi 0, %s20
    %s23 = sphi 0, %s21
    %s35 = sphi 0, %s37
    %s38 = sphi 0, %s35
    %s39 = sphi 0, %s38
    %s55 = sphi 0, %s39
    %s65 = sphi 0, %s67
    %s68 = sphi 0, %s65
    %s69 = sphi 0, %s68
    %s85 = sphi 0, %s69
    %s95 = sphi 0, %s97
    %s98 = sphi 0, %s95
    %s99 = sphi 0, %s98
    %s115 = sphi 0, %s99
    %s119 = sphi 0, %s119
    %s121 = sphi 0, %s119
    %s122 = sphi 0, %s121
    %s136 = sphi 0, %s122
    %s140 = sphi 0, %s140
    %s142 = sphi 0, %s140
    %s143 = sphi 0, %s142
    %s157 = sphi 0, %s143
    %s165 = sphi 0, %s167
    %s168 = sphi 0, %s165
    %s169 = sphi 0, %s168
    %s185 = sphi 0, %s169
  $region4: #{_lambda_.9} parent=0 // loop_header_branch
    %14 = sbr.rel (%p12) target = $region8
  $region5: #{_lambda_.9} parent=0 // loop_body
    %s16 = ssub.s32 %s11, 1
    %s17 = ssub.s32 %s11, 2
    %s24 = sadd.s32 1, %s19
    %p25 = scmp.ge.s32.totalorder %s24, 4
    %s26 = scalar_select %p25, 0, %s24
    %s27 = sadd.s32 1, %s18
    %s28 = scalar_select %p25, %s27, %s18
    %p29 = scmp.ge.s32.totalorder %s28, 2
    %s30 = scalar_select %p29, 0, %s28
    %s31 = ssub.s32 %s18, %s30
    %s32 = ssub.s32 %s19, %s26
    %s33 = sor.u32 %s31, %s32
    %p34 = scmp.eq.s32.totalorder %s33, 0
    %s36 = sadd.s32 %s35, 1
    %s37 = scalar_select %p34, %s35, %s36
    %p40 = pneg %p34
    %p41 = scmp.eq.s32.totalorder %s11, 7
    %p42 = por %p40, %p41
    %p43 = scmp.ne.s32.totalorder %s35, %s38
    %p44 = scmp.eq.s32.totalorder %s11, 0
    %p45 = por %p43, %p44
    %p46 = scmp.ne.s32.totalorder %s35, %s38
    %p47 = scmp.eq.s32.totalorder %s16, 7
    %p48 = por %p46, %p47
    %p49 = scmp.ne.s32.totalorder %s38, %s39
    %p50 = scmp.eq.s32.totalorder %s16, 0
    %p51 = por %p49, %p50
    %p52 = scmp.ne.s32.totalorder %s38, %s39
    %p53 = scmp.eq.s32.totalorder %s17, 7
    %p54 = por %p52, %p53
    %p56 = scmp.ne.s32.totalorder %s39, %s55
    %p57 = scmp.eq.s32.totalorder %s17, 0
    %p58 = por %p56, %p57
    %s59 = sadd.s32 %s19, 1
    %s60 = sadd.s32 %s26, 1
    %s61 = ssub.s32 %s18, %s30
    %s62 = ssub.s32 %s59, %s60
    %s63 = sor.u32 %s61, %s62
    %p64 = scmp.eq.s32.totalorder %s63, 0
    %s66 = sadd.s32 %s65, 1
    %s67 = scalar_select %p64, %s65, %s66
    %p70 = pneg %p64
    %p71 = scmp.eq.s32.totalorder %s11, 7
    %p72 = por %p70, %p71
    %p73 = scmp.ne.s32.totalorder %s65, %s68
    %p74 = scmp.eq.s32.totalorder %s11, 0
    %p75 = por %p73, %p74
    %p76 = scmp.ne.s32.totalorder %s65, %s68
    %p77 = scmp.eq.s32.totalorder %s16, 7
    %p78 = por %p76, %p77
    %p79 = scmp.ne.s32.totalorder %s68, %s69
    %p80 = scmp.eq.s32.totalorder %s16, 0
    %p81 = por %p79, %p80
    %p82 = scmp.ne.s32.totalorder %s68, %s69
    %p83 = scmp.eq.s32.totalorder %s17, 7
    %p84 = por %p82, %p83
    %p86 = scmp.ne.s32.totalorder %s69, %s85
    %p87 = scmp.eq.s32.totalorder %s17, 0
    %p88 = por %p86, %p87
    %s89 = sadd.s32 %s19, 2
    %s90 = sadd.s32 %s26, 2
    %s91 = ssub.s32 %s18, %s30
    %s92 = ssub.s32 %s89, %s90
    %s93 = sor.u32 %s91, %s92
    %p94 = scmp.eq.s32.totalorder %s93, 0
    %s96 = sadd.s32 %s95, 1
    %s97 = scalar_select %p94, %s95, %s96
    %p100 = pneg %p94
    %p101 = scmp.eq.s32.totalorder %s11, 7
    %p102 = por %p100, %p101
    %p103 = scmp.ne.s32.totalorder %s95, %s98
    %p104 = scmp.eq.s32.totalorder %s11, 0
    %p105 = por %p103, %p104
    %p106 = scmp.ne.s32.totalorder %s95, %s98
    %p107 = scmp.eq.s32.totalorder %s16, 7
    %p108 = por %p106, %p107
    %p109 = scmp.ne.s32.totalorder %s98, %s99
    %p110 = scmp.eq.s32.totalorder %s16, 0
    %p111 = por %p109, %p110
    %p112 = scmp.ne.s32.totalorder %s98, %s99
    %p113 = scmp.eq.s32.totalorder %s17, 7
    %p114 = por %p112, %p113
    %p116 = scmp.ne.s32.totalorder %s99, %s115
    %p117 = scmp.eq.s32.totalorder %s17, 0
    %p118 = por %p116, %p117
    %s120 = sadd.s32 %s119, 1
    %p123 = scmp.eq.s32.totalorder %s11, 7
    %p124 = scmp.ne.s32.totalorder %s119, %s121
    %p125 = scmp.eq.s32.totalorder %s11, 0
    %p126 = por %p124, %p125
    %p127 = scmp.ne.s32.totalorder %s119, %s121
    %p128 = scmp.eq.s32.totalorder %s16, 7
    %p129 = por %p127, %p128
    %p130 = scmp.ne.s32.totalorder %s121, %s122
    %p131 = scmp.eq.s32.totalorder %s16, 0
    %p132 = por %p130, %p131
    %p133 = scmp.ne.s32.totalorder %s121, %s122
    %p134 = scmp.eq.s32.totalorder %s17, 7
    %p135 = por %p133, %p134
    %p137 = scmp.ne.s32.totalorder %s122, %s136
    %p138 = scmp.eq.s32.totalorder %s17, 0
    %p139 = por %p137, %p138
    %s141 = sadd.s32 %s140, 1
    %p144 = scmp.eq.s32.totalorder %s11, 7
    %p145 = scmp.ne.s32.totalorder %s140, %s142
    %p146 = scmp.eq.s32.totalorder %s11, 0
    %p147 = por %p145, %p146
    %p148 = scmp.ne.s32.totalorder %s140, %s142
    %p149 = scmp.eq.s32.totalorder %s16, 7
    %p150 = por %p148, %p149
    %p151 = scmp.ne.s32.totalorder %s142, %s143
    %p152 = scmp.eq.s32.totalorder %s16, 0
    %p153 = por %p151, %p152
    %p154 = scmp.ne.s32.totalorder %s142, %s143
    %p155 = scmp.eq.s32.totalorder %s17, 7
    %p156 = por %p154, %p155
    %p158 = scmp.ne.s32.totalorder %s143, %s157
    %p159 = scmp.eq.s32.totalorder %s17, 0
    %p160 = por %p158, %p159
    %s161 = ssub.s32 %s18, %s30
    %s162 = ssub.s32 %s19, %s26
    %s163 = sor.u32 %s161, %s162
    %p164 = scmp.eq.s32.totalorder %s163, 0
    %s166 = sadd.s32 %s165, 1
    %s167 = scalar_select %p164, %s165, %s166
    %p170 = pneg %p164
    %p171 = scmp.eq.s32.totalorder %s11, 7
    %p172 = por %p170, %p171
    %p173 = scmp.ne.s32.totalorder %s165, %s168
    %p174 = scmp.eq.s32.totalorder %s11, 0
    %p175 = por %p173, %p174
    %p176 = scmp.ne.s32.totalorder %s165, %s168
    %p177 = scmp.eq.s32.totalorder %s16, 7
    %p178 = por %p176, %p177
    %p179 = scmp.ne.s32.totalorder %s168, %s169
    %p180 = scmp.eq.s32.totalorder %s16, 0
    %p181 = por %p179, %p180
    %p182 = scmp.ne.s32.totalorder %s168, %s169
    %p183 = scmp.eq.s32.totalorder %s17, 7
    %p184 = por %p182, %p183
    %p186 = scmp.ne.s32.totalorder %s169, %s185
    %p187 = scmp.eq.s32.totalorder %s17, 0
    %p188 = por %p186, %p187
    %p189 = scmp.le.s32.totalorder 1, %s11
    %p190 = scmp.lt.s32.totalorder %s11, 9
    %p191 = pnand %p189, %p190
    %p192 = pneg %p191
    // Predicated region
    $region9: #{_lambda_.9} parent=5 // pred_check
      _
    $region10: #{_lambda_.9} parent=5 // pred_check_branch
      %194 = sbr.rel (%p191) target = $region12
    $region11: #{_lambda_.9} parent=5 // pred_region
      %s195 = ssub.s32 %s11, 1
      // Predicated region
      $region13: #{_lambda_.9} parent=11 // pred_check
        %p196 = pneg %p132
      $region14: #{_lambda_.9} parent=11 // pred_check_branch
        %198 = sbr.rel (%p196) target = $region16
      $region15: #{_lambda_.9} parent=11 // pred_region
        _
      $region16: #{_lambda_.9} parent=11 // pred_fallthru
        _
      // Predicated region
      $region17: #{_lambda_.9} parent=11 // pred_check
        %p199 = pneg %p153
      $region18: #{_lambda_.9} parent=11 // pred_check_branch
        %201 = sbr.rel (%p199) target = $region20
      $region19: #{_lambda_.9} parent=11 // pred_region
        _
      $region20: #{_lambda_.9} parent=11 // pred_fallthru
        _
    $region12: #{_lambda_.9} parent=5 // pred_fallthru
      _
    %p202 = scmp.lt.s32.totalorder %s11, 8
    // Predicated region
    $region21: #{_lambda_.9} parent=5 // pred_check
      %p203 = pneg %p202
    $region22: #{_lambda_.9} parent=5 // pred_check_branch
      %205 = sbr.rel (%p203) target = $region24
    $region23: #{_lambda_.9} parent=5 // pred_region
      // Predicated region
      $region25: #{_lambda_.9} parent=23 // pred_check
        %p206 = pneg %p45
      $region26: #{_lambda_.9} parent=23 // pred_check_branch
        %208 = sbr.rel (%p206) target = $region28
      $region27: #{_lambda_.9} parent=23 // pred_region
        %p209 = scmp.lt.s32.totalorder %s18, 1
        %s210 = scalar_select %p209, %s18, 1
        %p211 = scmp.lt.s32.totalorder %s19, 5
        %s212 = scalar_select %p211, %s19, 5
        %s213 = smul.addr %s212, 20
        %s214 = smul.addr %s210, 120
        %s215 = sadd.s32 %s213, %s214
        %s216 = smul.addr %s215, 4
        %s217 = scalar_lea.vmem %s0, %s216
      $region28: #{_lambda_.9} parent=23 // pred_fallthru
        _
      // Predicated region
      $region29: #{_lambda_.9} parent=23 // pred_check
        %p218 = pneg %p75
      $region30: #{_lambda_.9} parent=23 // pred_check_branch
        %220 = sbr.rel (%p218) target = $region32
      $region31: #{_lambda_.9} parent=23 // pred_region
        %s221 = sadd.s32 %s19, 1
        %p222 = scmp.lt.s32.totalorder %s18, 1
        %s223 = scalar_select %p222, %s18, 1
        %p224 = scmp.lt.s32.totalorder %s221, 5
        %s225 = scalar_select %p224, %s221, 5
        %s226 = smul.addr %s225, 20
        %s227 = smul.addr %s223, 120
        %s228 = sadd.s32 %s226, %s227
        %s229 = smul.addr %s228, 4
        %s230 = scalar_lea.vmem %s1, %s229
        %s231 = sadd.s32 %s19, 1
      $region32: #{_lambda_.9} parent=23 // pred_fallthru
        _
      // Predicated region
      $region33: #{_lambda_.9} parent=23 // pred_check
        %p232 = pneg %p105
      $region34: #{_lambda_.9} parent=23 // pred_check_branch
        %234 = sbr.rel (%p232) target = $region36
      $region35: #{_lambda_.9} parent=23 // pred_region
        %s235 = sadd.s32 %s19, 2
        %p236 = scmp.lt.s32.totalorder %s18, 1
        %s237 = scalar_select %p236, %s18, 1
        %p238 = scmp.lt.s32.totalorder %s235, 5
        %s239 = scalar_select %p238, %s235, 5
        %s240 = smul.addr %s239, 20
        %s241 = smul.addr %s237, 120
        %s242 = sadd.s32 %s240, %s241
        %s243 = smul.addr %s242, 4
        %s244 = scalar_lea.vmem %s2, %s243
        %s245 = sadd.s32 %s19, 2
      $region36: #{_lambda_.9} parent=23 // pred_fallthru
        _
    $region24: #{_lambda_.9} parent=5 // pred_fallthru
      _
    %p246 = scmp.le.s32.totalorder 1, %s11
    %p247 = scmp.lt.s32.totalorder %s11, 9
    %p248 = pnand %p246, %p247
    %p249 = pneg %p248
    // Predicated region
    $region37: #{_lambda_.9} parent=5 // pred_check
      _
    $region38: #{_lambda_.9} parent=5 // pred_check_branch
      %251 = sbr.rel (%p248) target = $region40
    $region39: #{_lambda_.9} parent=5 // pred_region
      %s252 = ssub.s32 %s11, 1
      %p253 = scmp.lt.s32.totalorder %s20, 1
      %s254 = scalar_select %p253, %s20, 1
      %p255 = scmp.lt.s32.totalorder %s21, 5
      %s256 = scalar_select %p255, %s21, 5
      %s257 = smul.addr %s256, 20
      %s258 = smul.addr %s254, 120
      %s259 = sadd.s32 %s257, %s258
      %s260 = smul.addr %s259, 4
      %s261 = scalar_lea.vmem %s0, %s260
      %p262 = pneg %p51
      %p263 = pneg %p48
      %s264 = sadd.s32 %s21, 1
      %p265 = scmp.lt.s32.totalorder %s20, 1
      %s266 = scalar_select %p265, %s20, 1
      %p267 = scmp.lt.s32.totalorder %s264, 5
      %s268 = scalar_select %p267, %s264, 5
      %s269 = smul.addr %s268, 20
      %s270 = smul.addr %s266, 120
      %s271 = sadd.s32 %s269, %s270
      %s272 = smul.addr %s271, 4
      %s273 = scalar_lea.vmem %s1, %s272
      %p274 = pneg %p81
      %p275 = pneg %p78
      %s276 = sadd.s32 %s21, 2
      %p277 = scmp.lt.s32.totalorder %s20, 1
      %s278 = scalar_select %p277, %s20, 1
      %p279 = scmp.lt.s32.totalorder %s276, 5
      %s280 = scalar_select %p279, %s276, 5
      %s281 = smul.addr %s280, 20
      %s282 = smul.addr %s278, 120
      %s283 = sadd.s32 %s281, %s282
      %s284 = smul.addr %s283, 4
      %s285 = scalar_lea.vmem %s2, %s284
      %p286 = pneg %p111
      %p287 = pneg %p108
      %p288 = pneg %p132
      %p289 = pneg %p129
      %p290 = pneg %p153
      %p291 = pneg %p150
      %p292 = pneg %p181
      %p293 = pneg %p178
      %p294 = scmp.lt.s32.totalorder %s20, 1
      %s295 = scalar_select %p294, %s20, 1
      %p296 = scmp.lt.s32.totalorder %s21, 3
      %s297 = scalar_select %p296, %s21, 3
      %s298 = smul.addr %s297, 8
      %s299 = smul.addr %s295, 32
      %s300 = sadd.s32 %s298, %s299
      %s301 = smul.addr %s300, 4
      %s302 = scalar_lea.vmem %s5, %s301
      %p303 = scmp.lt.s32.totalorder %s20, 1
      %s304 = scalar_select %p303, %s20, 1
      %p305 = scmp.lt.s32.totalorder %s21, 5
      %s306 = scalar_select %p305, %s21, 5
      %s307 = smul.addr %s306, 20
      %s308 = smul.addr %s304, 120
      %s309 = sadd.s32 %s307, %s308
      %s310 = smul.addr %s309, 4
      %s311 = scalar_lea.vmem %s0, %s310
      %s312 = sadd.s32 %s21, 1
      %p313 = scmp.lt.s32.totalorder %s20, 1
      %s314 = scalar_select %p313, %s20, 1
      %p315 = scmp.lt.s32.totalorder %s312, 5
      %s316 = scalar_select %p315, %s312, 5
      %s317 = smul.addr %s316, 20
      %s318 = smul.addr %s314, 120
      %s319 = sadd.s32 %s317, %s318
      %s320 = smul.addr %s319, 4
      %s321 = scalar_lea.vmem %s1, %s320
      %s322 = sadd.s32 %s21, 1
      %s323 = sadd.s32 %s21, 2
      %p324 = scmp.lt.s32.totalorder %s20, 1
      %s325 = scalar_select %p324, %s20, 1
      %p326 = scmp.lt.s32.totalorder %s323, 5
      %s327 = scalar_select %p326, %s323, 5
      %s328 = smul.addr %s327, 20
      %s329 = smul.addr %s325, 120
      %s330 = sadd.s32 %s328, %s329
      %s331 = smul.addr %s330, 4
      %s332 = scalar_lea.vmem %s2, %s331
      %s333 = sadd.s32 %s21, 2
      %p334 = scmp.lt.s32.totalorder %s20, 1
      %s335 = scalar_select %p334, %s20, 1
      %p336 = scmp.lt.s32.totalorder %s21, 3
      %s337 = scalar_select %p336, %s21, 3
      %s338 = smul.addr %s337, 8
      %s339 = smul.addr %s335, 32
      %s340 = sadd.s32 %s338, %s339
      %s341 = smul.addr %s340, 4
      %s342 = scalar_lea.vmem %s5, %s341
      %v344 = vld [vmem:[%s311] sm:$0xf]
      %v345 = vld [vmem:[%s311 + $0x4] sm:$0x1]
      %v346 = vld [vmem:[%s311 + $0x8] sm:$0xf]
      %v347 = vld [vmem:[%s311 + $0xc] sm:$0x1]
      %v348 = vld [vmem:[%s311 + $0x10] sm:$0xf]
      %v349 = vld [vmem:[%s311 + $0x14] sm:$0x1]
      %v350 = vld [vmem:[%s311 + $0x18] sm:$0xf]
      %v351 = vld [vmem:[%s311 + $0x1c] sm:$0x1]
      %v352 = vld [vmem:[%s311 + $0x20] sm:$0xf]
      %v353 = vld [vmem:[%s311 + $0x24] sm:$0x1]
      %v354 = vld [vmem:[%s311 + $0x28] sm:$0xf]
      %v355 = vld [vmem:[%s311 + $0x2c] sm:$0x1]
      %v356 = vld [vmem:[%s311 + $0x30] sm:$0xf]
      %v357 = vld [vmem:[%s311 + $0x34] sm:$0x1]
      %v358 = vld [vmem:[%s311 + $0x38] sm:$0xf]
      %v359 = vld [vmem:[%s311 + $0x3c] sm:$0x1]
      %v360 = vld [vmem:[%s311 + $0x40] sm:$0xf]
      %v361 = vld [vmem:[%s311 + $0x44] sm:$0x1]
      %v362 = vld [vmem:[%s311 + $0x48] sm:$0xf]
      %v363 = vld [vmem:[%s311 + $0x4c] sm:$0x1]
      %vm364 = vsmask.f32 3328
      %vm365 = vsmask.f32 7440
      %vm366 = vmor %vm364, %vm365
      %v368 = vshrl.u32 %v344, 16
      %v370 = vrot.slane %v368, 4
      %v371 = vshll.u32 %v344, 16
      %v373 = vrot.slane %v371, 5
      %v374 = vor.u32 %v370, %v373
      %v375 = vrot.slane %v374, 4
      %v377 = vshll.u32 %v345, 16
      %v379 = vrot.slane %v377, 5
      %v380 = vsel %vm366, %v375, %v379
      %v382 = vshrl.u32 %v346, 16
      %v384 = vrot.slane %v382, 4
      %v385 = vshll.u32 %v346, 16
      %v387 = vrot.slane %v385, 5
      %v388 = vor.u32 %v384, %v387
      %v389 = vrot.slane %v388, 4
      %v391 = vshll.u32 %v347, 16
      %v393 = vrot.slane %v391, 5
      %v394 = vsel %vm366, %v389, %v393
      %v396 = vshrl.u32 %v348, 16
      %v398 = vrot.slane %v396, 4
      %v399 = vshll.u32 %v348, 16
      %v401 = vrot.slane %v399, 5
      %v402 = vor.u32 %v398, %v401
      %v403 = vrot.slane %v402, 4
      %v405 = vshll.u32 %v349, 16
      %v407 = vrot.slane %v405, 5
      %v408 = vsel %vm366, %v403, %v407
      %v410 = vshrl.u32 %v350, 16
      %v412 = vrot.slane %v410, 4
      %v413 = vshll.u32 %v350, 16
      %v415 = vrot.slane %v413, 5
      %v416 = vor.u32 %v412, %v415
      %v417 = vrot.slane %v416, 4
      %v419 = vshll.u32 %v351, 16
      %v421 = vrot.slane %v419, 5
      %v422 = vsel %vm366, %v417, %v421
      %v424 = vshrl.u32 %v352, 16
      %v426 = vrot.slane %v424, 4
      %v427 = vshll.u32 %v352, 16
      %v429 = vrot.slane %v427, 5
      %v430 = vor.u32 %v426, %v429
      %v431 = vrot.slane %v430, 4
      %v433 = vshll.u32 %v353, 16
      %v435 = vrot.slane %v433, 5
      %v436 = vsel %vm366, %v431, %v435
      %v438 = vshrl.u32 %v354, 16
      %v440 = vrot.slane %v438, 4
      %v441 = vshll.u32 %v354, 16
      %v443 = vrot.slane %v441, 5
      %v444 = vor.u32 %v440, %v443
      %v445 = vrot.slane %v444, 4
      %v447 = vshll.u32 %v355, 16
      %v449 = vrot.slane %v447, 5
      %v450 = vsel %vm366, %v445, %v449
      %v452 = vshrl.u32 %v356, 16
      %v454 = vrot.slane %v452, 4
      %v455 = vshll.u32 %v356, 16
      %v457 = vrot.slane %v455, 5
      %v458 = vor.u32 %v454, %v457
      %v459 = vrot.slane %v458, 4
      %v461 = vshll.u32 %v357, 16
      %v463 = vrot.slane %v461, 5
      %v464 = vsel %vm366, %v459, %v463
      %v466 = vshrl.u32 %v358, 16
      %v468 = vrot.slane %v466, 4
      %v469 = vshll.u32 %v358, 16
      %v471 = vrot.slane %v469, 5
      %v472 = vor.u32 %v468, %v471
      %v473 = vrot.slane %v472, 4
      %v475 = vshll.u32 %v359, 16
      %v477 = vrot.slane %v475, 5
      %v478 = vsel %vm366, %v473, %v477
      %vm495 = vcmask 1042432
      %vm496 = vcmask 1046532
      %vm497 = vmor %vm495, %vm496
      %v498 = vrot.slane %v344, 5
      %v499 = vrot.slane %v498, 4
      %v500 = vrot.slane %v345, 5
      %v501 = vsel %vm497, %v499, %v500
      %v502 = vrot.slane %v346, 5
      %v503 = vrot.slane %v502, 4
      %v504 = vrot.slane %v347, 5
      %v505 = vsel %vm497, %v503, %v504
      %v506 = vrot.slane %v348, 5
      %v507 = vrot.slane %v506, 4
      %v508 = vrot.slane %v349, 5
      %v509 = vsel %vm497, %v507, %v508
      %v510 = vrot.slane %v350, 5
      %v511 = vrot.slane %v510, 4
      %v512 = vrot.slane %v351, 5
      %v513 = vsel %vm497, %v511, %v512
      %v514 = vrot.slane %v352, 5
      %v515 = vrot.slane %v514, 4
      %v516 = vrot.slane %v353, 5
      %v517 = vsel %vm497, %v515, %v516
      %v518 = vrot.slane %v354, 5
      %v519 = vrot.slane %v518, 4
      %v520 = vrot.slane %v355, 5
      %v521 = vsel %vm497, %v519, %v520
      %v522 = vrot.slane %v356, 5
      %v523 = vrot.slane %v522, 4
      %v524 = vrot.slane %v357, 5
      %v525 = vsel %vm497, %v523, %v524
      %v526 = vrot.slane %v358, 5
      %v527 = vrot.slane %v526, 4
      %v528 = vrot.slane %v359, 5
      %v529 = vsel %vm497, %v527, %v528
      %v531 = vshrl.u32 %v360, 16
      %v533 = vrot.slane %v531, 4
      %v534 = vshll.u32 %v360, 16
      %v536 = vrot.slane %v534, 5
      %v537 = vor.u32 %v533, %v536
      %v538 = vrot.slane %v537, 4
      %v540 = vshll.u32 %v361, 16
      %v542 = vrot.slane %v540, 5
      %v543 = vsel %vm366, %v538, %v542
      %v546 = vrot.slane %v360, 5
      %v547 = vrot.slane %v546, 4
      %v548 = vrot.slane %v361, 5
      %v549 = vsel %vm497, %v547, %v548
      %v551 = vshrl.u32 %v362, 16
      %v553 = vrot.slane %v551, 4
      %v554 = vshll.u32 %v362, 16
      %v556 = vrot.slane %v554, 5
      %v557 = vor.u32 %v553, %v556
      %v558 = vrot.slane %v557, 4
      %v560 = vshll.u32 %v363, 16
      %v562 = vrot.slane %v560, 5
      %v563 = vsel %vm366, %v558, %v562
      %v566 = vrot.slane %v362, 5
      %v567 = vrot.slane %v566, 4
      %v568 = vrot.slane %v363, 5
      %v569 = vsel %vm497, %v567, %v568
      %v570 = vld [vmem:[%s321] sm:$0xf]
      %v571 = vld [vmem:[%s321 + $0x4] sm:$0x1]
      %v572 = vld [vmem:[%s321 + $0x8] sm:$0xf]
      %v573 = vld [vmem:[%s321 + $0xc] sm:$0x1]
      %v574 = vld [vmem:[%s321 + $0x10] sm:$0xf]
      %v575 = vld [vmem:[%s321 + $0x14] sm:$0x1]
      %v576 = vld [vmem:[%s321 + $0x18] sm:$0xf]
      %v577 = vld [vmem:[%s321 + $0x1c] sm:$0x1]
      %v578 = vld [vmem:[%s321 + $0x20] sm:$0xf]
      %v579 = vld [vmem:[%s321 + $0x24] sm:$0x1]
      %v580 = vld [vmem:[%s321 + $0x28] sm:$0xf]
      %v581 = vld [vmem:[%s321 + $0x2c] sm:$0x1]
      %v582 = vld [vmem:[%s321 + $0x30] sm:$0xf]
      %v583 = vld [vmem:[%s321 + $0x34] sm:$0x1]
      %v584 = vld [vmem:[%s321 + $0x38] sm:$0xf]
      %v585 = vld [vmem:[%s321 + $0x3c] sm:$0x1]
      %v586 = vld [vmem:[%s321 + $0x40] sm:$0xf]
      %v587 = vld [vmem:[%s321 + $0x44] sm:$0x1]
      %v588 = vld [vmem:[%s321 + $0x48] sm:$0xf]
      %v589 = vld [vmem:[%s321 + $0x4c] sm:$0x1]
      %v591 = vshrl.u32 %v570, 16
      %v593 = vrot.slane %v591, 4
      %v594 = vshll.u32 %v570, 16
      %v596 = vrot.slane %v594, 5
      %v597 = vor.u32 %v593, %v596
      %v598 = vrot.slane %v597, 4
      %v600 = vshll.u32 %v571, 16
      %v602 = vrot.slane %v600, 5
      %v603 = vsel %vm366, %v598, %v602
      %v605 = vshrl.u32 %v572, 16
      %v607 = vrot.slane %v605, 4
      %v608 = vshll.u32 %v572, 16
      %v610 = vrot.slane %v608, 5
      %v611 = vor.u32 %v607, %v610
      %v612 = vrot.slane %v611, 4
      %v614 = vshll.u32 %v573, 16
      %v616 = vrot.slane %v614, 5
      %v617 = vsel %vm366, %v612, %v616
      %v619 = vshrl.u32 %v574, 16
      %v621 = vrot.slane %v619, 4
      %v622 = vshll.u32 %v574, 16
      %v624 = vrot.slane %v622, 5
      %v625 = vor.u32 %v621, %v624
      %v626 = vrot.slane %v625, 4
      %v628 = vshll.u32 %v575, 16
      %v630 = vrot.slane %v628, 5
      %v631 = vsel %vm366, %v626, %v630
      %v633 = vshrl.u32 %v576, 16
      %v635 = vrot.slane %v633, 4
      %v636 = vshll.u32 %v576, 16
      %v638 = vrot.slane %v636, 5
      %v639 = vor.u32 %v635, %v638
      %v640 = vrot.slane %v639, 4
      %v642 = vshll.u32 %v577, 16
      %v644 = vrot.slane %v642, 5
      %v645 = vsel %vm366, %v640, %v644
      %v647 = vshrl.u32 %v578, 16
      %v649 = vrot.slane %v647, 4
      %v650 = vshll.u32 %v578, 16
      %v652 = vrot.slane %v650, 5
      %v653 = vor.u32 %v649, %v652
      %v654 = vrot.slane %v653, 4
      %v656 = vshll.u32 %v579, 16
      %v658 = vrot.slane %v656, 5
      %v659 = vsel %vm366, %v654, %v658
      %v661 = vshrl.u32 %v580, 16
      %v663 = vrot.slane %v661, 4
      %v664 = vshll.u32 %v580, 16
      %v666 = vrot.slane %v664, 5
      %v667 = vor.u32 %v663, %v666
      %v668 = vrot.slane %v667, 4
      %v670 = vshll.u32 %v581, 16
      %v672 = vrot.slane %v670, 5
      %v673 = vsel %vm366, %v668, %v672
      %v675 = vshrl.u32 %v582, 16
      %v677 = vrot.slane %v675, 4
      %v678 = vshll.u32 %v582, 16
      %v680 = vrot.slane %v678, 5
      %v681 = vor.u32 %v677, %v680
      %v682 = vrot.slane %v681, 4
      %v684 = vshll.u32 %v583, 16
      %v686 = vrot.slane %v684, 5
      %v687 = vsel %vm366, %v682, %v686
      %v689 = vshrl.u32 %v584, 16
      %v691 = vrot.slane %v689, 4
      %v692 = vshll.u32 %v584, 16
      %v694 = vrot.slane %v692, 5
      %v695 = vor.u32 %v691, %v694
      %v696 = vrot.slane %v695, 4
      %v698 = vshll.u32 %v585, 16
      %v700 = vrot.slane %v698, 5
      %v701 = vsel %vm366, %v696, %v700
      %v718 = vrot.slane %v570, 5
      %v719 = vrot.slane %v718, 4
      %v720 = vrot.slane %v571, 5
      %v721 = vsel %vm497, %v719, %v720
      %v722 = vrot.slane %v572, 5
      %v723 = vrot.slane %v722, 4
      %v724 = vrot.slane %v573, 5
      %v725 = vsel %vm497, %v723, %v724
      %v726 = vrot.slane %v574, 5
      %v727 = vrot.slane %v726, 4
      %v728 = vrot.slane %v575, 5
      %v729 = vsel %vm497, %v727, %v728
      %v730 = vrot.slane %v576, 5
      %v731 = vrot.slane %v730, 4
      %v732 = vrot.slane %v577, 5
      %v733 = vsel %vm497, %v731, %v732
      %v734 = vrot.slane %v578, 5
      %v735 = vrot.slane %v734, 4
      %v736 = vrot.slane %v579, 5
      %v737 = vsel %vm497, %v735, %v736
      %v738 = vrot.slane %v580, 5
      %v739 = vrot.slane %v738, 4
      %v740 = vrot.slane %v581, 5
      %v741 = vsel %vm497, %v739, %v740
      %v742 = vrot.slane %v582, 5
      %v743 = vrot.slane %v742, 4
      %v744 = vrot.slane %v583, 5
      %v745 = vsel %vm497, %v743, %v744
      %v746 = vrot.slane %v584, 5
      %v747 = vrot.slane %v746, 4
      %v748 = vrot.slane %v585, 5
      %v749 = vsel %vm497, %v747, %v748
      %v751 = vshrl.u32 %v586, 16
      %v753 = vrot.slane %v751, 4
      %v754 = vshll.u32 %v586, 16
      %v756 = vrot.slane %v754, 5
      %v757 = vor.u32 %v753, %v756
      %v758 = vrot.slane %v757, 4
      %v760 = vshll.u32 %v587, 16
      %v762 = vrot.slane %v760, 5
      %v763 = vsel %vm366, %v758, %v762
      %v766 = vrot.slane %v586, 5
      %v767 = vrot.slane %v766, 4
      %v768 = vrot.slane %v587, 5
      %v769 = vsel %vm497, %v767, %v768
      %v771 = vshrl.u32 %v588, 16
      %v773 = vrot.slane %v771, 4
      %v774 = vshll.u32 %v588, 16
      %v776 = vrot.slane %v774, 5
      %v777 = vor.u32 %v773, %v776
      %v778 = vrot.slane %v777, 4
      %v780 = vshll.u32 %v589, 16
      %v782 = vrot.slane %v780, 5
      %v783 = vsel %vm366, %v778, %v782
      %v786 = vrot.slane %v588, 5
      %v787 = vrot.slane %v786, 4
      %v788 = vrot.slane %v589, 5
      %v789 = vsel %vm497, %v787, %v788
      %v790 = vld [vmem:[%s332] sm:$0xf]
      %v791 = vld [vmem:[%s332 + $0x4] sm:$0x1]
      %v792 = vld [vmem:[%s332 + $0x8] sm:$0xf]
      %v793 = vld [vmem:[%s332 + $0xc] sm:$0x1]
      %v794 = vld [vmem:[%s332 + $0x10] sm:$0xf]
      %v795 = vld [vmem:[%s332 + $0x14] sm:$0x1]
      %v796 = vld [vmem:[%s332 + $0x18] sm:$0xf]
      %v797 = vld [vmem:[%s332 + $0x1c] sm:$0x1]
      %v798 = vld [vmem:[%s332 + $0x20] sm:$0xf]
      %v799 = vld [vmem:[%s332 + $0x24] sm:$0x1]
      %v800 = vld [vmem:[%s332 + $0x28] sm:$0xf]
      %v801 = vld [vmem:[%s332 + $0x2c] sm:$0x1]
      %v802 = vld [vmem:[%s332 + $0x30] sm:$0xf]
      %v803 = vld [vmem:[%s332 + $0x34] sm:$0x1]
      %v804 = vld [vmem:[%s332 + $0x38] sm:$0xf]
      %v805 = vld [vmem:[%s332 + $0x3c] sm:$0x1]
      %v806 = vld [vmem:[%s332 + $0x40] sm:$0xf]
      %v807 = vld [vmem:[%s332 + $0x44] sm:$0x1]
      %v808 = vld [vmem:[%s332 + $0x48] sm:$0xf]
      %v809 = vld [vmem:[%s332 + $0x4c] sm:$0x1]
      %v811 = vshrl.u32 %v790, 16
      %v813 = vrot.slane %v811, 4
      %v814 = vshll.u32 %v790, 16
      %v816 = vrot.slane %v814, 5
      %v817 = vor.u32 %v813, %v816
      %v818 = vrot.slane %v817, 4
      %v820 = vshll.u32 %v791, 16
      %v822 = vrot.slane %v820, 5
      %v823 = vsel %vm366, %v818, %v822
      %v825 = vshrl.u32 %v792, 16
      %v827 = vrot.slane %v825, 4
      %v828 = vshll.u32 %v792, 16
      %v830 = vrot.slane %v828, 5
      %v831 = vor.u32 %v827, %v830
      %v832 = vrot.slane %v831, 4
      %v834 = vshll.u32 %v793, 16
      %v836 = vrot.slane %v834, 5
      %v837 = vsel %vm366, %v832, %v836
      %v839 = vshrl.u32 %v794, 16
      %v841 = vrot.slane %v839, 4
      %v842 = vshll.u32 %v794, 16
      %v844 = vrot.slane %v842, 5
      %v845 = vor.u32 %v841, %v844
      %v846 = vrot.slane %v845, 4
      %v848 = vshll.u32 %v795, 16
      %v850 = vrot.slane %v848, 5
      %v851 = vsel %vm366, %v846, %v850
      %v853 = vshrl.u32 %v796, 16
      %v855 = vrot.slane %v853, 4
      %v856 = vshll.u32 %v796, 16
      %v858 = vrot.slane %v856, 5
      %v859 = vor.u32 %v855, %v858
      %v860 = vrot.slane %v859, 4
      %v862 = vshll.u32 %v797, 16
      %v864 = vrot.slane %v862, 5
      %v865 = vsel %vm366, %v860, %v864
      %v867 = vshrl.u32 %v798, 16
      %v869 = vrot.slane %v867, 4
      %v870 = vshll.u32 %v798, 16
      %v872 = vrot.slane %v870, 5
      %v873 = vor.u32 %v869, %v872
      %v874 = vrot.slane %v873, 4
      %v876 = vshll.u32 %v799, 16
      %v878 = vrot.slane %v876, 5
      %v879 = vsel %vm366, %v874, %v878
      %v881 = vshrl.u32 %v800, 16
      %v883 = vrot.slane %v881, 4
      %v884 = vshll.u32 %v800, 16
      %v886 = vrot.slane %v884, 5
      %v887 = vor.u32 %v883, %v886
      %v888 = vrot.slane %v887, 4
      %v890 = vshll.u32 %v801, 16
      %v892 = vrot.slane %v890, 5
      %v893 = vsel %vm366, %v888, %v892
      %v895 = vshrl.u32 %v802, 16
      %v897 = vrot.slane %v895, 4
      %v898 = vshll.u32 %v802, 16
      %v900 = vrot.slane %v898, 5
      %v901 = vor.u32 %v897, %v900
      %v902 = vrot.slane %v901, 4
      %v904 = vshll.u32 %v803, 16
      %v906 = vrot.slane %v904, 5
      %v907 = vsel %vm366, %v902, %v906
      %v909 = vshrl.u32 %v804, 16
      %v911 = vrot.slane %v909, 4
      %v912 = vshll.u32 %v804, 16
      %v914 = vrot.slane %v912, 5
      %v915 = vor.u32 %v911, %v914
      %v916 = vrot.slane %v915, 4
      %v918 = vshll.u32 %v805, 16
      %v920 = vrot.slane %v918, 5
      %v921 = vsel %vm366, %v916, %v920
      %v938 = vrot.slane %v790, 5
      %v939 = vrot.slane %v938, 4
      %v940 = vrot.slane %v791, 5
      %v941 = vsel %vm497, %v939, %v940
      %v942 = vrot.slane %v792, 5
      %v943 = vrot.slane %v942, 4
      %v944 = vrot.slane %v793, 5
      %v945 = vsel %vm497, %v943, %v944
      %v946 = vrot.slane %v794, 5
      %v947 = vrot.slane %v946, 4
      %v948 = vrot.slane %v795, 5
      %v949 = vsel %vm497, %v947, %v948
      %v950 = vrot.slane %v796, 5
      %v951 = vrot.slane %v950, 4
      %v952 = vrot.slane %v797, 5
      %v953 = vsel %vm497, %v951, %v952
      %v954 = vrot.slane %v798, 5
      %v955 = vrot.slane %v954, 4
      %v956 = vrot.slane %v799, 5
      %v957 = vsel %vm497, %v955, %v956
      %v958 = vrot.slane %v800, 5
      %v959 = vrot.slane %v958, 4
      %v960 = vrot.slane %v801, 5
      %v961 = vsel %vm497, %v959, %v960
      %v962 = vrot.slane %v802, 5
      %v963 = vrot.slane %v962, 4
      %v964 = vrot.slane %v803, 5
      %v965 = vsel %vm497, %v963, %v964
      %v966 = vrot.slane %v804, 5
      %v967 = vrot.slane %v966, 4
      %v968 = vrot.slane %v805, 5
      %v969 = vsel %vm497, %v967, %v968
      %v971 = vshrl.u32 %v806, 16
      %v973 = vrot.slane %v971, 4
      %v974 = vshll.u32 %v806, 16
      %v976 = vrot.slane %v974, 5
      %v977 = vor.u32 %v973, %v976
      %v978 = vrot.slane %v977, 4
      %v980 = vshll.u32 %v807, 16
      %v982 = vrot.slane %v980, 5
      %v983 = vsel %vm366, %v978, %v982
      %v986 = vrot.slane %v806, 5
      %v987 = vrot.slane %v986, 4
      %v988 = vrot.slane %v807, 5
      %v989 = vsel %vm497, %v987, %v988
      %v991 = vshrl.u32 %v808, 16
      %v993 = vrot.slane %v991, 4
      %v994 = vshll.u32 %v808, 16
      %v996 = vrot.slane %v994, 5
      %v997 = vor.u32 %v993, %v996
      %v998 = vrot.slane %v997, 4
      %v1000 = vshll.u32 %v809, 16
      %v1002 = vrot.slane %v1000, 5
      %v1003 = vsel %vm366, %v998, %v1002
      %v1006 = vrot.slane %v808, 5
      %v1007 = vrot.slane %v1006, 4
      %v1008 = vrot.slane %v809, 5
      %v1009 = vsel %vm497, %v1007, %v1008
      %v1010 = vunpack.c.l.b16 %v344
      %v1011 = vunpack.c.l.b16 %v346
      %v1012 = vunpack.c.l.b16 %v348
      %v1013 = vunpack.c.l.b16 %v350
      %v1014 = vunpack.c.l.b16 %v352
      %v1015 = vunpack.c.l.b16 %v354
      %v1016 = vunpack.c.l.b16 %v356
      %v1017 = vunpack.c.l.b16 %v358
      %v1018 = vpack.c.b16 %v1011, %v1010
      %v1019 = vpack.c.b16 %v1013, %v1012
      %v1020 = vpack.c.b16 %v1015, %v1014
      %v1021 = vpack.c.b16 %v1017, %v1016
      %v1022 = vunpack.c.l.b16 %v380
      %v1023 = vunpack.c.l.b16 %v394
      %v1024 = vunpack.c.l.b16 %v408
      %v1025 = vunpack.c.l.b16 %v422
      %v1026 = vunpack.c.l.b16 %v436
      %v1027 = vunpack.c.l.b16 %v450
      %v1028 = vunpack.c.l.b16 %v464
      %v1029 = vunpack.c.l.b16 %v478
      %v1030 = vpack.c.b16 %v1023, %v1022
      %v1031 = vpack.c.b16 %v1025, %v1024
      %v1032 = vpack.c.b16 %v1027, %v1026
      %v1033 = vpack.c.b16 %v1029, %v1028
      %1034 = vrot.lane.b32.xlu0 %v1030, 16
      %v1035 = vpop.permute.xlu0 %1034
      %1036 = vrot.lane.b32.xlu0 %v1031, 16
      %v1037 = vpop.permute.xlu0 %1036
      %1038 = vrot.lane.b32.xlu0 %v1032, 16
      %v1039 = vpop.permute.xlu0 %1038
      %1040 = vrot.lane.b32.xlu0 %v1033, 16
      %v1041 = vpop.permute.xlu0 %1040
      %v1042 = vunpack.c.l.b16 %v501
      %v1043 = vunpack.c.l.b16 %v505
      %v1044 = vunpack.c.l.b16 %v509
      %v1045 = vunpack.c.l.b16 %v513
      %v1046 = vunpack.c.l.b16 %v517
      %v1047 = vunpack.c.l.b16 %v521
      %v1048 = vunpack.c.l.b16 %v525
      %v1049 = vunpack.c.l.b16 %v529
      %v1050 = vpack.c.b16 %v1043, %v1042
      %v1051 = vpack.c.b16 %v1045, %v1044
      %v1052 = vpack.c.b16 %v1047, %v1046
      %v1053 = vpack.c.b16 %v1049, %v1048
      %1054 = vrot.lane.b32.xlu0 %v1050, 32
      %v1055 = vpop.permute.xlu0 %1054
      %1056 = vrot.lane.b32.xlu0 %v1051, 32
      %v1057 = vpop.permute.xlu0 %1056
      %1058 = vrot.lane.b32.xlu0 %v1052, 32
      %v1059 = vpop.permute.xlu0 %1058
      %1060 = vrot.lane.b32.xlu0 %v1053, 32
      %v1061 = vpop.permute.xlu0 %1060
      %v1062 = vunpack.c.l.b16 %v360
      %v1063 = vpack.c.b16 %v1012, %v1011
      %v1064 = vpack.c.b16 %v1014, %v1013
      %v1065 = vpack.c.b16 %v1016, %v1015
      %v1066 = vpack.c.b16 %v1062, %v1017
      %1067 = vrot.lane.b32.xlu0 %v1063, 48
      %v1068 = vpop.permute.xlu0 %1067
      %1069 = vrot.lane.b32.xlu0 %v1064, 48
      %v1070 = vpop.permute.xlu0 %1069
      %1071 = vrot.lane.b32.xlu0 %v1065, 48
      %v1072 = vpop.permute.xlu0 %1071
      %1073 = vrot.lane.b32.xlu0 %v1066, 48
      %v1074 = vpop.permute.xlu0 %1073
      %v1075 = vunpack.c.l.b16 %v543
      %v1076 = vpack.c.b16 %v1024, %v1023
      %v1077 = vpack.c.b16 %v1026, %v1025
      %v1078 = vpack.c.b16 %v1028, %v1027
      %v1079 = vpack.c.b16 %v1075, %v1029
      %1080 = vrot.lane.b32.xlu0 %v1076, 64
      %v1081 = vpop.permute.xlu0 %1080
      %1082 = vrot.lane.b32.xlu0 %v1077, 64
      %v1083 = vpop.permute.xlu0 %1082
      %1084 = vrot.lane.b32.xlu0 %v1078, 64
      %v1085 = vpop.permute.xlu0 %1084
      %1086 = vrot.lane.b32.xlu0 %v1079, 64
      %v1087 = vpop.permute.xlu0 %1086
      %v1088 = vunpack.c.l.b16 %v549
      %v1089 = vpack.c.b16 %v1044, %v1043
      %v1090 = vpack.c.b16 %v1046, %v1045
      %v1091 = vpack.c.b16 %v1048, %v1047
      %v1092 = vpack.c.b16 %v1088, %v1049
      %1093 = vrot.lane.b32.xlu0 %v1089, 80
      %v1094 = vpop.permute.xlu0 %1093
      %1095 = vrot.lane.b32.xlu0 %v1090, 80
      %v1096 = vpop.permute.xlu0 %1095
      %1097 = vrot.lane.b32.xlu0 %v1091, 80
      %v1098 = vpop.permute.xlu0 %1097
      %1099 = vrot.lane.b32.xlu0 %v1092, 80
      %v1100 = vpop.permute.xlu0 %1099
      %v1101 = vunpack.c.l.b16 %v362
      %v1102 = vpack.c.b16 %v1101, %v1062
      %1103 = vrot.lane.b32.xlu0 %v1019, 96
      %v1104 = vpop.permute.xlu0 %1103
      %1105 = vrot.lane.b32.xlu0 %v1020, 96
      %v1106 = vpop.permute.xlu0 %1105
      %1107 = vrot.lane.b32.xlu0 %v1021, 96
      %v1108 = vpop.permute.xlu0 %1107
      %1109 = vrot.lane.b32.xlu0 %v1102, 96
      %v1110 = vpop.permute.xlu0 %1109
      %v1111 = vunpack.c.l.b16 %v563
      %v1112 = vpack.c.b16 %v1111, %v1075
      %1113 = vrot.lane.b32.xlu0 %v1031, 112
      %v1114 = vpop.permute.xlu0 %1113
      %1115 = vrot.lane.b32.xlu0 %v1032, 112
      %v1116 = vpop.permute.xlu0 %1115
      %1117 = vrot.lane.b32.xlu0 %v1033, 112
      %v1118 = vpop.permute.xlu0 %1117
      %1119 = vrot.lane.b32.xlu0 %v1112, 112
      %v1120 = vpop.permute.xlu0 %1119
      %v1121 = vunpack.c.l.b16 %v569
      %v1122 = vpack.c.b16 %v1121, %v1088
      %v1123 = vunpack.c.l.b16 %v570
      %v1124 = vunpack.c.l.b16 %v572
      %v1125 = vunpack.c.l.b16 %v574
      %v1126 = vunpack.c.l.b16 %v576
      %v1127 = vunpack.c.l.b16 %v578
      %v1128 = vunpack.c.l.b16 %v580
      %v1129 = vunpack.c.l.b16 %v582
      %v1130 = vunpack.c.l.b16 %v584
      %v1131 = vpack.c.b16 %v1124, %v1123
      %v1132 = vpack.c.b16 %v1126, %v1125
      %v1133 = vpack.c.b16 %v1128, %v1127
      %v1134 = vpack.c.b16 %v1130, %v1129
      %1135 = vrot.lane.b32.xlu0 %v1131, 16
      %v1136 = vpop.permute.xlu0 %1135
      %1137 = vrot.lane.b32.xlu0 %v1132, 16
      %v1138 = vpop.permute.xlu0 %1137
      %1139 = vrot.lane.b32.xlu0 %v1133, 16
      %v1140 = vpop.permute.xlu0 %1139
      %1141 = vrot.lane.b32.xlu0 %v1134, 16
      %v1142 = vpop.permute.xlu0 %1141
      %v1143 = vunpack.c.l.b16 %v603
      %v1144 = vunpack.c.l.b16 %v617
      %v1145 = vunpack.c.l.b16 %v631
      %v1146 = vunpack.c.l.b16 %v645
      %v1147 = vunpack.c.l.b16 %v659
      %v1148 = vunpack.c.l.b16 %v673
      %v1149 = vunpack.c.l.b16 %v687
      %v1150 = vunpack.c.l.b16 %v701
      %v1151 = vpack.c.b16 %v1144, %v1143
      %v1152 = vpack.c.b16 %v1146, %v1145
      %v1153 = vpack.c.b16 %v1148, %v1147
      %v1154 = vpack.c.b16 %v1150, %v1149
      %1155 = vrot.lane.b32.xlu0 %v1151, 32
      %v1156 = vpop.permute.xlu0 %1155
      %1157 = vrot.lane.b32.xlu0 %v1152, 32
      %v1158 = vpop.permute.xlu0 %1157
      %1159 = vrot.lane.b32.xlu0 %v1153, 32
      %v1160 = vpop.permute.xlu0 %1159
      %1161 = vrot.lane.b32.xlu0 %v1154, 32
      %v1162 = vpop.permute.xlu0 %1161
      %v1163 = vunpack.c.l.b16 %v721
      %v1164 = vunpack.c.l.b16 %v725
      %v1165 = vunpack.c.l.b16 %v729
      %v1166 = vunpack.c.l.b16 %v733
      %v1167 = vunpack.c.l.b16 %v737
      %v1168 = vunpack.c.l.b16 %v741
      %v1169 = vunpack.c.l.b16 %v745
      %v1170 = vunpack.c.l.b16 %v749
      %v1171 = vpack.c.b16 %v1164, %v1163
      %v1172 = vpack.c.b16 %v1166, %v1165
      %v1173 = vpack.c.b16 %v1168, %v1167
      %v1174 = vpack.c.b16 %v1170, %v1169
      %1175 = vrot.lane.b32.xlu0 %v1171, 48
      %v1176 = vpop.permute.xlu0 %1175
      %1177 = vrot.lane.b32.xlu0 %v1172, 48
      %v1178 = vpop.permute.xlu0 %1177
      %1179 = vrot.lane.b32.xlu0 %v1173, 48
      %v1180 = vpop.permute.xlu0 %1179
      %1181 = vrot.lane.b32.xlu0 %v1174, 48
      %v1182 = vpop.permute.xlu0 %1181
      %v1183 = vunpack.c.l.b16 %v586
      %v1184 = vpack.c.b16 %v1125, %v1124
      %v1185 = vpack.c.b16 %v1127, %v1126
      %v1186 = vpack.c.b16 %v1129, %v1128
      %v1187 = vpack.c.b16 %v1183, %v1130
      %1188 = vrot.lane.b32.xlu0 %v1184, 64
      %v1189 = vpop.permute.xlu0 %1188
      %1190 = vrot.lane.b32.xlu0 %v1185, 64
      %v1191 = vpop.permute.xlu0 %1190
      %1192 = vrot.lane.b32.xlu0 %v1186, 64
      %v1193 = vpop.permute.xlu0 %1192
      %1194 = vrot.lane.b32.xlu0 %v1187, 64
      %v1195 = vpop.permute.xlu0 %1194
      %v1196 = vunpack.c.l.b16 %v763
      %v1197 = vpack.c.b16 %v1145, %v1144
      %v1198 = vpack.c.b16 %v1147, %v1146
      %v1199 = vpack.c.b16 %v1149, %v1148
      %v1200 = vpack.c.b16 %v1196, %v1150
      %1201 = vrot.lane.b32.xlu0 %v1197, 80
      %v1202 = vpop.permute.xlu0 %1201
      %1203 = vrot.lane.b32.xlu0 %v1198, 80
      %v1204 = vpop.permute.xlu0 %1203
      %1205 = vrot.lane.b32.xlu0 %v1199, 80
      %v1206 = vpop.permute.xlu0 %1205
      %1207 = vrot.lane.b32.xlu0 %v1200, 80
      %v1208 = vpop.permute.xlu0 %1207
      %v1209 = vunpack.c.l.b16 %v769
      %v1210 = vpack.c.b16 %v1165, %v1164
      %v1211 = vpack.c.b16 %v1167, %v1166
      %v1212 = vpack.c.b16 %v1169, %v1168
      %v1213 = vpack.c.b16 %v1209, %v1170
      %1214 = vrot.lane.b32.xlu0 %v1210, 96
      %v1215 = vpop.permute.xlu0 %1214
      %1216 = vrot.lane.b32.xlu0 %v1211, 96
      %v1217 = vpop.permute.xlu0 %1216
      %1218 = vrot.lane.b32.xlu0 %v1212, 96
      %v1219 = vpop.permute.xlu0 %1218
      %1220 = vrot.lane.b32.xlu0 %v1213, 96
      %v1221 = vpop.permute.xlu0 %1220
      %v1222 = vunpack.c.l.b16 %v588
      %v1223 = vpack.c.b16 %v1222, %v1183
      %1224 = vrot.lane.b32.xlu0 %v1132, 112
      %v1225 = vpop.permute.xlu0 %1224
      %1226 = vrot.lane.b32.xlu0 %v1133, 112
      %v1227 = vpop.permute.xlu0 %1226
      %1228 = vrot.lane.b32.xlu0 %v1134, 112
      %v1229 = vpop.permute.xlu0 %1228
      %1230 = vrot.lane.b32.xlu0 %v1223, 112
      %v1231 = vpop.permute.xlu0 %1230
      %vm1232 = vcmask 130048
      %v1235 = vsel %vm1232, %v1018, %v1035
      %v1238 = vsel %vm1232, %v1019, %v1037
      %v1241 = vsel %vm1232, %v1020, %v1039
      %v1244 = vsel %vm1232, %v1021, %v1041
      %vm1245 = vcmask 261120
      %v1247 = vsel %vm1245, %v1235, %v1055
      %v1249 = vsel %vm1245, %v1238, %v1057
      %v1251 = vsel %vm1245, %v1241, %v1059
      %v1253 = vsel %vm1245, %v1244, %v1061
      %vm1254 = vcmask 392192
      %v1256 = vsel %vm1254, %v1247, %v1068
      %v1258 = vsel %vm1254, %v1249, %v1070
      %v1260 = vsel %vm1254, %v1251, %v1072
      %v1262 = vsel %vm1254, %v1253, %v1074
      %vm1263 = vcmask 523264
      %v1265 = vsel %vm1263, %v1256, %v1081
      %v1267 = vsel %vm1263, %v1258, %v1083
      %v1269 = vsel %vm1263, %v1260, %v1085
      %v1271 = vsel %vm1263, %v1262, %v1087
      %vm1272 = vcmask 654336
      %v1274 = vsel %vm1272, %v1265, %v1094
      %v1276 = vsel %vm1272, %v1267, %v1096
      %v1278 = vsel %vm1272, %v1269, %v1098
      %v1280 = vsel %vm1272, %v1271, %v1100
      %vm1281 = vcmask 785408
      %v1283 = vsel %vm1281, %v1274, %v1104
      %v1285 = vsel %vm1281, %v1276, %v1106
      %v1287 = vsel %vm1281, %v1278, %v1108
      %v1289 = vsel %vm1281, %v1280, %v1110
      %vm1290 = vcmask 916480
      %v1292 = vsel %vm1290, %v1283, %v1114
      %v1295 = vsel %vm1290, %v1285, %v1116
      %v1298 = vsel %vm1290, %v1287, %v1118
      %v1301 = vsel %vm1290, %v1289, %v1120
      %v1305 = vsel %vm1232, %v1051, %v1136
      %v1308 = vsel %vm1232, %v1052, %v1138
      %v1311 = vsel %vm1232, %v1053, %v1140
      %v1314 = vsel %vm1232, %v1122, %v1142
      %v1316 = vsel %vm1245, %v1305, %v1156
      %v1318 = vsel %vm1245, %v1308, %v1158
      %v1320 = vsel %vm1245, %v1311, %v1160
      %v1322 = vsel %vm1245, %v1314, %v1162
      %v1324 = vsel %vm1254, %v1316, %v1176
      %v1326 = vsel %vm1254, %v1318, %v1178
      %v1328 = vsel %vm1254, %v1320, %v1180
      %v1330 = vsel %vm1254, %v1322, %v1182
      %v1332 = vsel %vm1263, %v1324, %v1189
      %v1334 = vsel %vm1263, %v1326, %v1191
      %v1336 = vsel %vm1263, %v1328, %v1193
      %v1338 = vsel %vm1263, %v1330, %v1195
      %v1340 = vsel %vm1272, %v1332, %v1202
      %v1342 = vsel %vm1272, %v1334, %v1204
      %v1344 = vsel %vm1272, %v1336, %v1206
      %v1346 = vsel %vm1272, %v1338, %v1208
      %v1348 = vsel %vm1281, %v1340, %v1215
      %v1350 = vsel %vm1281, %v1342, %v1217
      %v1352 = vsel %vm1281, %v1344, %v1219
      %v1354 = vsel %vm1281, %v1346, %v1221
      %v1356 = vsel %vm1290, %v1348, %v1225
      %v1359 = vsel %vm1290, %v1350, %v1227
      %v1362 = vsel %vm1290, %v1352, %v1229
      %v1365 = vsel %vm1290, %v1354, %v1231
      %v1367 = vunpack.c.l.b16 %v783
      %v1368 = vpack.c.b16 %v1367, %v1196
      %v1369 = vunpack.c.l.b16 %v789
      %v1370 = vpack.c.b16 %v1369, %v1209
      %1371 = vrot.lane.b32.xlu0 %v1172, 16
      %v1372 = vpop.permute.xlu0 %1371
      %1373 = vrot.lane.b32.xlu0 %v1173, 16
      %v1374 = vpop.permute.xlu0 %1373
      %1375 = vrot.lane.b32.xlu0 %v1174, 16
      %v1376 = vpop.permute.xlu0 %1375
      %1377 = vrot.lane.b32.xlu0 %v1370, 16
      %v1378 = vpop.permute.xlu0 %1377
      %v1379 = vunpack.c.l.b16 %v790
      %v1380 = vunpack.c.l.b16 %v792
      %v1381 = vunpack.c.l.b16 %v794
      %v1382 = vunpack.c.l.b16 %v796
      %v1383 = vunpack.c.l.b16 %v798
      %v1384 = vunpack.c.l.b16 %v800
      %v1385 = vunpack.c.l.b16 %v802
      %v1386 = vunpack.c.l.b16 %v804
      %v1387 = vpack.c.b16 %v1380, %v1379
      %v1388 = vpack.c.b16 %v1382, %v1381
      %v1389 = vpack.c.b16 %v1384, %v1383
      %v1390 = vpack.c.b16 %v1386, %v1385
      %1391 = vrot.lane.b32.xlu0 %v1387, 32
      %v1392 = vpop.permute.xlu0 %1391
      %1393 = vrot.lane.b32.xlu0 %v1388, 32
      %v1394 = vpop.permute.xlu0 %1393
      %1395 = vrot.lane.b32.xlu0 %v1389, 32
      %v1396 = vpop.permute.xlu0 %1395
      %1397 = vrot.lane.b32.xlu0 %v1390, 32
      %v1398 = vpop.permute.xlu0 %1397
      %v1399 = vunpack.c.l.b16 %v823
      %v1400 = vunpack.c.l.b16 %v837
      %v1401 = vunpack.c.l.b16 %v851
      %v1402 = vunpack.c.l.b16 %v865
      %v1403 = vunpack.c.l.b16 %v879
      %v1404 = vunpack.c.l.b16 %v893
      %v1405 = vunpack.c.l.b16 %v907
      %v1406 = vunpack.c.l.b16 %v921
      %v1407 = vpack.c.b16 %v1400, %v1399
      %v1408 = vpack.c.b16 %v1402, %v1401
      %v1409 = vpack.c.b16 %v1404, %v1403
      %v1410 = vpack.c.b16 %v1406, %v1405
      %1411 = vrot.lane.b32.xlu0 %v1407, 48
      %v1412 = vpop.permute.xlu0 %1411
      %1413 = vrot.lane.b32.xlu0 %v1408, 48
      %v1414 = vpop.permute.xlu0 %1413
      %1415 = vrot.lane.b32.xlu0 %v1409, 48
      %v1416 = vpop.permute.xlu0 %1415
      %1417 = vrot.lane.b32.xlu0 %v1410, 48
      %v1418 = vpop.permute.xlu0 %1417
      %v1419 = vunpack.c.l.b16 %v941
      %v1420 = vunpack.c.l.b16 %v945
      %v1421 = vunpack.c.l.b16 %v949
      %v1422 = vunpack.c.l.b16 %v953
      %v1423 = vunpack.c.l.b16 %v957
      %v1424 = vunpack.c.l.b16 %v961
      %v1425 = vunpack.c.l.b16 %v965
      %v1426 = vunpack.c.l.b16 %v969
      %v1427 = vpack.c.b16 %v1420, %v1419
      %v1428 = vpack.c.b16 %v1422, %v1421
      %v1429 = vpack.c.b16 %v1424, %v1423
      %v1430 = vpack.c.b16 %v1426, %v1425
      %1431 = vrot.lane.b32.xlu0 %v1427, 64
      %v1432 = vpop.permute.xlu0 %1431
      %1433 = vrot.lane.b32.xlu0 %v1428, 64
      %v1434 = vpop.permute.xlu0 %1433
      %1435 = vrot.lane.b32.xlu0 %v1429, 64
      %v1436 = vpop.permute.xlu0 %1435
      %1437 = vrot.lane.b32.xlu0 %v1430, 64
      %v1438 = vpop.permute.xlu0 %1437
      %v1439 = vunpack.c.l.b16 %v806
      %v1440 = vpack.c.b16 %v1381, %v1380
      %v1441 = vpack.c.b16 %v1383, %v1382
      %v1442 = vpack.c.b16 %v1385, %v1384
      %v1443 = vpack.c.b16 %v1439, %v1386
      %1444 = vrot.lane.b32.xlu0 %v1440, 80
      %v1445 = vpop.permute.xlu0 %1444
      %1446 = vrot.lane.b32.xlu0 %v1441, 80
      %v1447 = vpop.permute.xlu0 %1446
      %1448 = vrot.lane.b32.xlu0 %v1442, 80
      %v1449 = vpop.permute.xlu0 %1448
      %1450 = vrot.lane.b32.xlu0 %v1443, 80
      %v1451 = vpop.permute.xlu0 %1450
      %v1452 = vunpack.c.l.b16 %v983
      %v1453 = vpack.c.b16 %v1401, %v1400
      %v1454 = vpack.c.b16 %v1403, %v1402
      %v1455 = vpack.c.b16 %v1405, %v1404
      %v1456 = vpack.c.b16 %v1452, %v1406
      %1457 = vrot.lane.b32.xlu0 %v1453, 96
      %v1458 = vpop.permute.xlu0 %1457
      %1459 = vrot.lane.b32.xlu0 %v1454, 96
      %v1460 = vpop.permute.xlu0 %1459
      %1461 = vrot.lane.b32.xlu0 %v1455, 96
      %v1462 = vpop.permute.xlu0 %1461
      %1463 = vrot.lane.b32.xlu0 %v1456, 96
      %v1464 = vpop.permute.xlu0 %1463
      %v1465 = vunpack.c.l.b16 %v989
      %v1466 = vpack.c.b16 %v1421, %v1420
      %v1467 = vpack.c.b16 %v1423, %v1422
      %v1468 = vpack.c.b16 %v1425, %v1424
      %v1469 = vpack.c.b16 %v1465, %v1426
      %1470 = vrot.lane.b32.xlu0 %v1466, 112
      %v1471 = vpop.permute.xlu0 %1470
      %1472 = vrot.lane.b32.xlu0 %v1467, 112
      %v1473 = vpop.permute.xlu0 %1472
      %1474 = vrot.lane.b32.xlu0 %v1468, 112
      %v1475 = vpop.permute.xlu0 %1474
      %1476 = vrot.lane.b32.xlu0 %v1469, 112
      %v1477 = vpop.permute.xlu0 %1476
      %v1478 = vunpack.c.l.b16 %v808
      %v1479 = vpack.c.b16 %v1478, %v1439
      %v1480 = vunpack.c.l.b16 %v1003
      %v1481 = vpack.c.b16 %v1480, %v1452
      %1482 = vrot.lane.b32.xlu0 %v1408, 16
      %v1483 = vpop.permute.xlu0 %1482
      %1484 = vrot.lane.b32.xlu0 %v1409, 16
      %v1485 = vpop.permute.xlu0 %1484
      %1486 = vrot.lane.b32.xlu0 %v1410, 16
      %v1487 = vpop.permute.xlu0 %1486
      %1488 = vrot.lane.b32.xlu0 %v1481, 16
      %v1489 = vpop.permute.xlu0 %1488
      %v1490 = vunpack.c.l.b16 %v1009
      %v1491 = vpack.c.b16 %v1490, %v1465
      %1492 = vrot.lane.b32.xlu0 %v1428, 32
      %v1493 = vpop.permute.xlu0 %1492
      %1494 = vrot.lane.b32.xlu0 %v1429, 32
      %v1495 = vpop.permute.xlu0 %1494
      %1496 = vrot.lane.b32.xlu0 %v1430, 32
      %v1497 = vpop.permute.xlu0 %1496
      %1498 = vrot.lane.b32.xlu0 %v1491, 32
      %v1499 = vpop.permute.xlu0 %1498
      %v1502 = vsel %vm1232, %v1152, %v1372
      %v1505 = vsel %vm1232, %v1153, %v1374
      %v1508 = vsel %vm1232, %v1154, %v1376
      %v1511 = vsel %vm1232, %v1368, %v1378
      %v1513 = vsel %vm1245, %v1502, %v1392
      %v1515 = vsel %vm1245, %v1505, %v1394
      %v1517 = vsel %vm1245, %v1508, %v1396
      %v1519 = vsel %vm1245, %v1511, %v1398
      %v1521 = vsel %vm1254, %v1513, %v1412
      %v1523 = vsel %vm1254, %v1515, %v1414
      %v1525 = vsel %vm1254, %v1517, %v1416
      %v1527 = vsel %vm1254, %v1519, %v1418
      %v1529 = vsel %vm1263, %v1521, %v1432
      %v1531 = vsel %vm1263, %v1523, %v1434
      %v1533 = vsel %vm1263, %v1525, %v1436
      %v1535 = vsel %vm1263, %v1527, %v1438
      %v1537 = vsel %vm1272, %v1529, %v1445
      %v1539 = vsel %vm1272, %v1531, %v1447
      %v1541 = vsel %vm1272, %v1533, %v1449
      %v1543 = vsel %vm1272, %v1535, %v1451
      %v1545 = vsel %vm1281, %v1537, %v1458
      %v1547 = vsel %vm1281, %v1539, %v1460
      %v1549 = vsel %vm1281, %v1541, %v1462
      %v1551 = vsel %vm1281, %v1543, %v1464
      %v1553 = vsel %vm1290, %v1545, %v1471
      %v1556 = vsel %vm1290, %v1547, %v1473
      %v1559 = vsel %vm1290, %v1549, %v1475
      %v1562 = vsel %vm1290, %v1551, %v1477
      %v1566 = vsel %vm1232, %v1388, %v1483
      %v1569 = vsel %vm1232, %v1389, %v1485
      %v1572 = vsel %vm1232, %v1390, %v1487
      %v1575 = vsel %vm1232, %v1479, %v1489
      %v1577 = vsel %vm1245, %v1566, %v1493
      %v1579 = vsel %vm1245, %v1569, %v1495
      %v1581 = vsel %vm1245, %v1572, %v1497
      %v1583 = vsel %vm1245, %v1575, %v1499
      %v1584 = vld [vmem:[%s3] sm:$0xf]
      %v1585 = vld [vmem:[%s3 + $0x4] sm:$0xf]
      %v1586 = vld [vmem:[%s3 + $0x8] sm:$0xf]
      %v1587 = vld [vmem:[%s3 + $0xc] sm:$0xf]
      %v1588 = vld [vmem:[%s3 + $0x10] sm:$0xf]
      %v1589 = vld [vmem:[%s3 + $0x14] sm:$0xf]
      %v1590 = vld [vmem:[%s3 + $0x18] sm:$0xf]
      %v1591 = vld [vmem:[%s3 + $0x1c] sm:$0xf]
      %v1592 = vld [vmem:[%s3 + $0x20] sm:$0xf]
      %v1593 = vld [vmem:[%s3 + $0x24] sm:$0xf]
      %v1594 = vld [vmem:[%s3 + $0x28] sm:$0xf]
      %v1595 = vld [vmem:[%s3 + $0x2c] sm:$0xf]
      %v1596 = vld [vmem:[%s3 + $0x30] sm:$0xf]
      %v1597 = vld [vmem:[%s3 + $0x34] sm:$0xf]
      %v1598 = vld [vmem:[%s3 + $0x38] sm:$0xf]
      %v1599 = vld [vmem:[%s3 + $0x3c] sm:$0xf]
      %v1600 = vld [vmem:[%s3 + $0x40] sm:$0xf]
      %v1601 = vld [vmem:[%s3 + $0x44] sm:$0xf]
      %v1602 = vld [vmem:[%s3 + $0x48] sm:$0xf]
      %v1603 = vld [vmem:[%s3 + $0x4c] sm:$0xf]
      %v1604 = vld [vmem:[%s3 + $0x50] sm:$0xf]
      %v1605 = vld [vmem:[%s3 + $0x54] sm:$0xf]
      %v1606 = vld [vmem:[%s3 + $0x58] sm:$0xf]
      %v1607 = vld [vmem:[%s3 + $0x5c] sm:$0xf]
      %v1608 = vld [vmem:[%s3 + $0x60] sm:$0xf]
      %v1609 = vld [vmem:[%s3 + $0x64] sm:$0xf]
      %v1610 = vld [vmem:[%s3 + $0x68] sm:$0xf]
      %v1611 = vld [vmem:[%s3 + $0x6c] sm:$0xf]
      %v1612 = vld [vmem:[%s3 + $0x70] sm:$0xf]
      %v1613 = vld [vmem:[%s3 + $0x74] sm:$0xf]
      %v1614 = vld [vmem:[%s3 + $0x78] sm:$0xf]
      %v1615 = vld [vmem:[%s3 + $0x7c] sm:$0xf]
      %v1616 = vld [vmem:[%s3 + $0x80] sm:$0xf]
      %v1617 = vld [vmem:[%s3 + $0x84] sm:$0xf]
      %v1618 = vld [vmem:[%s3 + $0x88] sm:$0xf]
      %v1619 = vld [vmem:[%s3 + $0x8c] sm:$0xf]
      %v1620 = vld [vmem:[%s3 + $0x90] sm:$0xf]
      %v1621 = vld [vmem:[%s3 + $0x94] sm:$0xf]
      %v1622 = vld [vmem:[%s3 + $0x98] sm:$0xf]
      %v1623 = vld [vmem:[%s3 + $0x9c] sm:$0xf]
      %v1624 = vld [vmem:[%s3 + $0xa0] sm:$0xf]
      %v1625 = vld [vmem:[%s3 + $0xa4] sm:$0xf]
      %v1626 = vld [vmem:[%s3 + $0xa8] sm:$0xf]
      %v1627 = vld [vmem:[%s3 + $0xac] sm:$0xf]
      %v1628 = vld [vmem:[%s3 + $0xb0] sm:$0xf]
      %v1629 = vld [vmem:[%s3 + $0xb4] sm:$0xf]
      %v1630 = vld [vmem:[%s3 + $0xb8] sm:$0xf]
      %v1631 = vld [vmem:[%s3 + $0xbc] sm:$0xf]
      %v1632 = vld [vmem:[%s3 + $0xc0] sm:$0xf]
      %v1633 = vld [vmem:[%s3 + $0xc4] sm:$0xf]
      %v1634 = vld [vmem:[%s3 + $0xc8] sm:$0xf]
      %v1635 = vld [vmem:[%s3 + $0xcc] sm:$0xf]
      %v1636 = vld [vmem:[%s3 + $0xd0] sm:$0xf]
      %v1637 = vld [vmem:[%s3 + $0xd4] sm:$0xf]
      %v1638 = vld [vmem:[%s4] sm:$0x1]
      %v1640 = vlaneseq
      %v1641 = vshrl.u32 %v1640, 7
      %v1642 = vsub.s32 0, %v1641
      %v1643 = vrot.slane %v1638, %v1642
      %v1699 = vunpack.c.l.b16 %v1584
      %v1700 = vunpack.c.l.b16 %v1585
      %v1701 = vunpack.c.l.b16 %v1586
      %v1702 = vunpack.c.l.b16 %v1587
      %v1703 = vunpack.c.l.b16 %v1588
      %v1704 = vunpack.c.l.b16 %v1589
      %v1705 = vunpack.c.l.b16 %v1590
      %v1706 = vunpack.c.l.b16 %v1591
      %v1707 = vunpack.c.l.b16 %v1592
      %v1708 = vunpack.c.l.b16 %v1593
      %v1709 = vunpack.c.l.b16 %v1594
      %v1710 = vunpack.c.l.b16 %v1595
      %v1711 = vunpack.c.l.b16 %v1596
      %v1712 = vunpack.c.l.b16 %v1597
      %v1713 = vunpack.c.l.b16 %v1598
      %v1714 = vunpack.c.l.b16 %v1599
      %v1715 = vunpack.c.l.b16 %v1600
      %v1716 = vunpack.c.l.b16 %v1601
      %v1717 = vunpack.c.l.b16 %v1602
      %v1718 = vunpack.c.l.b16 %v1603
      %v1719 = vunpack.c.l.b16 %v1604
      %v1720 = vunpack.c.l.b16 %v1605
      %v1721 = vunpack.c.l.b16 %v1606
      %v1722 = vunpack.c.l.b16 %v1607
      %v1723 = vunpack.c.l.b16 %v1608
      %v1724 = vunpack.c.l.b16 %v1609
      %v1725 = vunpack.c.l.b16 %v1610
      %v1726 = vunpack.c.l.b16 %v1611
      %v1727 = vunpack.c.l.b16 %v1612
      %v1728 = vunpack.c.l.b16 %v1613
      %v1729 = vunpack.c.l.b16 %v1614
      %v1730 = vunpack.c.l.b16 %v1615
      %v1731 = vunpack.c.l.b16 %v1616
      %v1732 = vunpack.c.l.b16 %v1617
      %v1733 = vunpack.c.l.b16 %v1618
      %v1734 = vunpack.c.l.b16 %v1619
      %v1735 = vunpack.c.l.b16 %v1620
      %v1736 = vunpack.c.l.b16 %v1621
      %v1737 = vunpack.c.l.b16 %v1622
      %v1738 = vunpack.c.l.b16 %v1623
      %v1739 = vunpack.c.l.b16 %v1624
      %v1740 = vunpack.c.l.b16 %v1625
      %v1741 = vunpack.c.l.b16 %v1626
      %v1742 = vunpack.c.l.b16 %v1627
      %v1743 = vunpack.c.l.b16 %v1628
      %v1744 = vunpack.c.l.b16 %v1629
      %v1745 = vunpack.c.l.b16 %v1630
      %v1746 = vunpack.c.l.b16 %v1631
      %v1747 = vunpack.c.l.b16 %v1632
      %v1748 = vunpack.c.l.b16 %v1633
      %v1749 = vunpack.c.l.b16 %v1634
      %v1750 = vunpack.c.l.b16 %v1635
      %v1751 = vunpack.c.l.b16 %v1636
      %v1752 = vunpack.c.l.b16 %v1637
      %v1753 = vpack.c.b16 %v1700, %v1699
      %v1754 = vpack.c.b16 %v1702, %v1701
      %v1755 = vpack.c.b16 %v1704, %v1703
      %v1756 = vpack.c.b16 %v1706, %v1705
      %v1757 = vpack.c.b16 %v1708, %v1707
      %v1758 = vpack.c.b16 %v1710, %v1709
      %v1759 = vpack.c.b16 %v1712, %v1711
      %v1760 = vpack.c.b16 %v1714, %v1713
      %v1761 = vpack.c.b16 %v1716, %v1715
      %v1762 = vpack.c.b16 %v1718, %v1717
      %v1763 = vpack.c.b16 %v1720, %v1719
      %v1764 = vpack.c.b16 %v1722, %v1721
      %v1765 = vpack.c.b16 %v1724, %v1723
      %v1766 = vpack.c.b16 %v1726, %v1725
      %v1767 = vpack.c.b16 %v1728, %v1727
      %v1768 = vpack.c.b16 %v1730, %v1729
      %v1769 = vpack.c.b16 %v1732, %v1731
      %v1770 = vpack.c.b16 %v1734, %v1733
      %v1771 = vpack.c.b16 %v1736, %v1735
      %v1772 = vpack.c.b16 %v1738, %v1737
      %v1773 = vpack.c.b16 %v1740, %v1739
      %v1774 = vpack.c.b16 %v1742, %v1741
      %v1775 = vpack.c.b16 %v1744, %v1743
      %v1776 = vpack.c.b16 %v1746, %v1745
      %v1777 = vpack.c.b16 %v1748, %v1747
      %v1778 = vpack.c.b16 %v1750, %v1749
      %v1779 = vpack.c.b16 %v1752, %v1751
      %v1807 = vsel %vm1254, %v1577, 0
      %v1809 = vsel %vm1254, %v1579, 0
      %v1811 = vsel %vm1254, %v1581, 0
      %v1813 = vsel %vm1254, %v1583, 0
      %1815 = vmatprep.subr.bf16.mxu0 0
      %1816 = vmatpush1.bf16.msra.mxu0 %v1753
      %1817 = vmatprep.subr.bf16.mxu0 0
      %1818 = vmatpush1.bf16.msra.mxu0 %v1754
      %1819 = vmatprep.subr.bf16.mxu0 0
      %1820 = vmatpush1.bf16.msra.mxu0 %v1755
      %1821 = vmatprep.subr.bf16.mxu0 0
      %1822 = vmatpush1.bf16.msra.mxu0 %v1756
      %1823 = vmatprep.subr.bf16.mxu0 0
      %1824 = vmatpush1.bf16.msra.mxu0 %v1757
      %1825 = vmatprep.subr.bf16.mxu0 0
      %1826 = vmatpush1.bf16.msra.mxu0 %v1758
      %1827 = vmatprep.subr.bf16.mxu0 0
      %1828 = vmatpush1.bf16.msra.mxu0 %v1759
      %1829 = vmatprep.subr.bf16.mxu0 0
      %1830 = vmatpush1.bf16.msra.mxu0 %v1760
      %1831 = vmatprep.subr.bf16.mxu0 0
      %1832 = vmatpush1.bf16.msra.mxu0 %v1761
      %1833 = vmatprep.subr.bf16.mxu0 0
      %1834 = vmatpush1.bf16.msra.mxu0 %v1762
      %1835 = vmatprep.subr.bf16.mxu0 0
      %1836 = vmatpush1.bf16.msra.mxu0 %v1763
      %1837 = vmatprep.subr.bf16.mxu0 0
      %1838 = vmatpush1.bf16.msra.mxu0 %v1764
      %1839 = vmatprep.subr.bf16.mxu0 0
      %1840 = vmatpush1.bf16.msra.mxu0 %v1765
      %1841 = vmatprep.subr.bf16.mxu0 0
      %1842 = vmatpush1.bf16.msra.mxu0 %v1766
      %1843 = vmatprep.subr.bf16.mxu0 0
      %1844 = vmatpush1.bf16.msra.mxu0 %v1767
      %1845 = vmatprep.subr.bf16.mxu0 0
      %1846 = vmatpush1.bf16.msra.mxu0 %v1768
      %1847 = vmatprep.mubr.bf16.mxu0 %v1356
      %1848 = vmatmul.mubr.bf16.gmra.mrb[0].mxu0 %v1292
      %v1849 = vpop.f32.mrb[0].mxu0
      %v1850 = vadd.f32 %v1643, %v1849
      %v1851 = vpop.f32.mrb[0].mxu0
      %v1852 = vpop.f32.mrb[0].mxu0
      %v1853 = vadd.f32 %v1643, %v1852
      %v1854 = vpop.f32.mrb[0].mxu0
      %1855 = vmatprep.mubr.bf16.mxu0 %v1359
      %1856 = vmatmul.mubr.bf16.gmra.mrb[0].mxu0 %v1295
      %v1857 = vpop.f32.mrb[0].mxu0
      %v1858 = vadd.f32 %v1643, %v1857
      %v1859 = vpop.f32.mrb[0].mxu0
      %v1860 = vpop.f32.mrb[0].mxu0
      %v1861 = vadd.f32 %v1643, %v1860
      %v1862 = vpop.f32.mrb[0].mxu0
      %1863 = vmatprep.mubr.bf16.mxu0 %v1362
      %1864 = vmatmul.mubr.bf16.gmra.mrb[0].mxu0 %v1298
      %v1865 = vpop.f32.mrb[0].mxu0
      %v1866 = vadd.f32 %v1643, %v1865
      %v1867 = vpop.f32.mrb[0].mxu0
      %v1868 = vpop.f32.mrb[0].mxu0
      %v1869 = vadd.f32 %v1643, %v1868
      %v1870 = vpop.f32.mrb[0].mxu0
      %1871 = vmatprep.mubr.bf16.mxu0 %v1365
      %1872 = vmatmul.mubr.bf16.gmra.mrb[0].mxu0 %v1301
      %v1873 = vpop.f32.mrb[0].mxu0
      %v1874 = vadd.f32 %v1643, %v1873
      %v1875 = vpop.f32.mrb[0].mxu0
      %v1876 = vpop.f32.mrb[0].mxu0
      %v1877 = vadd.f32 %v1643, %v1876
      %v1878 = vpop.f32.mrb[0].mxu0
      %1879 = vdwg.mxu0
      %1880 = vmatprep.subr.bf16.mxu0 0
      %1881 = vmatpush1.bf16.msra.mxu0 %v1769
      %1882 = vmatprep.subr.bf16.mxu0 0
      %1883 = vmatpush1.bf16.msra.mxu0 %v1770
      %1884 = vmatprep.subr.bf16.mxu0 0
      %1885 = vmatpush1.bf16.msra.mxu0 %v1771
      %1886 = vmatprep.subr.bf16.mxu0 0
      %1887 = vmatpush1.bf16.msra.mxu0 %v1772
      %1888 = vmatprep.subr.bf16.mxu0 0
      %1889 = vmatpush1.bf16.msra.mxu0 %v1773
      %1890 = vmatprep.subr.bf16.mxu0 0
      %1891 = vmatpush1.bf16.msra.mxu0 %v1774
      %1892 = vmatprep.subr.bf16.mxu0 0
      %1893 = vmatpush1.bf16.msra.mxu0 %v1775
      %1894 = vmatprep.subr.bf16.mxu0 0
      %1895 = vmatpush1.bf16.msra.mxu0 %v1776
      %1896 = vmatprep.subr.bf16.mxu0 0
      %1897 = vmatpush1.bf16.msra.mxu0 %v1777
      %1898 = vmatprep.subr.bf16.mxu0 0
      %1899 = vmatpush1.bf16.msra.mxu0 %v1778
      %1900 = vmatprep.subr.bf16.mxu0 0
      %1901 = vmatpush1.bf16.msra.mxu0 %v1779
      %1902 = vmatprep.subr.bf16.mxu0 0
      %1903 = vmatpush1.bf16.msra.mxu0 0
      %1904 = vmatprep.subr.bf16.mxu0 0
      %1905 = vmatpush1.bf16.msra.mxu0 0
      %1906 = vmatprep.subr.bf16.mxu0 0
      %1907 = vmatpush1.bf16.msra.mxu0 0
      %1908 = vmatprep.subr.bf16.mxu0 0
      %1909 = vmatpush1.bf16.msra.mxu0 0
      %1910 = vmatprep.subr.bf16.mxu0 0
      %1911 = vmatpush1.bf16.msra.mxu0 0
      %1912 = vmatprep.mubr.bf16.mxu0 %v1807
      %1913 = vmatmul.mubr.bf16.gmra.mrb[0].mxu0 %v1553
      %v1914 = vpop.f32.mrb[0].mxu0
      %v1915 = vadd.f32 %v1850, %v1914
      %v1916 = vpop.f32.mrb[0].mxu0
      %v1917 = vpop.f32.mrb[0].mxu0
      %v1918 = vadd.f32 %v1853, %v1917
      %v1919 = vpop.f32.mrb[0].mxu0
      %1920 = vmatprep.mubr.bf16.mxu0 %v1809
      %1921 = vmatmul.mubr.bf16.gmra.mrb[0].mxu0 %v1556
      %v1922 = vpop.f32.mrb[0].mxu0
      %v1923 = vadd.f32 %v1858, %v1922
      %v1924 = vpop.f32.mrb[0].mxu0
      %v1925 = vpop.f32.mrb[0].mxu0
      %v1926 = vadd.f32 %v1861, %v1925
      %v1927 = vpop.f32.mrb[0].mxu0
      %1928 = vmatprep.mubr.bf16.mxu0 %v1811
      %1929 = vmatmul.mubr.bf16.gmra.mrb[0].mxu0 %v1559
      %v1930 = vpop.f32.mrb[0].mxu0
      %v1931 = vadd.f32 %v1866, %v1930
      %v1932 = vpop.f32.mrb[0].mxu0
      %v1933 = vpop.f32.mrb[0].mxu0
      %v1934 = vadd.f32 %v1869, %v1933
      %v1935 = vpop.f32.mrb[0].mxu0
      %1936 = vmatprep.mubr.bf16.mxu0 %v1813
      %1937 = vmatmul.mubr.bf16.gmra.mrb[0].mxu0 %v1562
      %v1938 = vpop.f32.mrb[0].mxu0
      %v1939 = vadd.f32 %v1874, %v1938
      %v1940 = vpop.f32.mrb[0].mxu0
      %v1941 = vpop.f32.mrb[0].mxu0
      %v1942 = vadd.f32 %v1877, %v1941
      %v1943 = vpop.f32.mrb[0].mxu0
      %1944 = vdwg.mxu0
      %v1945 = vpack.c.bf16 %v1918, %v1915
      %v1946 = vpack.c.bf16 %v1926, %v1923
      %v1947 = vpack.c.bf16 %v1934, %v1931
      %v1948 = vpack.c.bf16 %v1942, %v1939
      %v1953 = vunpack.c.l.b16 %v1945
      %v1954 = vunpack.c.h.b16 %v1945
      %v1955 = vunpack.c.l.b16 %v1946
      %v1956 = vunpack.c.h.b16 %v1946
      %v1957 = vunpack.c.l.b16 %v1947
      %v1958 = vunpack.c.h.b16 %v1947
      %v1959 = vunpack.c.l.b16 %v1948
      %v1960 = vunpack.c.h.b16 %v1948
      %v1961 = vpack.c.b16 %v1953, %v1953
      %v1962 = vpack.c.b16 %v1954, %v1954
      %v1963 = vpack.c.b16 %v1955, %v1955
      %v1964 = vpack.c.b16 %v1956, %v1956
      %v1965 = vpack.c.b16 %v1957, %v1957
      %v1966 = vpack.c.b16 %v1958, %v1958
      %v1967 = vpack.c.b16 %v1959, %v1959
      %v1968 = vpack.c.b16 %v1960, %v1960
      %vm1977 = vcmask 125952
      %1978 = vst.msk [vmem:[%s342] sm:$0xf] %vm1977, %v1961
      %1979 = vst.msk [vmem:[%s342 + $0x4] sm:$0xf] %vm1977, %v1962
      %1980 = vst.msk [vmem:[%s342 + $0x8] sm:$0xf] %vm1977, %v1963
      %1981 = vst.msk [vmem:[%s342 + $0xc] sm:$0xf] %vm1977, %v1964
      %1982 = vst.msk [vmem:[%s342 + $0x10] sm:$0xf] %vm1977, %v1965
      %1983 = vst.msk [vmem:[%s342 + $0x14] sm:$0xf] %vm1977, %v1966
      %1984 = vst.msk [vmem:[%s342 + $0x18] sm:$0xf] %vm1977, %v1967
      %1985 = vst.msk [vmem:[%s342 + $0x1c] sm:$0xf] %vm1977, %v1968
      %p1986 = scmp.lt.s32.totalorder %s20, 1
      %s1987 = scalar_select %p1986, %s20, 1
      %p1988 = scmp.lt.s32.totalorder %s21, 3
      %s1989 = scalar_select %p1988, %s21, 3
      %s1990 = smul.addr %s1989, 8
      %s1991 = smul.addr %s1987, 32
      %s1992 = sadd.s32 %s1990, %s1991
      %s1993 = smul.addr %s1992, 4
      %s1994 = scalar_lea.vmem %s5, %s1993
      // Predicated region
      $region41: #{_lambda_.9} parent=39 // pred_check
        %p1995 = pneg %p178
      $region42: #{_lambda_.9} parent=39 // pred_check_branch
        %1997 = sbr.rel (%p1995) target = $region44
      $region43: #{_lambda_.9} parent=39 // pred_region
        _
      $region44: #{_lambda_.9} parent=39 // pred_fallthru
        _
    $region40: #{_lambda_.9} parent=5 // pred_fallthru
      _
    %p1998 = scmp.le.s32.totalorder 2, %s11
    // Predicated region
    $region45: #{_lambda_.9} parent=5 // pred_check
      %p1999 = pneg %p1998
    $region46: #{_lambda_.9} parent=5 // pred_check_branch
      %2001 = sbr.rel (%p1999) target = $region48
    $region47: #{_lambda_.9} parent=5 // pred_region
      %s2002 = ssub.s32 %s11, 2
      // Predicated region
      $region49: #{_lambda_.9} parent=47 // pred_check
        %p2003 = pneg %p184
      $region50: #{_lambda_.9} parent=47 // pred_check_branch
        %2005 = sbr.rel (%p2003) target = $region52
      $region51: #{_lambda_.9} parent=47 // pred_region
        %p2006 = scmp.lt.s32.totalorder %s22, 1
        %s2007 = scalar_select %p2006, %s22, 1
        %p2008 = scmp.lt.s32.totalorder %s23, 3
        %s2009 = scalar_select %p2008, %s23, 3
        %s2010 = smul.addr %s2009, 8
        %s2011 = smul.addr %s2007, 32
        %s2012 = sadd.s32 %s2010, %s2011
        %s2013 = smul.addr %s2012, 4
        %s2014 = scalar_lea.vmem %s5, %s2013
      $region52: #{_lambda_.9} parent=47 // pred_fallthru
        _
    $region48: #{_lambda_.9} parent=5 // pred_fallthru
      _
  $region6: #{_lambda_.9} parent=0 // loop_footer
    %s15 = sadd.s32 1, %s11
  $region7: #{_lambda_.9} parent=0 // loop_footer_branch
    %10 = sbr.rel target = $region3
  $region8: #{_lambda_.9} parent=0 // loop_exit
    _

</llo_original>
